<compile_context>
chip_gen: v7x
topology: tpu7x:2x2x1
jax: 0.10.0
libtpu: 0.0.40
codegen_flags: <defaults>
</compile_context>

<pallas_src>
import functools

import jax
import jax.numpy as jnp
from jax.experimental import pallas as pl
from jax.experimental.pallas import tpu as pltpu


# ----------------------------------------------------------------------------------
# Fused kernel: grid = (num_heads,)
#   prologue (h==0): zero out_ref/norm, fused QKV + fused bias-MLP layer 1 for all heads
#   per-head:        bias (hb @ Wb2) + attention + accumulate head @ Wo_h + L1 norm
#   epilogue (last): +bo, residual, LayerNorm, FFN, residual, LayerNorm
# ----------------------------------------------------------------------------------
def fused_layer_kernel(src_ref, sf_ref,
                       wqkv_ref, bqkv_ref, wb1_ref, bb1_ref,
                       wb2_ref, bb2_ref, wo_ref, bo_ref,
                       g1_ref, be1_ref, wf1_ref, bf1_ref,
                       wf2_ref, bf2_ref, g2_ref, be2_ref,
                       out_ref, norm_ref,
                       qkv_scr, hb_scr,
                       *, H, B, L, DQ, HB, scale, eps):
    h = pl.program_id(0)

    # ---- prologue: compute-once fused projections for all heads -----------------
    @pl.when(h == 0)
    def _prologue():
        out_ref[...] = jnp.zeros_like(out_ref)
        norm_ref[0, 0] = 0.0

        x0 = src_ref[...]                                              # (B*L, D)
        # fused Q/K/V for all heads: one matmul instead of 3*H tiny ones
        qkv_all = (jnp.dot(x0, wqkv_ref[...], preferred_element_type=jnp.float32)
                   + bqkv_ref[...])                                    # (B*L, H*3*DQ)
        # fused bias-MLP first layer for all heads
        hb_all = jnp.maximum(
            jnp.dot(sf_ref[...], wb1_ref[...], preferred_element_type=jnp.float32)
            + bb1_ref[...], 0.0)                                       # (B, H*HB)
        for i in range(H):                                             # static unroll
            qkv_scr[i] = qkv_all[:, i * 3 * DQ:(i + 1) * 3 * DQ]
            hb_scr[i] = hb_all[:, i * HB:(i + 1) * HB]

    # ---- per-head bias MLP second layer (Wb2 is the only streamed operand) ------
    hb = hb_scr[h]                                                     # (B, HB)
    bias_flat = (jnp.dot(hb, wb2_ref[0], preferred_element_type=jnp.float32)
                 + bb2_ref[h])                                         # (B, L*L)
    # (B, L*L) -> (B, L, L) built in registers (no VMEM scratch round-trip).
    bias = jnp.stack([bias_flat[:, i * L:(i + 1) * L] for i in range(L)], axis=1)

    # ---- per-head attention (add_mode == 0) --------------------------------------
    qkv = qkv_scr[h]                                                   # (B*L, 3*DQ)
    q = qkv[:, :DQ].reshape(B, L, DQ)
    k = qkv[:, DQ:2 * DQ].reshape(B, L, DQ)
    v = qkv[:, 2 * DQ:3 * DQ].reshape(B, L, DQ)

    temp = jnp.einsum('blq,bmq->blm', q, k,
                      preferred_element_type=jnp.float32) / scale      # (B, L, L)
    m = jnp.max(temp, axis=-1, keepdims=True)
    e = jnp.exp(temp - m)
    p = e / jnp.sum(e, axis=-1, keepdims=True)                         # softmax
    att = p + bias
    head = jnp.einsum('blm,bmk->blk', att, v,
                      preferred_element_type=jnp.float32)              # (B, L, DQ)

    # concat_h(head_h) @ Wo  ==  sum_h head_h @ Wo[h*DQ:(h+1)*DQ, :]
    # accumulate directly into the VMEM-resident output block.
    out_ref[...] += jnp.dot(head.reshape(B * L, DQ), wo_ref[h],
                            preferred_element_type=jnp.float32)        # (B*L, DM)

    # L1 "smoothness" norm of bias, summed over heads
    d1 = jnp.sum(jnp.abs(bias[:, 1:, :] - bias[:, :-1, :]))
    d2 = jnp.sum(jnp.abs(bias[:, :, 1:] - bias[:, :, :-1]))
    norm_ref[0, 0] += d1 + d2

    # ---- epilogue on the last head ------------------------------------------------
    @pl.when(h == pl.num_programs(0) - 1)
    def _epilogue():
        x = src_ref[...]                                               # (B*L, D)
        a = out_ref[...] + bo_ref[...]                                 # (B*L, DM)
        y = x + a                                                      # residual (dropout = id)
        mu = jnp.mean(y, axis=-1, keepdims=True)
        var = jnp.mean((y - mu) ** 2, axis=-1, keepdims=True)
        y = (y - mu) * jax.lax.rsqrt(var + eps) * g1_ref[...] + be1_ref[...]

        hff = jnp.maximum(
            jnp.dot(y, wf1_ref[...], preferred_element_type=jnp.float32)
            + bf1_ref[...], 0.0)
        z = y + (jnp.dot(hff, wf2_ref[...], preferred_element_type=jnp.float32)
                 + bf2_ref[...])                                       # residual
        mu2 = jnp.mean(z, axis=-1, keepdims=True)
        var2 = jnp.mean((z - mu2) ** 2, axis=-1, keepdims=True)
        out_ref[...] = (z - mu2) * jax.lax.rsqrt(var2 + eps) * g2_ref[...] + be2_ref[...]


# ----------------------------------------------------------------------------------
# Wrapper
# ----------------------------------------------------------------------------------
def transformer_bias_encoder_layer(src, sf, params):
    B, L, D = src.shape
    H, _, DQ = params['Wq'].shape
    DS = sf.shape[1]
    HB = params['Wb1'].shape[2]              # 1024 (hardcoded in the PyTorch module)
    L2 = L * L
    DM = params['Wo'].shape[1]
    DFF = params['Wf1'].shape[1]
    scale = float(DQ) ** 0.5
    assert D == DM, "residual in Residual_MH requires dim_in == dim_model"

    src2 = src.reshape(B * L, D)             # flatten tokens once, in the wrapper

    # Fused per-head Q/K/V weights, head-major along the output dim: (D, H*3*DQ).
    wqkv = jnp.concatenate([params['Wq'], params['Wk'], params['Wv']], axis=2)   # (H, D, 3DQ)
    wqkv = jnp.transpose(wqkv, (1, 0, 2)).reshape(D, H * 3 * DQ)
    bqkv = jnp.concatenate([params['bq'], params['bk'], params['bv']], axis=2)   # (H, 1, 3DQ)
    bqkv = jnp.transpose(bqkv, (1, 0, 2)).reshape(1, H * 3 * DQ)

    # Fused bias-MLP first layer, head-major: (DS, H*HB).
    wb1 = jnp.transpose(params['Wb1'], (1, 0, 2)).reshape(DS, H * HB)
    bb1 = jnp.transpose(params['bb1'], (1, 0, 2)).reshape(1, H * HB)

    wo_h = params['Wo'].reshape(H, DQ, DM)   # per-head row-slices of the output linear

    kernel = functools.partial(fused_layer_kernel,
                               H=H, B=B, L=L, DQ=DQ, HB=HB, scale=scale, eps=1e-5)

    const2 = lambda h: (0, 0)                 # resident across the head grid
    const3 = lambda h: (0, 0, 0)
    stream3 = lambda h: (h, 0, 0)             # per-head streamed block

    # TODO(synk): at large L (roughly L > 64 on v7x's 64 MiB VMEM) the double-buffered
    # (1, HB, L^2) Wb2 block should be tiled along HB with an inner accumulation loop.
    out2, norm = pl.pallas_call(
        kernel,
        out_shape=(jax.ShapeDtypeStruct((B * L, DM), jnp.float32),
                   jax.ShapeDtypeStruct((1, 1), jnp.float32)),
        grid_spec=pltpu.PrefetchScalarGridSpec(
            num_scalar_prefetch=0, grid=(H,),
            in_specs=[
                pl.BlockSpec((B * L, D), const2),            # src (resident)
                pl.BlockSpec((B, DS), const2),               # sf  (resident)
                pl.BlockSpec((D, H * 3 * DQ), const2),       # fused Wqkv (resident)
                pl.BlockSpec((1, H * 3 * DQ), const2),       # fused bqkv (resident)
                pl.BlockSpec((DS, H * HB), const2),          # fused Wb1  (resident)
                pl.BlockSpec((1, H * HB), const2),           # fused bb1  (resident)
                pl.BlockSpec((1, HB, L2), stream3),          # Wb2 (streamed per head)
                pl.BlockSpec((H, 1, L2), const3),            # bb2 (resident, indexed by h)
                pl.BlockSpec((H, DQ, DM), const3),           # Wo per-head slices (resident)
                pl.BlockSpec((1, DM), const2),               # bo
                pl.BlockSpec((1, DM), const2),               # g1
                pl.BlockSpec((1, DM), const2),               # be1
                pl.BlockSpec((DM, DFF), const2),             # Wf1
                pl.BlockSpec((1, DFF), const2),              # bf1
                pl.BlockSpec((DFF, DM), const2),             # Wf2
                pl.BlockSpec((1, DM), const2),               # bf2
                pl.BlockSpec((1, DM), const2),               # g2
                pl.BlockSpec((1, DM), const2),               # be2
            ],
            out_specs=(
                pl.BlockSpec((B * L, DM), const2),           # resident output/accumulator
                pl.BlockSpec((1, 1), const2, memory_space=pltpu.MemorySpace.SMEM),
            ),
            scratch_shapes=[
                pltpu.VMEM((H, B * L, 3 * DQ), jnp.float32), # fused QKV (all heads)
                pltpu.VMEM((H, B, HB), jnp.float32),         # fused bias-MLP hidden
            ],
        ),
        # "arbitrary" is required for correctness: out_ref/norm accumulation and the
        # last-head epilogue assume in-order execution over the head axis.
        compiler_params=pltpu.CompilerParams(
            dimension_semantics=("arbitrary",),
            vmem_limit_bytes=32 * 1024 * 1024,
        ),
    )(src2, sf, wqkv, bqkv, wb1, bb1,
      params['Wb2'], params['bb2'], wo_h, params['bo'],
      params['g1'], params['be1'], params['Wf1'], params['bf1'],
      params['Wf2'], params['bf2'], params['g2'], params['be2'])

    return out2.reshape(B, L, DM), norm[0, 0]


# ----------------------------------------------------------------------------------
# Pure-JAX reference (same math) for a sanity check
# ----------------------------------------------------------------------------------
def reference(src, sf, p):
    B, L, D = src.shape
    H, _, DQ = p['Wq'].shape
    outs, norms = [], []
    for h in range(H):
        q = src @ p['Wq'][h] + p['bq'][h, 0]
        k = src @ p['Wk'][h] + p['bk'][h, 0]
        v = src @ p['Wv'][h] + p['bv'][h, 0]
        hb = jnp.maximum(sf @ p['Wb1'][h] + p['bb1'][h, 0], 0.0)
        bias = (hb @ p['Wb2'][h] + p['bb2'][h, 0]).reshape(B, L, L)
        temp = jnp.einsum('blq,bmq->blm', q, k) / (float(DQ) ** 0.5)
        att = jax.nn.softmax(temp, axis=-1) + bias
        outs.append(jnp.einsum('blm,bmk->blk', att, v))
        norms.append(jnp.sum(jnp.abs(bias[:, 1:, :] - bias[:, :-1, :]))
                     + jnp.sum(jnp.abs(bias[:, :, 1:] - bias[:, :, :-1])))
    hidden = jnp.concatenate(outs, axis=-1)
    norm = jnp.sum(jnp.stack(norms))

    def ln(x, g, b):
        mu = x.mean(-1, keepdims=True)
        var = ((x - mu) ** 2).mean(-1, keepdims=True)
        return (x - mu) / jnp.sqrt(var + 1e-5) * g + b

    y = ln(src + hidden @ p['Wo'] + p['bo'][0], p['g1'][0], p['be1'][0])
    hff = jnp.maximum(y @ p['Wf1'] + p['bf1'][0], 0.0)
    z = ln(y + hff @ p['Wf2'] + p['bf2'][0], p['g2'][0], p['be2'][0])
    return z, norm


# ----------------------------------------------------------------------------------
if __name__ == "__main__":
    # Small shapes consistent with the module (dim_in == dim_model required by the residual)
    B, L = 2, 8                     # batch, seq_len
    D_IN = D_MODEL = 32             # dim_in / dim_model
    H = 2                           # num_heads
    DQ = DK = D_MODEL // H          # 16
    DFF = 64                        # dim_feedforward
    DS = 8                          # dim_s
    HB = 1024                       # bias-MLP hidden (hardcoded in the PyTorch module)

    key = jax.random.PRNGKey(0)
    ks = jax.random.split(key, 24)
    s = 0.1

    params = dict(
        Wq=jax.random.normal(ks[0], (H, D_IN, DQ)) * s,
        bq=jax.random.normal(ks[1], (H, 1, DQ)) * s,
        Wk=jax.random.normal(ks[2], (H, D_IN, DK)) * s,
        bk=jax.random.normal(ks[3], (H, 1, DK)) * s,
        Wv=jax.random.normal(ks[4], (H, D_IN, DK)) * s,
        bv=jax.random.normal(ks[5], (H, 1, DK)) * s,
        Wb1=jax.random.normal(ks[6], (H, DS, HB)) * s,
        bb1=jax.random.normal(ks[7], (H, 1, HB)) * s,
        Wb2=jax.random.normal(ks[8], (H, HB, L * L)) * s,
        bb2=jax.random.normal(ks[9], (H, 1, L * L)) * s,
        Wo=jax.random.normal(ks[10], (H * DK, D_MODEL)) * s,
        bo=jax.random.normal(ks[11], (1, D_MODEL)) * s,
        g1=jnp.ones((1, D_MODEL), jnp.float32),
        be1=jnp.zeros((1, D_MODEL), jnp.float32),
        Wf1=jax.random.normal(ks[12], (D_MODEL, DFF)) * s,
        bf1=jax.random.normal(ks[13], (1, DFF)) * s,
        Wf2=jax.random.normal(ks[14], (DFF, D_MODEL)) * s,
        bf2=jax.random.normal(ks[15], (1, D_MODEL)) * s,
        g2=jnp.ones((1, D_MODEL), jnp.float32),
        be2=jnp.zeros((1, D_MODEL), jnp.float32),
    )
    params = jax.tree_util.tree_map(lambda x: x.astype(jnp.float32), params)

    src = jax.random.normal(ks[16], (B, L, D_IN), jnp.float32)
    sf = jax.random.normal(ks[17], (B, DS), jnp.float32)

    out, norm = transformer_bias_encoder_layer(src, sf, params)
    out = jax.block_until_ready(out)
    norm = jax.block_until_ready(norm)

    ref_out, ref_norm = reference(src, sf, params)
    assert jnp.allclose(out, ref_out, atol=2e-3, rtol=2e-3), "output mismatch"
    assert jnp.allclose(norm, ref_norm, atol=2e-3, rtol=2e-3), "norm mismatch"

    # TODO(synk): pos-dependent CPE branch and add_mode 1-5 are dead code in the
    # PyTorch forward (pos=None, add_mode=0); unused params (agg, agg_eps, b1,
    # q_cpe, k_cpe) are not materialized.
    print("KERNEL_OK")
</pallas_src>

<mosaic_0001>
module attributes {stable_mosaic.version = 11 : i64} {
  func.func @fused_layer_kernel(%arg0: i32, %arg1: memref<16x32xf32, #tpu.memory_space<vmem>>, %arg2: memref<2x8xf32, #tpu.memory_space<vmem>>, %arg3: memref<32x96xf32, #tpu.memory_space<vmem>>, %arg4: memref<1x96xf32, #tpu.memory_space<vmem>>, %arg5: memref<8x2048xf32, #tpu.memory_space<vmem>>, %arg6: memref<1x2048xf32, #tpu.memory_space<vmem>>, %arg7: memref<1x1024x64xf32, #tpu.memory_space<vmem>>, %arg8: memref<2x1x64xf32, #tpu.memory_space<vmem>>, %arg9: memref<2x16x32xf32, #tpu.memory_space<vmem>>, %arg10: memref<1x32xf32, #tpu.memory_space<vmem>>, %arg11: memref<1x32xf32, #tpu.memory_space<vmem>>, %arg12: memref<1x32xf32, #tpu.memory_space<vmem>>, %arg13: memref<32x64xf32, #tpu.memory_space<vmem>>, %arg14: memref<1x64xf32, #tpu.memory_space<vmem>>, %arg15: memref<64x32xf32, #tpu.memory_space<vmem>>, %arg16: memref<1x32xf32, #tpu.memory_space<vmem>>, %arg17: memref<1x32xf32, #tpu.memory_space<vmem>>, %arg18: memref<1x32xf32, #tpu.memory_space<vmem>>, %arg19: memref<16x32xf32, #tpu.memory_space<vmem>>, %arg20: memref<1x1xf32, #tpu.memory_space<smem>>, %arg21: memref<2x16x48xf32, #tpu.memory_space<vmem>>, %arg22: memref<2x2x1024xf32, #tpu.memory_space<vmem>>) attributes {dimension_semantics = [#tpu.dimension_semantics<arbitrary>], iteration_bounds = array<i64: 2>, scalar_prefetch = 0 : i64, scratch_operands = 2 : i64, tpu.core_type = #tpu.core_type<tc>, window_params = [{pipeline_mode = #tpu.pipeline_mode<synchronous>, transform_indices = @transform_0, window_bounds = array<i64: 16, 32>}, {pipeline_mode = #tpu.pipeline_mode<synchronous>, transform_indices = @transform_1, window_bounds = array<i64: 2, 8>}, {pipeline_mode = #tpu.pipeline_mode<synchronous>, transform_indices = @transform_2, window_bounds = array<i64: 32, 96>}, {pipeline_mode = #tpu.pipeline_mode<synchronous>, transform_indices = @transform_3, window_bounds = array<i64: 1, 96>}, {pipeline_mode = #tpu.pipeline_mode<synchronous>, transform_indices = @transform_4, window_bounds = array<i64: 8, 2048>}, {pipeline_mode = #tpu.pipeline_mode<synchronous>, transform_indices = @transform_5, window_bounds = array<i64: 1, 2048>}, {transform_indices = @transform_6, window_bounds = array<i64: 1, 1024, 64>}, {pipeline_mode = #tpu.pipeline_mode<synchronous>, transform_indices = @transform_7, window_bounds = array<i64: 2, 1, 64>}, {pipeline_mode = #tpu.pipeline_mode<synchronous>, transform_indices = @transform_8, window_bounds = array<i64: 2, 16, 32>}, {pipeline_mode = #tpu.pipeline_mode<synchronous>, transform_indices = @transform_9, window_bounds = array<i64: 1, 32>}, {pipeline_mode = #tpu.pipeline_mode<synchronous>, transform_indices = @transform_10, window_bounds = array<i64: 1, 32>}, {pipeline_mode = #tpu.pipeline_mode<synchronous>, transform_indices = @transform_11, window_bounds = array<i64: 1, 32>}, {pipeline_mode = #tpu.pipeline_mode<synchronous>, transform_indices = @transform_12, window_bounds = array<i64: 32, 64>}, {pipeline_mode = #tpu.pipeline_mode<synchronous>, transform_indices = @transform_13, window_bounds = array<i64: 1, 64>}, {pipeline_mode = #tpu.pipeline_mode<synchronous>, transform_indices = @transform_14, window_bounds = array<i64: 64, 32>}, {pipeline_mode = #tpu.pipeline_mode<synchronous>, transform_indices = @transform_15, window_bounds = array<i64: 1, 32>}, {pipeline_mode = #tpu.pipeline_mode<synchronous>, transform_indices = @transform_16, window_bounds = array<i64: 1, 32>}, {pipeline_mode = #tpu.pipeline_mode<synchronous>, transform_indices = @transform_17, window_bounds = array<i64: 1, 32>}, {pipeline_mode = #tpu.pipeline_mode<synchronous>, transform_indices = @transform_18, window_bounds = array<i64: 16, 32>}, {transform_indices = @transform_19, window_bounds = array<i64: 1, 1>}]} {
    %c0_i32 = arith.constant 0 : i32
    %0 = arith.cmpi eq, %arg0, %c0_i32 : i32
    %1 = arith.extui %0 : i1 to i32
    %c0_i32_0 = arith.constant 0 : i32
    %2 = arith.cmpi ne, %1, %c0_i32_0 : i32
    scf.if %2 {
      %cst_28 = arith.constant 0.000000e+00 : f32
      %85 = vector.broadcast %cst_28 : f32 to vector<16x32xf32>
      %c0_29 = arith.constant 0 : index
      %c0_30 = arith.constant 0 : index
      %86 = vector.load %arg19[%c0_29, %c0_30] : memref<16x32xf32, #tpu.memory_space<vmem>>, vector<16x32xf32>
      tpu.vector_store %arg19[%c0_29, %c0_30], %85 {strides = array<i32>} : memref<16x32xf32, #tpu.memory_space<vmem>>, vector<16x32xf32>,
      %cst_31 = arith.constant 0.000000e+00 : f32
      %c0_32 = arith.constant 0 : index
      %c0_33 = arith.constant 0 : index
      %87 = memref.load %arg20[%c0_32, %c0_33] : memref<1x1xf32, #tpu.memory_space<smem>>
      memref.store %cst_31, %arg20[%c0_32, %c0_33] : memref<1x1xf32, #tpu.memory_space<smem>>
      %c0_34 = arith.constant 0 : index
      %c0_35 = arith.constant 0 : index
      %88 = vector.load %arg1[%c0_34, %c0_35] : memref<16x32xf32, #tpu.memory_space<vmem>>, vector<16x32xf32>
      %c0_36 = arith.constant 0 : index
      %c0_37 = arith.constant 0 : index
      %89 = vector.load %arg3[%c0_36, %c0_37] : memref<32x96xf32, #tpu.memory_space<vmem>>, vector<32x96xf32>
      %cst_38 = arith.constant dense<0.000000e+00> : vector<16x96xf32>
      %90 = tpu.matmul %88, %89, %cst_38 {dimension_numbers = #tpu.dot_dimension_numbers<[1], [0], [0], [1], [0, 0, 1, 1], [], []>} : vector<16x32xf32>, vector<32x96xf32>, vector<16x96xf32> -> vector<16x96xf32>
      %c0_39 = arith.constant 0 : index
      %c0_40 = arith.constant 0 : index
      %91 = vector.load %arg4[%c0_39, %c0_40] : memref<1x96xf32, #tpu.memory_space<vmem>>, vector<1x96xf32>
      %92 = vector.broadcast %91 : vector<1x96xf32> to vector<16x96xf32>
      %93 = arith.addf %90, %92 : vector<16x96xf32>
      %c0_41 = arith.constant 0 : index
      %c0_42 = arith.constant 0 : index
      %94 = vector.load %arg2[%c0_41, %c0_42] : memref<2x8xf32, #tpu.memory_space<vmem>>, vector<2x8xf32>
      %c0_43 = arith.constant 0 : index
      %c0_44 = arith.constant 0 : index
      %95 = vector.load %arg5[%c0_43, %c0_44] : memref<8x2048xf32, #tpu.memory_space<vmem>>, vector<8x2048xf32>
      %cst_45 = arith.constant dense<0.000000e+00> : vector<2x2048xf32>
      %96 = tpu.matmul %94, %95, %cst_45 {dimension_numbers = #tpu.dot_dimension_numbers<[1], [0], [0], [1], [0, 0, 1, 1], [], []>} : vector<2x8xf32>, vector<8x2048xf32>, vector<2x2048xf32> -> vector<2x2048xf32>
      %c0_46 = arith.constant 0 : index
      %c0_47 = arith.constant 0 : index
      %97 = vector.load %arg6[%c0_46, %c0_47] : memref<1x2048xf32, #tpu.memory_space<vmem>>, vector<1x2048xf32>
      %98 = vector.broadcast %97 : vector<1x2048xf32> to vector<2x2048xf32>
      %99 = arith.addf %96, %98 : vector<2x2048xf32>
      %cst_48 = arith.constant 0.000000e+00 : f32
      %100 = vector.broadcast %cst_48 : f32 to vector<2x2048xf32>
      %101 = arith.maximumf %99, %100 : vector<2x2048xf32>
      %102 = vector.extract_strided_slice %93 {offsets = [0, 0], sizes = [16, 48], strides = [1, 1]} : vector<16x96xf32> to vector<16x48xf32>
      %c0_49 = arith.constant 0 : index
      %c0_50 = arith.constant 0 : index
      %c0_51 = arith.constant 0 : index
      %103 = vector.load %arg21[%c0_49, %c0_50, %c0_51] : memref<2x16x48xf32, #tpu.memory_space<vmem>>, vector<1x16x48xf32>
      %104 = vector.shape_cast %103 : vector<1x16x48xf32> to vector<16x48xf32>
      %105 = vector.shape_cast %102 : vector<16x48xf32> to vector<1x16x48xf32>
      tpu.vector_store %arg21[%c0_49, %c0_50, %c0_51], %105 {strides = array<i32>} : memref<2x16x48xf32, #tpu.memory_space<vmem>>, vector<1x16x48xf32>,
      %106 = vector.extract_strided_slice %101 {offsets = [0, 0], sizes = [2, 1024], strides = [1, 1]} : vector<2x2048xf32> to vector<2x1024xf32>
      %c0_52 = arith.constant 0 : index
      %c0_53 = arith.constant 0 : index
      %c0_54 = arith.constant 0 : index
      %107 = vector.load %arg22[%c0_52, %c0_53, %c0_54] : memref<2x2x1024xf32, #tpu.memory_space<vmem>>, vector<1x2x1024xf32>
      %108 = vector.shape_cast %107 : vector<1x2x1024xf32> to vector<2x1024xf32>
      %109 = vector.shape_cast %106 : vector<2x1024xf32> to vector<1x2x1024xf32>
      tpu.vector_store %arg22[%c0_52, %c0_53, %c0_54], %109 {strides = array<i32>} : memref<2x2x1024xf32, #tpu.memory_space<vmem>>, vector<1x2x1024xf32>,
      %110 = vector.extract_strided_slice %93 {offsets = [0, 48], sizes = [16, 48], strides = [1, 1]} : vector<16x96xf32> to vector<16x48xf32>
      %c1 = arith.constant 1 : index
      %c0_55 = arith.constant 0 : index
      %c0_56 = arith.constant 0 : index
      %111 = vector.load %arg21[%c1, %c0_55, %c0_56] : memref<2x16x48xf32, #tpu.memory_space<vmem>>, vector<1x16x48xf32>
      %112 = vector.shape_cast %111 : vector<1x16x48xf32> to vector<16x48xf32>
      %113 = vector.shape_cast %110 : vector<16x48xf32> to vector<1x16x48xf32>
      tpu.vector_store %arg21[%c1, %c0_55, %c0_56], %113 {strides = array<i32>} : memref<2x16x48xf32, #tpu.memory_space<vmem>>, vector<1x16x48xf32>,
      %114 = vector.extract_strided_slice %101 {offsets = [0, 1024], sizes = [2, 1024], strides = [1, 1]} : vector<2x2048xf32> to vector<2x1024xf32>
      %c1_57 = arith.constant 1 : index
      %c0_58 = arith.constant 0 : index
      %c0_59 = arith.constant 0 : index
      %115 = vector.load %arg22[%c1_57, %c0_58, %c0_59] : memref<2x2x1024xf32, #tpu.memory_space<vmem>>, vector<1x2x1024xf32>
      %116 = vector.shape_cast %115 : vector<1x2x1024xf32> to vector<2x1024xf32>
      %117 = vector.shape_cast %114 : vector<2x1024xf32> to vector<1x2x1024xf32>
      tpu.vector_store %arg22[%c1_57, %c0_58, %c0_59], %117 {strides = array<i32>} : memref<2x2x1024xf32, #tpu.memory_space<vmem>>, vector<1x2x1024xf32>,
    } else {
    }
    %3 = arith.index_cast %arg0 : i32 to index
    %c0 = arith.constant 0 : index
    %c0_1 = arith.constant 0 : index
    %4 = vector.load %arg22[%3, %c0, %c0_1] : memref<2x2x1024xf32, #tpu.memory_space<vmem>>, vector<1x2x1024xf32>
    %5 = vector.shape_cast %4 : vector<1x2x1024xf32> to vector<2x1024xf32>
    %c0_2 = arith.constant 0 : index
    %c0_3 = arith.constant 0 : index
    %c0_4 = arith.constant 0 : index
    %6 = vector.load %arg7[%c0_2, %c0_3, %c0_4] : memref<1x1024x64xf32, #tpu.memory_space<vmem>>, vector<1x1024x64xf32>
    %7 = vector.shape_cast %6 : vector<1x1024x64xf32> to vector<1024x64xf32>
    %cst = arith.constant dense<0.000000e+00> : vector<2x64xf32>
    %8 = tpu.matmul %5, %7, %cst {dimension_numbers = #tpu.dot_dimension_numbers<[1], [0], [0], [1], [0, 0, 1, 1], [], []>} : vector<2x1024xf32>, vector<1024x64xf32>, vector<2x64xf32> -> vector<2x64xf32>
    %9 = arith.index_cast %arg0 : i32 to index
    %c0_5 = arith.constant 0 : index
    %c0_6 = arith.constant 0 : index
    %10 = vector.load %arg8[%9, %c0_5, %c0_6] : memref<2x1x64xf32, #tpu.memory_space<vmem>>, vector<1x1x64xf32>
    %11 = vector.shape_cast %10 : vector<1x1x64xf32> to vector<1x64xf32>
    %12 = vector.broadcast %11 : vector<1x64xf32> to vector<2x64xf32>
    %13 = arith.addf %8, %12 : vector<2x64xf32>
    %14 = vector.extract_strided_slice %13 {offsets = [0, 0], sizes = [2, 8], strides = [1, 1]} : vector<2x64xf32> to vector<2x8xf32>
    %15 = vector.extract_strided_slice %13 {offsets = [0, 8], sizes = [2, 8], strides = [1, 1]} : vector<2x64xf32> to vector<2x8xf32>
    %16 = vector.extract_strided_slice %13 {offsets = [0, 16], sizes = [2, 8], strides = [1, 1]} : vector<2x64xf32> to vector<2x8xf32>
    %17 = vector.extract_strided_slice %13 {offsets = [0, 24], sizes = [2, 8], strides = [1, 1]} : vector<2x64xf32> to vector<2x8xf32>
    %18 = vector.extract_strided_slice %13 {offsets = [0, 32], sizes = [2, 8], strides = [1, 1]} : vector<2x64xf32> to vector<2x8xf32>
    %19 = vector.extract_strided_slice %13 {offsets = [0, 40], sizes = [2, 8], strides = [1, 1]} : vector<2x64xf32> to vector<2x8xf32>
    %20 = vector.extract_strided_slice %13 {offsets = [0, 48], sizes = [2, 8], strides = [1, 1]} : vector<2x64xf32> to vector<2x8xf32>
    %21 = vector.extract_strided_slice %13 {offsets = [0, 56], sizes = [2, 8], strides = [1, 1]} : vector<2x64xf32> to vector<2x8xf32>
    %22 = vector.shape_cast %14 : vector<2x8xf32> to vector<2x1x8xf32>
    %23 = vector.shape_cast %15 : vector<2x8xf32> to vector<2x1x8xf32>
    %24 = vector.shape_cast %16 : vector<2x8xf32> to vector<2x1x8xf32>
    %25 = vector.shape_cast %17 : vector<2x8xf32> to vector<2x1x8xf32>
    %26 = vector.shape_cast %18 : vector<2x8xf32> to vector<2x1x8xf32>
    %27 = vector.shape_cast %19 : vector<2x8xf32> to vector<2x1x8xf32>
    %28 = vector.shape_cast %20 : vector<2x8xf32> to vector<2x1x8xf32>
    %29 = vector.shape_cast %21 : vector<2x8xf32> to vector<2x1x8xf32>
    %30 = tpu.concatenate %22, %23, %24, %25, %26, %27, %28, %29 in 1 : vector<2x1x8xf32>, vector<2x1x8xf32>, vector<2x1x8xf32>, vector<2x1x8xf32>, vector<2x1x8xf32>, vector<2x1x8xf32>, vector<2x1x8xf32>, vector<2x1x8xf32> -> vector<2x8x8xf32>
    %31 = arith.index_cast %arg0 : i32 to index
    %c0_7 = arith.constant 0 : index
    %c0_8 = arith.constant 0 : index
    %32 = vector.load %arg21[%31, %c0_7, %c0_8] : memref<2x16x48xf32, #tpu.memory_space<vmem>>, vector<1x16x48xf32>
    %33 = vector.shape_cast %32 : vector<1x16x48xf32> to vector<16x48xf32>
    %34 = vector.extract_strided_slice %33 {offsets = [0, 0], sizes = [16, 16], strides = [1, 1]} : vector<16x48xf32> to vector<16x16xf32>
    %35 = vector.shape_cast %34 : vector<16x16xf32> to vector<2x8x16xf32>
    %36 = vector.extract_strided_slice %33 {offsets = [0, 16], sizes = [16, 16], strides = [1, 1]} : vector<16x48xf32> to vector<16x16xf32>
    %37 = vector.shape_cast %36 : vector<16x16xf32> to vector<2x8x16xf32>
    %38 = vector.extract_strided_slice %33 {offsets = [0, 32], sizes = [16, 16], strides = [1, 1]} : vector<16x48xf32> to vector<16x16xf32>
    %39 = vector.shape_cast %38 : vector<16x16xf32> to vector<2x8x16xf32>
    "tpu.trace_start"() <{level = 10 : i32, message = "blq,bmq->blm"}> : () -> ()
    %cst_9 = arith.constant dense<0.000000e+00> : vector<2x8x8xf32>
    %40 = tpu.matmul %35, %37, %cst_9 {dimension_numbers = #tpu.dot_dimension_numbers<[2], [2], [1], [1], [0, 0, 0, 1, 1, 1], [0], [0]>} : vector<2x8x16xf32>, vector<2x8x16xf32>, vector<2x8x8xf32> -> vector<2x8x8xf32>
    "tpu.trace_stop"() : () -> ()
    %cst_10 = arith.constant 4.000000e+00 : f32
    %41 = vector.broadcast %cst_10 : f32 to vector<2x8x8xf32>
    %42 = arith.divf %40, %41 : vector<2x8x8xf32>
    %cst_11 = arith.constant dense<0xFF800000> : vector<2x8xf32>
    %43 = vector.multi_reduction <maximumf>, %42, %cst_11 [2] : vector<2x8x8xf32> to vector<2x8xf32>
    %44 = vector.shape_cast %43 : vector<2x8xf32> to vector<2x8x1xf32>
    %45 = vector.broadcast %44 : vector<2x8x1xf32> to vector<2x8x8xf32>
    %46 = arith.subf %42, %45 : vector<2x8x8xf32>
    %47 = math.exp %46 : vector<2x8x8xf32>
    %cst_12 = arith.constant dense<0.000000e+00> : vector<2x8xf32>
    %48 = vector.multi_reduction <add>, %47, %cst_12 [2] : vector<2x8x8xf32> to vector<2x8xf32>
    %49 = vector.shape_cast %48 : vector<2x8xf32> to vector<2x8x1xf32>
    %50 = vector.broadcast %49 : vector<2x8x1xf32> to vector<2x8x8xf32>
    %51 = arith.divf %47, %50 : vector<2x8x8xf32>
    %52 = arith.addf %51, %30 : vector<2x8x8xf32>
    "tpu.trace_start"() <{level = 10 : i32, message = "blm,bmk->blk"}> : () -> ()
    %cst_13 = arith.constant dense<0.000000e+00> : vector<2x8x16xf32>
    %53 = tpu.matmul %52, %39, %cst_13 {dimension_numbers = #tpu.dot_dimension_numbers<[2], [1], [1], [2], [0, 0, 0, 1, 1, 2], [0], [0]>} : vector<2x8x8xf32>, vector<2x8x16xf32>, vector<2x8x16xf32> -> vector<2x8x16xf32>
    "tpu.trace_stop"() : () -> ()
    %c0_14 = arith.constant 0 : index
    %c0_15 = arith.constant 0 : index
    %54 = vector.load %arg19[%c0_14, %c0_15] : memref<16x32xf32, #tpu.memory_space<vmem>>, vector<16x32xf32>
    %55 = vector.shape_cast %53 : vector<2x8x16xf32> to vector<16x16xf32>
    %56 = arith.index_cast %arg0 : i32 to index
    %c0_16 = arith.constant 0 : index
    %c0_17 = arith.constant 0 : index
    %57 = vector.load %arg9[%56, %c0_16, %c0_17] : memref<2x16x32xf32, #tpu.memory_space<vmem>>, vector<1x16x32xf32>
    %58 = vector.shape_cast %57 : vector<1x16x32xf32> to vector<16x32xf32>
    %cst_18 = arith.constant dense<0.000000e+00> : vector<16x32xf32>
    %59 = tpu.matmul %55, %58, %cst_18 {dimension_numbers = #tpu.dot_dimension_numbers<[1], [0], [0], [1], [0, 0, 1, 1], [], []>} : vector<16x16xf32>, vector<16x32xf32>, vector<16x32xf32> -> vector<16x32xf32>
    %60 = arith.addf %54, %59 : vector<16x32xf32>
    %c0_19 = arith.constant 0 : index
    %c0_20 = arith.constant 0 : index
    %61 = vector.load %arg19[%c0_19, %c0_20] : memref<16x32xf32, #tpu.memory_space<vmem>>, vector<16x32xf32>
    tpu.vector_store %arg19[%c0_19, %c0_20], %60 {strides = array<i32>} : memref<16x32xf32, #tpu.memory_space<vmem>>, vector<16x32xf32>,
    %62 = vector.extract_strided_slice %30 {offsets = [0, 1, 0], sizes = [2, 7, 8], strides = [1, 1, 1]} : vector<2x8x8xf32> to vector<2x7x8xf32>
    %63 = vector.extract_strided_slice %30 {offsets = [0, 0, 0], sizes = [2, 7, 8], strides = [1, 1, 1]} : vector<2x8x8xf32> to vector<2x7x8xf32>
    %64 = arith.subf %62, %63 : vector<2x7x8xf32>
    %65 = math.absf %64 : vector<2x7x8xf32>
    %66 = vector.shape_cast %65 : vector<2x7x8xf32> to vector<1x2x7x8xf32>
    %cst_21 = arith.constant dense<0.000000e+00> : vector<1xf32>
    %67 = vector.multi_reduction <add>, %66, %cst_21 [1, 2, 3] : vector<1x2x7x8xf32> to vector<1xf32>
    %68 = vector.shape_cast %67 : vector<1xf32> to vector<1x1x1x1xf32>
    %69 = vector.extract %68[0, 0, 0, 0] : f32 from vector<1x1x1x1xf32>
    %70 = vector.extract_strided_slice %30 {offsets = [0, 0, 1], sizes = [2, 8, 7], strides = [1, 1, 1]} : vector<2x8x8xf32> to vector<2x8x7xf32>
    %71 = vector.extract_strided_slice %30 {offsets = [0, 0, 0], sizes = [2, 8, 7], strides = [1, 1, 1]} : vector<2x8x8xf32> to vector<2x8x7xf32>
    %72 = arith.subf %70, %71 : vector<2x8x7xf32>
    %73 = math.absf %72 : vector<2x8x7xf32>
    %74 = vector.shape_cast %73 : vector<2x8x7xf32> to vector<1x2x8x7xf32>
    %cst_22 = arith.constant dense<0.000000e+00> : vector<1xf32>
    %75 = vector.multi_reduction <add>, %74, %cst_22 [1, 2, 3] : vector<1x2x8x7xf32> to vector<1xf32>
    %76 = vector.shape_cast %75 : vector<1xf32> to vector<1x1x1x1xf32>
    %77 = vector.extract %76[0, 0, 0, 0] : f32 from vector<1x1x1x1xf32>
    %c0_23 = arith.constant 0 : index
    %c0_24 = arith.constant 0 : index
    %78 = memref.load %arg20[%c0_23, %c0_24] : memref<1x1xf32, #tpu.memory_space<smem>>
    %79 = arith.addf %69, %77 : f32
    %80 = arith.addf %78, %79 : f32
    %c0_25 = arith.constant 0 : index
    %c0_26 = arith.constant 0 : index
    %81 = memref.load %arg20[%c0_25, %c0_26] : memref<1x1xf32, #tpu.memory_space<smem>>
    memref.store %80, %arg20[%c0_25, %c0_26] : memref<1x1xf32, #tpu.memory_space<smem>>
    %c1_i32 = arith.constant 1 : i32
    %82 = arith.cmpi eq, %arg0, %c1_i32 : i32
    %83 = arith.extui %82 : i1 to i32
    %c0_i32_27 = arith.constant 0 : i32
    %84 = arith.cmpi ne, %83, %c0_i32_27 : i32
    scf.if %84 {
      %c0_28 = arith.constant 0 : index
      %c0_29 = arith.constant 0 : index
      %85 = vector.load %arg1[%c0_28, %c0_29] : memref<16x32xf32, #tpu.memory_space<vmem>>, vector<16x32xf32>
      %c0_30 = arith.constant 0 : index
      %c0_31 = arith.constant 0 : index
      %86 = vector.load %arg19[%c0_30, %c0_31] : memref<16x32xf32, #tpu.memory_space<vmem>>, vector<16x32xf32>
      %c0_32 = arith.constant 0 : index
      %c0_33 = arith.constant 0 : index
      %87 = vector.load %arg10[%c0_32, %c0_33] : memref<1x32xf32, #tpu.memory_space<vmem>>, vector<1x32xf32>
      %88 = vector.broadcast %87 : vector<1x32xf32> to vector<16x32xf32>
      %89 = arith.addf %86, %88 : vector<16x32xf32>
      %90 = arith.addf %85, %89 : vector<16x32xf32>
      %cst_34 = arith.constant dense<0.000000e+00> : vector<16xf32>
      %91 = vector.multi_reduction <add>, %90, %cst_34 [1] : vector<16x32xf32> to vector<16xf32>
      %92 = vector.shape_cast %91 : vector<16xf32> to vector<16x1xf32>
      %cst_35 = arith.constant 3.200000e+01 : f32
      %93 = vector.broadcast %cst_35 : f32 to vector<16x1xf32>
      %94 = arith.divf %92, %93 : vector<16x1xf32>
      %95 = vector.broadcast %94 : vector<16x1xf32> to vector<16x32xf32>
      %96 = arith.subf %90, %95 : vector<16x32xf32>
      %97 = arith.mulf %96, %96 : vector<16x32xf32>
      %cst_36 = arith.constant dense<0.000000e+00> : vector<16xf32>
      %98 = vector.multi_reduction <add>, %97, %cst_36 [1] : vector<16x32xf32> to vector<16xf32>
      %99 = vector.shape_cast %98 : vector<16xf32> to vector<16x1xf32>
      %cst_37 = arith.constant 3.200000e+01 : f32
      %100 = vector.broadcast %cst_37 : f32 to vector<16x1xf32>
      %101 = arith.divf %99, %100 : vector<16x1xf32>
      %102 = vector.broadcast %94 : vector<16x1xf32> to vector<16x32xf32>
      %103 = arith.subf %90, %102 : vector<16x32xf32>
      %cst_38 = arith.constant 9.99999974E-6 : f32
      %104 = vector.broadcast %cst_38 : f32 to vector<16x1xf32>
      %105 = arith.addf %101, %104 : vector<16x1xf32>
      %106 = math.rsqrt %105 : vector<16x1xf32>
      %107 = vector.broadcast %106 : vector<16x1xf32> to vector<16x32xf32>
      %108 = arith.mulf %103, %107 : vector<16x32xf32>
      %c0_39 = arith.constant 0 : index
      %c0_40 = arith.constant 0 : index
      %109 = vector.load %arg11[%c0_39, %c0_40] : memref<1x32xf32, #tpu.memory_space<vmem>>, vector<1x32xf32>
      %110 = vector.broadcast %109 : vector<1x32xf32> to vector<16x32xf32>
      %111 = arith.mulf %108, %110 : vector<16x32xf32>
      %c0_41 = arith.constant 0 : index
      %c0_42 = arith.constant 0 : index
      %112 = vector.load %arg12[%c0_41, %c0_42] : memref<1x32xf32, #tpu.memory_space<vmem>>, vector<1x32xf32>
      %113 = vector.broadcast %112 : vector<1x32xf32> to vector<16x32xf32>
      %114 = arith.addf %111, %113 : vector<16x32xf32>
      %c0_43 = arith.constant 0 : index
      %c0_44 = arith.constant 0 : index
      %115 = vector.load %arg13[%c0_43, %c0_44] : memref<32x64xf32, #tpu.memory_space<vmem>>, vector<32x64xf32>
      %cst_45 = arith.constant dense<0.000000e+00> : vector<16x64xf32>
      %116 = tpu.matmul %114, %115, %cst_45 {dimension_numbers = #tpu.dot_dimension_numbers<[1], [0], [0], [1], [0, 0, 1, 1], [], []>} : vector<16x32xf32>, vector<32x64xf32>, vector<16x64xf32> -> vector<16x64xf32>
      %c0_46 = arith.constant 0 : index
      %c0_47 = arith.constant 0 : index
      %117 = vector.load %arg14[%c0_46, %c0_47] : memref<1x64xf32, #tpu.memory_space<vmem>>, vector<1x64xf32>
      %118 = vector.broadcast %117 : vector<1x64xf32> to vector<16x64xf32>
      %119 = arith.addf %116, %118 : vector<16x64xf32>
      %cst_48 = arith.constant 0.000000e+00 : f32
      %120 = vector.broadcast %cst_48 : f32 to vector<16x64xf32>
      %121 = arith.maximumf %119, %120 : vector<16x64xf32>
      %c0_49 = arith.constant 0 : index
      %c0_50 = arith.constant 0 : index
      %122 = vector.load %arg15[%c0_49, %c0_50] : memref<64x32xf32, #tpu.memory_space<vmem>>, vector<64x32xf32>
      %cst_51 = arith.constant dense<0.000000e+00> : vector<16x32xf32>
      %123 = tpu.matmul %121, %122, %cst_51 {dimension_numbers = #tpu.dot_dimension_numbers<[1], [0], [0], [1], [0, 0, 1, 1], [], []>} : vector<16x64xf32>, vector<64x32xf32>, vector<16x32xf32> -> vector<16x32xf32>
      %c0_52 = arith.constant 0 : index
      %c0_53 = arith.constant 0 : index
      %124 = vector.load %arg16[%c0_52, %c0_53] : memref<1x32xf32, #tpu.memory_space<vmem>>, vector<1x32xf32>
      %125 = vector.broadcast %124 : vector<1x32xf32> to vector<16x32xf32>
      %126 = arith.addf %123, %125 : vector<16x32xf32>
      %127 = arith.addf %114, %126 : vector<16x32xf32>
      %cst_54 = arith.constant dense<0.000000e+00> : vector<16xf32>
      %128 = vector.multi_reduction <add>, %127, %cst_54 [1] : vector<16x32xf32> to vector<16xf32>
      %129 = vector.shape_cast %128 : vector<16xf32> to vector<16x1xf32>
      %cst_55 = arith.constant 3.200000e+01 : f32
      %130 = vector.broadcast %cst_55 : f32 to vector<16x1xf32>
      %131 = arith.divf %129, %130 : vector<16x1xf32>
      %132 = vector.broadcast %131 : vector<16x1xf32> to vector<16x32xf32>
      %133 = arith.subf %127, %132 : vector<16x32xf32>
      %134 = arith.mulf %133, %133 : vector<16x32xf32>
      %cst_56 = arith.constant dense<0.000000e+00> : vector<16xf32>
      %135 = vector.multi_reduction <add>, %134, %cst_56 [1] : vector<16x32xf32> to vector<16xf32>
      %136 = vector.shape_cast %135 : vector<16xf32> to vector<16x1xf32>
      %cst_57 = arith.constant 3.200000e+01 : f32
      %137 = vector.broadcast %cst_57 : f32 to vector<16x1xf32>
      %138 = arith.divf %136, %137 : vector<16x1xf32>
      %139 = vector.broadcast %131 : vector<16x1xf32> to vector<16x32xf32>
      %140 = arith.subf %127, %139 : vector<16x32xf32>
      %cst_58 = arith.constant 9.99999974E-6 : f32
      %141 = vector.broadcast %cst_58 : f32 to vector<16x1xf32>
      %142 = arith.addf %138, %141 : vector<16x1xf32>
      %143 = math.rsqrt %142 : vector<16x1xf32>
      %144 = vector.broadcast %143 : vector<16x1xf32> to vector<16x32xf32>
      %145 = arith.mulf %140, %144 : vector<16x32xf32>
      %c0_59 = arith.constant 0 : index
      %c0_60 = arith.constant 0 : index
      %146 = vector.load %arg17[%c0_59, %c0_60] : memref<1x32xf32, #tpu.memory_space<vmem>>, vector<1x32xf32>
      %147 = vector.broadcast %146 : vector<1x32xf32> to vector<16x32xf32>
      %148 = arith.mulf %145, %147 : vector<16x32xf32>
      %c0_61 = arith.constant 0 : index
      %c0_62 = arith.constant 0 : index
      %149 = vector.load %arg18[%c0_61, %c0_62] : memref<1x32xf32, #tpu.memory_space<vmem>>, vector<1x32xf32>
      %150 = vector.broadcast %149 : vector<1x32xf32> to vector<16x32xf32>
      %151 = arith.addf %148, %150 : vector<16x32xf32>
      %c0_63 = arith.constant 0 : index
      %c0_64 = arith.constant 0 : index
      %152 = vector.load %arg19[%c0_63, %c0_64] : memref<16x32xf32, #tpu.memory_space<vmem>>, vector<16x32xf32>
      tpu.vector_store %arg19[%c0_63, %c0_64], %151 {strides = array<i32>} : memref<16x32xf32, #tpu.memory_space<vmem>>, vector<16x32xf32>,
    } else {
    }
    return
  }
  func.func @transform_0(%arg0: i32) -> (i32, i32) {
    %c0_i32 = arith.constant 0 : i32
    %c0_i32_0 = arith.constant 0 : i32
    %c0_i32_1 = arith.constant 0 : i32
    return %c0_i32, %c0_i32_0 : i32, i32
  }
  func.func @transform_1(%arg0: i32) -> (i32, i32) {
    %c0_i32 = arith.constant 0 : i32
    %c0_i32_0 = arith.constant 0 : i32
    %c0_i32_1 = arith.constant 0 : i32
    return %c0_i32, %c0_i32_0 : i32, i32
  }
  func.func @transform_2(%arg0: i32) -> (i32, i32) {
    %c0_i32 = arith.constant 0 : i32
    %c0_i32_0 = arith.constant 0 : i32
    %c0_i32_1 = arith.constant 0 : i32
    return %c0_i32, %c0_i32_0 : i32, i32
  }
  func.func @transform_3(%arg0: i32) -> (i32, i32) {
    %c0_i32 = arith.constant 0 : i32
    %c0_i32_0 = arith.constant 0 : i32
    %c0_i32_1 = arith.constant 0 : i32
    return %c0_i32, %c0_i32_0 : i32, i32
  }
  func.func @transform_4(%arg0: i32) -> (i32, i32) {
    %c0_i32 = arith.constant 0 : i32
    %c0_i32_0 = arith.constant 0 : i32
    %c0_i32_1 = arith.constant 0 : i32
    return %c0_i32, %c0_i32_0 : i32, i32
  }
  func.func @transform_5(%arg0: i32) -> (i32, i32) {
    %c0_i32 = arith.constant 0 : i32
    %c0_i32_0 = arith.constant 0 : i32
    %c0_i32_1 = arith.constant 0 : i32
    return %c0_i32, %c0_i32_0 : i32, i32
  }
  func.func @transform_6(%arg0: i32) -> (i32, i32, i32) {
    %c0_i32 = arith.constant 0 : i32
    %c0_i32_0 = arith.constant 0 : i32
    %c0_i32_1 = arith.constant 0 : i32
    return %arg0, %c0_i32, %c0_i32_0 : i32, i32, i32
  }
  func.func @transform_7(%arg0: i32) -> (i32, i32, i32) {
    %c0_i32 = arith.constant 0 : i32
    %c0_i32_0 = arith.constant 0 : i32
    %c0_i32_1 = arith.constant 0 : i32
    %c0_i32_2 = arith.constant 0 : i32
    return %c0_i32, %c0_i32_0, %c0_i32_1 : i32, i32, i32
  }
  func.func @transform_8(%arg0: i32) -> (i32, i32, i32) {
    %c0_i32 = arith.constant 0 : i32
    %c0_i32_0 = arith.constant 0 : i32
    %c0_i32_1 = arith.constant 0 : i32
    %c0_i32_2 = arith.constant 0 : i32
    return %c0_i32, %c0_i32_0, %c0_i32_1 : i32, i32, i32
  }
  func.func @transform_9(%arg0: i32) -> (i32, i32) {
    %c0_i32 = arith.constant 0 : i32
    %c0_i32_0 = arith.constant 0 : i32
    %c0_i32_1 = arith.constant 0 : i32
    return %c0_i32, %c0_i32_0 : i32, i32
  }
  func.func @transform_10(%arg0: i32) -> (i32, i32) {
    %c0_i32 = arith.constant 0 : i32
    %c0_i32_0 = arith.constant 0 : i32
    %c0_i32_1 = arith.constant 0 : i32
    return %c0_i32, %c0_i32_0 : i32, i32
  }
  func.func @transform_11(%arg0: i32) -> (i32, i32) {
    %c0_i32 = arith.constant 0 : i32
    %c0_i32_0 = arith.constant 0 : i32
    %c0_i32_1 = arith.constant 0 : i32
    return %c0_i32, %c0_i32_0 : i32, i32
  }
  func.func @transform_12(%arg0: i32) -> (i32, i32) {
    %c0_i32 = arith.constant 0 : i32
    %c0_i32_0 = arith.constant 0 : i32
    %c0_i32_1 = arith.constant 0 : i32
    return %c0_i32, %c0_i32_0 : i32, i32
  }
  func.func @transform_13(%arg0: i32) -> (i32, i32) {
    %c0_i32 = arith.constant 0 : i32
    %c0_i32_0 = arith.constant 0 : i32
    %c0_i32_1 = arith.constant 0 : i32
    return %c0_i32, %c0_i32_0 : i32, i32
  }
  func.func @transform_14(%arg0: i32) -> (i32, i32) {
    %c0_i32 = arith.constant 0 : i32
    %c0_i32_0 = arith.constant 0 : i32
    %c0_i32_1 = arith.constant 0 : i32
    return %c0_i32, %c0_i32_0 : i32, i32
  }
  func.func @transform_15(%arg0: i32) -> (i32, i32) {
    %c0_i32 = arith.constant 0 : i32
    %c0_i32_0 = arith.constant 0 : i32
    %c0_i32_1 = arith.constant 0 : i32
    return %c0_i32, %c0_i32_0 : i32, i32
  }
  func.func @transform_16(%arg0: i32) -> (i32, i32) {
    %c0_i32 = arith.constant 0 : i32
    %c0_i32_0 = arith.constant 0 : i32
    %c0_i32_1 = arith.constant 0 : i32
    return %c0_i32, %c0_i32_0 : i32, i32
  }
  func.func @transform_17(%arg0: i32) -> (i32, i32) {
    %c0_i32 = arith.constant 0 : i32
    %c0_i32_0 = arith.constant 0 : i32
    %c0_i32_1 = arith.constant 0 : i32
    return %c0_i32, %c0_i32_0 : i32, i32
  }
  func.func @transform_18(%arg0: i32) -> (i32, i32) {
    %c0_i32 = arith.constant 0 : i32
    %c0_i32_0 = arith.constant 0 : i32
    %c0_i32_1 = arith.constant 0 : i32
    return %c0_i32, %c0_i32_0 : i32, i32
  }
  func.func @transform_19(%arg0: i32) -> (i32, i32) {
    %c0_i32 = arith.constant 0 : i32
    %c0_i32_0 = arith.constant 0 : i32
    %c0_i32_1 = arith.constant 0 : i32
    return %c0_i32, %c0_i32_0 : i32, i32
  }
}

</mosaic_0001>

<llo_original>
// kernel: tpu_custom_call.1
$region0: #{tpu_custom_call.1}
  #allocation0 [shape = 'u32[]', space=smem, size = 0x4, offset = 0x4, fixed_abs, tag = 'smem constant byte address 0x4 - core index']
  #allocation1 [shape = 'u32[144,128]{1,0:T(1,128)}', space=vmem, size = 0x12000, scoped, tag = 'internal scratch']
  #allocation2 [shape = 'f32[2,16,48]{2,1,0:T(8,128)}', space=vmem, size = 0x4000, scoped, tag = 'scratch operand']
  #allocation3 [shape = 'f32[2,2,1024]{2,1,0:T(2,128)}', space=vmem, size = 0x4000, scoped, tag = 'scratch operand']
  %s0 = inlined_call_operand.vmem [shape: f32[16,32], index: 0, kind: input, shape index: {}]
  %s1 = inlined_call_operand.vmem [shape: f32[2,8], index: 1, kind: input, shape index: {}]
  %s2 = inlined_call_operand.vmem [shape: f32[32,96], index: 2, kind: input, shape index: {}]
  %s3 = inlined_call_operand.vmem [shape: f32[1,96], index: 3, kind: input, shape index: {}]
  %s4 = inlined_call_operand.vmem [shape: f32[8,2048], index: 4, kind: input, shape index: {}]
  %s5 = inlined_call_operand.vmem [shape: f32[1,2048], index: 5, kind: input, shape index: {}]
  %s6 = inlined_call_operand.vmem [shape: f32[2,1024,64], index: 6, kind: input, shape index: {}]
  %s7 = inlined_call_operand.vmem [shape: f32[2,1,64], index: 7, kind: input, shape index: {}]
  %s8 = inlined_call_operand.vmem [shape: f32[2,16,32], index: 8, kind: input, shape index: {}]
  %s9 = inlined_call_operand.vmem [shape: f32[1,32], index: 9, kind: input, shape index: {}]
  %s10 = inlined_call_operand.vmem [shape: f32[1,32], index: 10, kind: input, shape index: {}]
  %s11 = inlined_call_operand.vmem [shape: f32[1,32], index: 11, kind: input, shape index: {}]
  %s12 = inlined_call_operand.vmem [shape: f32[32,64], index: 12, kind: input, shape index: {}]
  %s13 = inlined_call_operand.vmem [shape: f32[1,64], index: 13, kind: input, shape index: {}]
  %s14 = inlined_call_operand.vmem [shape: f32[64,32], index: 14, kind: input, shape index: {}]
  %s15 = inlined_call_operand.vmem [shape: f32[1,32], index: 15, kind: input, shape index: {}]
  %s16 = inlined_call_operand.vmem [shape: f32[1,32], index: 16, kind: input, shape index: {}]
  %s17 = inlined_call_operand.vmem [shape: f32[1,32], index: 17, kind: input, shape index: {}]
  %s18 = inlined_call_operand.hbm [shape: f32[16,32], index: 18, kind: output, shape index: {0}]
  %s19 = inlined_call_operand.hbm [shape: f32[1,1], index: 19, kind: output, shape index: {1}]
  %20 = xla_tuple %s18, %s19
  %s21 = sld [smem:[#allocation0]]
  $region121: #{tpu_custom_call.1} parent=0
    _
  %s23 = ssub.s32 1, %s21
  %s24 = scalar_select 0, %s23, %s21
  $region1: #{tpu_custom_call.1} parent=0
    #allocation4 [shape = 'u8[8192]{0}', space=vmem, size = 0x2000, scoped, tag = 'output window, operand 0, single buffered']
    #allocation5 [shape = 's32[2]{0}', space=sflag, size = 0x8, scoped, tag = 'scoped memory for tpu_custom_call.1']
    #allocation6 [shape = 's32[2]{0}', space=sflag, size = 0x8, scoped, tag = 'scoped memory for tpu_custom_call.1']
    #allocation7 [shape = 'u8[512]{0}', space=smem, size = 0x200, scoped, tag = 'output window, operand 1, single buffered']
    %25 = vsyncpa [#allocation5], 0
    %26 = vsyncpa [#allocation6], 0
    loop: start=0, step=1, limit=4
    $region2: #{tpu_custom_call.1} parent=1 // loop_pre_header
      _
    $region3: #{tpu_custom_call.1} parent=1 // loop_header
      %s28 = sphi 0, %s32
      %p29 = scmp.ge.s32.totalorder %s28, 4
      %s36 = sphi 0, %s36
      %s38 = sphi 0, %s36
      %s39 = sphi 0, %s38
      %s53 = sphi 0, %s39
      %s57 = sphi 0, %s57
      %s59 = sphi 0, %s57
      %s60 = sphi 0, %s59
      %s74 = sphi 0, %s60
      %s78 = sphi 0, %s78
      %s80 = sphi 0, %s78
      %s81 = sphi 0, %s80
      %s95 = sphi 0, %s81
      %s99 = sphi 0, %s99
      %s101 = sphi 0, %s99
      %s102 = sphi 0, %s101
      %s116 = sphi 0, %s102
      %s120 = sphi 0, %s120
      %s122 = sphi 0, %s120
      %s123 = sphi 0, %s122
      %s137 = sphi 0, %s123
      %s141 = sphi 0, %s141
      %s143 = sphi 0, %s141
      %s144 = sphi 0, %s143
      %s158 = sphi 0, %s144
      %s164 = sphi 0, %s166
      %s167 = sphi 0, %s164
      %s168 = sphi 0, %s167
      %s184 = sphi 0, %s168
      %s188 = sphi 0, %s188
      %s190 = sphi 0, %s188
      %s191 = sphi 0, %s190
      %s205 = sphi 0, %s191
      %s209 = sphi 0, %s209
      %s211 = sphi 0, %s209
      %s212 = sphi 0, %s211
      %s226 = sphi 0, %s212
      %s230 = sphi 0, %s230
      %s232 = sphi 0, %s230
      %s233 = sphi 0, %s232
      %s247 = sphi 0, %s233
      %s251 = sphi 0, %s251
      %s253 = sphi 0, %s251
      %s254 = sphi 0, %s253
      %s268 = sphi 0, %s254
      %s272 = sphi 0, %s272
      %s274 = sphi 0, %s272
      %s275 = sphi 0, %s274
      %s289 = sphi 0, %s275
      %s293 = sphi 0, %s293
      %s295 = sphi 0, %s293
      %s296 = sphi 0, %s295
      %s310 = sphi 0, %s296
      %s314 = sphi 0, %s314
      %s316 = sphi 0, %s314
      %s317 = sphi 0, %s316
      %s331 = sphi 0, %s317
      %s335 = sphi 0, %s335
      %s337 = sphi 0, %s335
      %s338 = sphi 0, %s337
      %s352 = sphi 0, %s338
      %s356 = sphi 0, %s356
      %s358 = sphi 0, %s356
      %s359 = sphi 0, %s358
      %s373 = sphi 0, %s359
      %s377 = sphi 0, %s377
      %s379 = sphi 0, %s377
      %s380 = sphi 0, %s379
      %s394 = sphi 0, %s380
      %s398 = sphi 0, %s398
      %s400 = sphi 0, %s398
      %s401 = sphi 0, %s400
      %s415 = sphi 0, %s401
      %s419 = sphi 0, %s419
      %s421 = sphi 0, %s419
      %s422 = sphi 0, %s421
      %s436 = sphi 0, %s422
      %s440 = sphi 0, %s440
      %s442 = sphi 0, %s440
      %s443 = sphi 0, %s442
      %s457 = sphi 0, %s443
    $region4: #{tpu_custom_call.1} parent=1 // loop_header_branch
      %31 = sbr.rel (%p29) target = $region8
    $region5: #{tpu_custom_call.1} parent=1 // loop_body
      %s33 = ssub.s32 %s28, 1
      %s34 = ssub.s32 %s28, 2
      %s35 = sadd.s32 %s28, 1
      %s37 = sadd.s32 %s36, 1
      %p40 = scmp.eq.s32.totalorder %s28, 1
      %p41 = scmp.ne.s32.totalorder %s36, %s38
      %p42 = scmp.eq.s32.totalorder %s28, 0
      %p43 = por %p41, %p42
      %p44 = scmp.ne.s32.totalorder %s36, %s38
      %p45 = scmp.eq.s32.totalorder %s33, 1
      %p46 = por %p44, %p45
      %p47 = scmp.ne.s32.totalorder %s38, %s39
      %p48 = scmp.eq.s32.totalorder %s33, 0
      %p49 = por %p47, %p48
      %p50 = scmp.ne.s32.totalorder %s38, %s39
      %p51 = scmp.eq.s32.totalorder %s34, 1
      %p52 = por %p50, %p51
      %p54 = scmp.ne.s32.totalorder %s39, %s53
      %p55 = scmp.eq.s32.totalorder %s34, 0
      %p56 = por %p54, %p55
      %s58 = sadd.s32 %s57, 1
      %p61 = scmp.eq.s32.totalorder %s28, 1
      %p62 = scmp.ne.s32.totalorder %s57, %s59
      %p63 = scmp.eq.s32.totalorder %s28, 0
      %p64 = por %p62, %p63
      %p65 = scmp.ne.s32.totalorder %s57, %s59
      %p66 = scmp.eq.s32.totalorder %s33, 1
      %p67 = por %p65, %p66
      %p68 = scmp.ne.s32.totalorder %s59, %s60
      %p69 = scmp.eq.s32.totalorder %s33, 0
      %p70 = por %p68, %p69
      %p71 = scmp.ne.s32.totalorder %s59, %s60
      %p72 = scmp.eq.s32.totalorder %s34, 1
      %p73 = por %p71, %p72
      %p75 = scmp.ne.s32.totalorder %s60, %s74
      %p76 = scmp.eq.s32.totalorder %s34, 0
      %p77 = por %p75, %p76
      %s79 = sadd.s32 %s78, 1
      %p82 = scmp.eq.s32.totalorder %s28, 1
      %p83 = scmp.ne.s32.totalorder %s78, %s80
      %p84 = scmp.eq.s32.totalorder %s28, 0
      %p85 = por %p83, %p84
      %p86 = scmp.ne.s32.totalorder %s78, %s80
      %p87 = scmp.eq.s32.totalorder %s33, 1
      %p88 = por %p86, %p87
      %p89 = scmp.ne.s32.totalorder %s80, %s81
      %p90 = scmp.eq.s32.totalorder %s33, 0
      %p91 = por %p89, %p90
      %p92 = scmp.ne.s32.totalorder %s80, %s81
      %p93 = scmp.eq.s32.totalorder %s34, 1
      %p94 = por %p92, %p93
      %p96 = scmp.ne.s32.totalorder %s81, %s95
      %p97 = scmp.eq.s32.totalorder %s34, 0
      %p98 = por %p96, %p97
      %s100 = sadd.s32 %s99, 1
      %p103 = scmp.eq.s32.totalorder %s28, 1
      %p104 = scmp.ne.s32.totalorder %s99, %s101
      %p105 = scmp.eq.s32.totalorder %s28, 0
      %p106 = por %p104, %p105
      %p107 = scmp.ne.s32.totalorder %s99, %s101
      %p108 = scmp.eq.s32.totalorder %s33, 1
      %p109 = por %p107, %p108
      %p110 = scmp.ne.s32.totalorder %s101, %s102
      %p111 = scmp.eq.s32.totalorder %s33, 0
      %p112 = por %p110, %p111
      %p113 = scmp.ne.s32.totalorder %s101, %s102
      %p114 = scmp.eq.s32.totalorder %s34, 1
      %p115 = por %p113, %p114
      %p117 = scmp.ne.s32.totalorder %s102, %s116
      %p118 = scmp.eq.s32.totalorder %s34, 0
      %p119 = por %p117, %p118
      %s121 = sadd.s32 %s120, 1
      %p124 = scmp.eq.s32.totalorder %s28, 1
      %p125 = scmp.ne.s32.totalorder %s120, %s122
      %p126 = scmp.eq.s32.totalorder %s28, 0
      %p127 = por %p125, %p126
      %p128 = scmp.ne.s32.totalorder %s120, %s122
      %p129 = scmp.eq.s32.totalorder %s33, 1
      %p130 = por %p128, %p129
      %p131 = scmp.ne.s32.totalorder %s122, %s123
      %p132 = scmp.eq.s32.totalorder %s33, 0
      %p133 = por %p131, %p132
      %p134 = scmp.ne.s32.totalorder %s122, %s123
      %p135 = scmp.eq.s32.totalorder %s34, 1
      %p136 = por %p134, %p135
      %p138 = scmp.ne.s32.totalorder %s123, %s137
      %p139 = scmp.eq.s32.totalorder %s34, 0
      %p140 = por %p138, %p139
      %s142 = sadd.s32 %s141, 1
      %p145 = scmp.eq.s32.totalorder %s28, 1
      %p146 = scmp.ne.s32.totalorder %s141, %s143
      %p147 = scmp.eq.s32.totalorder %s28, 0
      %p148 = por %p146, %p147
      %p149 = scmp.ne.s32.totalorder %s141, %s143
      %p150 = scmp.eq.s32.totalorder %s33, 1
      %p151 = por %p149, %p150
      %p152 = scmp.ne.s32.totalorder %s143, %s144
      %p153 = scmp.eq.s32.totalorder %s33, 0
      %p154 = por %p152, %p153
      %p155 = scmp.ne.s32.totalorder %s143, %s144
      %p156 = scmp.eq.s32.totalorder %s34, 1
      %p157 = por %p155, %p156
      %p159 = scmp.ne.s32.totalorder %s144, %s158
      %p160 = scmp.eq.s32.totalorder %s34, 0
      %p161 = por %p159, %p160
      %s162 = ssub.s32 %s28, %s35
      %p163 = scmp.eq.s32.totalorder %s162, 0
      %s165 = sadd.s32 %s164, 1
      %s166 = scalar_select %p163, %s164, %s165
      %p169 = pneg %p163
      %p170 = scmp.eq.s32.totalorder %s28, 1
      %p171 = por %p169, %p170
      %p172 = scmp.ne.s32.totalorder %s164, %s167
      %p173 = scmp.eq.s32.totalorder %s28, 0
      %p174 = por %p172, %p173
      %p175 = scmp.ne.s32.totalorder %s164, %s167
      %p176 = scmp.eq.s32.totalorder %s33, 1
      %p177 = por %p175, %p176
      %p178 = scmp.ne.s32.totalorder %s167, %s168
      %p179 = scmp.eq.s32.totalorder %s33, 0
      %p180 = por %p178, %p179
      %p181 = scmp.ne.s32.totalorder %s167, %s168
      %p182 = scmp.eq.s32.totalorder %s34, 1
      %p183 = por %p181, %p182
      %p185 = scmp.ne.s32.totalorder %s168, %s184
      %p186 = scmp.eq.s32.totalorder %s34, 0
      %p187 = por %p185, %p186
      %s189 = sadd.s32 %s188, 1
      %p192 = scmp.eq.s32.totalorder %s28, 1
      %p193 = scmp.ne.s32.totalorder %s188, %s190
      %p194 = scmp.eq.s32.totalorder %s28, 0
      %p195 = por %p193, %p194
      %p196 = scmp.ne.s32.totalorder %s188, %s190
      %p197 = scmp.eq.s32.totalorder %s33, 1
      %p198 = por %p196, %p197
      %p199 = scmp.ne.s32.totalorder %s190, %s191
      %p200 = scmp.eq.s32.totalorder %s33, 0
      %p201 = por %p199, %p200
      %p202 = scmp.ne.s32.totalorder %s190, %s191
      %p203 = scmp.eq.s32.totalorder %s34, 1
      %p204 = por %p202, %p203
      %p206 = scmp.ne.s32.totalorder %s191, %s205
      %p207 = scmp.eq.s32.totalorder %s34, 0
      %p208 = por %p206, %p207
      %s210 = sadd.s32 %s209, 1
      %p213 = scmp.eq.s32.totalorder %s28, 1
      %p214 = scmp.ne.s32.totalorder %s209, %s211
      %p215 = scmp.eq.s32.totalorder %s28, 0
      %p216 = por %p214, %p215
      %p217 = scmp.ne.s32.totalorder %s209, %s211
      %p218 = scmp.eq.s32.totalorder %s33, 1
      %p219 = por %p217, %p218
      %p220 = scmp.ne.s32.totalorder %s211, %s212
      %p221 = scmp.eq.s32.totalorder %s33, 0
      %p222 = por %p220, %p221
      %p223 = scmp.ne.s32.totalorder %s211, %s212
      %p224 = scmp.eq.s32.totalorder %s34, 1
      %p225 = por %p223, %p224
      %p227 = scmp.ne.s32.totalorder %s212, %s226
      %p228 = scmp.eq.s32.totalorder %s34, 0
      %p229 = por %p227, %p228
      %s231 = sadd.s32 %s230, 1
      %p234 = scmp.eq.s32.totalorder %s28, 1
      %p235 = scmp.ne.s32.totalorder %s230, %s232
      %p236 = scmp.eq.s32.totalorder %s28, 0
      %p237 = por %p235, %p236
      %p238 = scmp.ne.s32.totalorder %s230, %s232
      %p239 = scmp.eq.s32.totalorder %s33, 1
      %p240 = por %p238, %p239
      %p241 = scmp.ne.s32.totalorder %s232, %s233
      %p242 = scmp.eq.s32.totalorder %s33, 0
      %p243 = por %p241, %p242
      %p244 = scmp.ne.s32.totalorder %s232, %s233
      %p245 = scmp.eq.s32.totalorder %s34, 1
      %p246 = por %p244, %p245
      %p248 = scmp.ne.s32.totalorder %s233, %s247
      %p249 = scmp.eq.s32.totalorder %s34, 0
      %p250 = por %p248, %p249
      %s252 = sadd.s32 %s251, 1
      %p255 = scmp.eq.s32.totalorder %s28, 1
      %p256 = scmp.ne.s32.totalorder %s251, %s253
      %p257 = scmp.eq.s32.totalorder %s28, 0
      %p258 = por %p256, %p257
      %p259 = scmp.ne.s32.totalorder %s251, %s253
      %p260 = scmp.eq.s32.totalorder %s33, 1
      %p261 = por %p259, %p260
      %p262 = scmp.ne.s32.totalorder %s253, %s254
      %p263 = scmp.eq.s32.totalorder %s33, 0
      %p264 = por %p262, %p263
      %p265 = scmp.ne.s32.totalorder %s253, %s254
      %p266 = scmp.eq.s32.totalorder %s34, 1
      %p267 = por %p265, %p266
      %p269 = scmp.ne.s32.totalorder %s254, %s268
      %p270 = scmp.eq.s32.totalorder %s34, 0
      %p271 = por %p269, %p270
      %s273 = sadd.s32 %s272, 1
      %p276 = scmp.eq.s32.totalorder %s28, 1
      %p277 = scmp.ne.s32.totalorder %s272, %s274
      %p278 = scmp.eq.s32.totalorder %s28, 0
      %p279 = por %p277, %p278
      %p280 = scmp.ne.s32.totalorder %s272, %s274
      %p281 = scmp.eq.s32.totalorder %s33, 1
      %p282 = por %p280, %p281
      %p283 = scmp.ne.s32.totalorder %s274, %s275
      %p284 = scmp.eq.s32.totalorder %s33, 0
      %p285 = por %p283, %p284
      %p286 = scmp.ne.s32.totalorder %s274, %s275
      %p287 = scmp.eq.s32.totalorder %s34, 1
      %p288 = por %p286, %p287
      %p290 = scmp.ne.s32.totalorder %s275, %s289
      %p291 = scmp.eq.s32.totalorder %s34, 0
      %p292 = por %p290, %p291
      %s294 = sadd.s32 %s293, 1
      %p297 = scmp.eq.s32.totalorder %s28, 1
      %p298 = scmp.ne.s32.totalorder %s293, %s295
      %p299 = scmp.eq.s32.totalorder %s28, 0
      %p300 = por %p298, %p299
      %p301 = scmp.ne.s32.totalorder %s293, %s295
      %p302 = scmp.eq.s32.totalorder %s33, 1
      %p303 = por %p301, %p302
      %p304 = scmp.ne.s32.totalorder %s295, %s296
      %p305 = scmp.eq.s32.totalorder %s33, 0
      %p306 = por %p304, %p305
      %p307 = scmp.ne.s32.totalorder %s295, %s296
      %p308 = scmp.eq.s32.totalorder %s34, 1
      %p309 = por %p307, %p308
      %p311 = scmp.ne.s32.totalorder %s296, %s310
      %p312 = scmp.eq.s32.totalorder %s34, 0
      %p313 = por %p311, %p312
      %s315 = sadd.s32 %s314, 1
      %p318 = scmp.eq.s32.totalorder %s28, 1
      %p319 = scmp.ne.s32.totalorder %s314, %s316
      %p320 = scmp.eq.s32.totalorder %s28, 0
      %p321 = por %p319, %p320
      %p322 = scmp.ne.s32.totalorder %s314, %s316
      %p323 = scmp.eq.s32.totalorder %s33, 1
      %p324 = por %p322, %p323
      %p325 = scmp.ne.s32.totalorder %s316, %s317
      %p326 = scmp.eq.s32.totalorder %s33, 0
      %p327 = por %p325, %p326
      %p328 = scmp.ne.s32.totalorder %s316, %s317
      %p329 = scmp.eq.s32.totalorder %s34, 1
      %p330 = por %p328, %p329
      %p332 = scmp.ne.s32.totalorder %s317, %s331
      %p333 = scmp.eq.s32.totalorder %s34, 0
      %p334 = por %p332, %p333
      %s336 = sadd.s32 %s335, 1
      %p339 = scmp.eq.s32.totalorder %s28, 1
      %p340 = scmp.ne.s32.totalorder %s335, %s337
      %p341 = scmp.eq.s32.totalorder %s28, 0
      %p342 = por %p340, %p341
      %p343 = scmp.ne.s32.totalorder %s335, %s337
      %p344 = scmp.eq.s32.totalorder %s33, 1
      %p345 = por %p343, %p344
      %p346 = scmp.ne.s32.totalorder %s337, %s338
      %p347 = scmp.eq.s32.totalorder %s33, 0
      %p348 = por %p346, %p347
      %p349 = scmp.ne.s32.totalorder %s337, %s338
      %p350 = scmp.eq.s32.totalorder %s34, 1
      %p351 = por %p349, %p350
      %p353 = scmp.ne.s32.totalorder %s338, %s352
      %p354 = scmp.eq.s32.totalorder %s34, 0
      %p355 = por %p353, %p354
      %s357 = sadd.s32 %s356, 1
      %p360 = scmp.eq.s32.totalorder %s28, 1
      %p361 = scmp.ne.s32.totalorder %s356, %s358
      %p362 = scmp.eq.s32.totalorder %s28, 0
      %p363 = por %p361, %p362
      %p364 = scmp.ne.s32.totalorder %s356, %s358
      %p365 = scmp.eq.s32.totalorder %s33, 1
      %p366 = por %p364, %p365
      %p367 = scmp.ne.s32.totalorder %s358, %s359
      %p368 = scmp.eq.s32.totalorder %s33, 0
      %p369 = por %p367, %p368
      %p370 = scmp.ne.s32.totalorder %s358, %s359
      %p371 = scmp.eq.s32.totalorder %s34, 1
      %p372 = por %p370, %p371
      %p374 = scmp.ne.s32.totalorder %s359, %s373
      %p375 = scmp.eq.s32.totalorder %s34, 0
      %p376 = por %p374, %p375
      %s378 = sadd.s32 %s377, 1
      %p381 = scmp.eq.s32.totalorder %s28, 1
      %p382 = scmp.ne.s32.totalorder %s377, %s379
      %p383 = scmp.eq.s32.totalorder %s28, 0
      %p384 = por %p382, %p383
      %p385 = scmp.ne.s32.totalorder %s377, %s379
      %p386 = scmp.eq.s32.totalorder %s33, 1
      %p387 = por %p385, %p386
      %p388 = scmp.ne.s32.totalorder %s379, %s380
      %p389 = scmp.eq.s32.totalorder %s33, 0
      %p390 = por %p388, %p389
      %p391 = scmp.ne.s32.totalorder %s379, %s380
      %p392 = scmp.eq.s32.totalorder %s34, 1
      %p393 = por %p391, %p392
      %p395 = scmp.ne.s32.totalorder %s380, %s394
      %p396 = scmp.eq.s32.totalorder %s34, 0
      %p397 = por %p395, %p396
      %s399 = sadd.s32 %s398, 1
      %p402 = scmp.eq.s32.totalorder %s28, 1
      %p403 = scmp.ne.s32.totalorder %s398, %s400
      %p404 = scmp.eq.s32.totalorder %s28, 0
      %p405 = por %p403, %p404
      %p406 = scmp.ne.s32.totalorder %s398, %s400
      %p407 = scmp.eq.s32.totalorder %s33, 1
      %p408 = por %p406, %p407
      %p409 = scmp.ne.s32.totalorder %s400, %s401
      %p410 = scmp.eq.s32.totalorder %s33, 0
      %p411 = por %p409, %p410
      %p412 = scmp.ne.s32.totalorder %s400, %s401
      %p413 = scmp.eq.s32.totalorder %s34, 1
      %p414 = por %p412, %p413
      %p416 = scmp.ne.s32.totalorder %s401, %s415
      %p417 = scmp.eq.s32.totalorder %s34, 0
      %p418 = por %p416, %p417
      %s420 = sadd.s32 %s419, 1
      %p423 = scmp.eq.s32.totalorder %s28, 1
      %p424 = scmp.ne.s32.totalorder %s419, %s421
      %p425 = scmp.eq.s32.totalorder %s28, 0
      %p426 = por %p424, %p425
      %p427 = scmp.ne.s32.totalorder %s419, %s421
      %p428 = scmp.eq.s32.totalorder %s33, 1
      %p429 = por %p427, %p428
      %p430 = scmp.ne.s32.totalorder %s421, %s422
      %p431 = scmp.eq.s32.totalorder %s33, 0
      %p432 = por %p430, %p431
      %p433 = scmp.ne.s32.totalorder %s421, %s422
      %p434 = scmp.eq.s32.totalorder %s34, 1
      %p435 = por %p433, %p434
      %p437 = scmp.ne.s32.totalorder %s422, %s436
      %p438 = scmp.eq.s32.totalorder %s34, 0
      %p439 = por %p437, %p438
      %s441 = sadd.s32 %s440, 1
      %p444 = scmp.eq.s32.totalorder %s28, 1
      %p445 = scmp.ne.s32.totalorder %s440, %s442
      %p446 = scmp.eq.s32.totalorder %s28, 0
      %p447 = por %p445, %p446
      %p448 = scmp.ne.s32.totalorder %s440, %s442
      %p449 = scmp.eq.s32.totalorder %s33, 1
      %p450 = por %p448, %p449
      %p451 = scmp.ne.s32.totalorder %s442, %s443
      %p452 = scmp.eq.s32.totalorder %s33, 0
      %p453 = por %p451, %p452
      %p454 = scmp.ne.s32.totalorder %s442, %s443
      %p455 = scmp.eq.s32.totalorder %s34, 1
      %p456 = por %p454, %p455
      %p458 = scmp.ne.s32.totalorder %s443, %s457
      %p459 = scmp.eq.s32.totalorder %s34, 0
      %p460 = por %p458, %p459
      %p461 = scmp.le.s32.totalorder 1, %s28
      %p462 = scmp.lt.s32.totalorder %s28, 3
      %p463 = pnand %p461, %p462
      %p464 = pneg %p463
      // Predicated region
      $region9: #{tpu_custom_call.1} parent=5 // pred_check
        _
      $region10: #{tpu_custom_call.1} parent=5 // pred_check_branch
        %466 = sbr.rel (%p463) target = $region12
      $region11: #{tpu_custom_call.1} parent=5 // pred_region
        %s467 = ssub.s32 %s28, 1
        // Predicated region
        $region13: #{tpu_custom_call.1} parent=11 // pred_check
          %p468 = pneg %p49
        $region14: #{tpu_custom_call.1} parent=11 // pred_check_branch
          %470 = sbr.rel (%p468) target = $region16
        $region15: #{tpu_custom_call.1} parent=11 // pred_region
          _
        $region16: #{tpu_custom_call.1} parent=11 // pred_fallthru
          _
        // Predicated region
        $region17: #{tpu_custom_call.1} parent=11 // pred_check
          %p471 = pneg %p70
        $region18: #{tpu_custom_call.1} parent=11 // pred_check_branch
          %473 = sbr.rel (%p471) target = $region20
        $region19: #{tpu_custom_call.1} parent=11 // pred_region
          _
        $region20: #{tpu_custom_call.1} parent=11 // pred_fallthru
          _
        // Predicated region
        $region21: #{tpu_custom_call.1} parent=11 // pred_check
          %p474 = pneg %p91
        $region22: #{tpu_custom_call.1} parent=11 // pred_check_branch
          %476 = sbr.rel (%p474) target = $region24
        $region23: #{tpu_custom_call.1} parent=11 // pred_region
          _
        $region24: #{tpu_custom_call.1} parent=11 // pred_fallthru
          _
        // Predicated region
        $region25: #{tpu_custom_call.1} parent=11 // pred_check
          %p477 = pneg %p112
        $region26: #{tpu_custom_call.1} parent=11 // pred_check_branch
          %479 = sbr.rel (%p477) target = $region28
        $region27: #{tpu_custom_call.1} parent=11 // pred_region
          _
        $region28: #{tpu_custom_call.1} parent=11 // pred_fallthru
          _
        // Predicated region
        $region29: #{tpu_custom_call.1} parent=11 // pred_check
          %p480 = pneg %p133
        $region30: #{tpu_custom_call.1} parent=11 // pred_check_branch
          %482 = sbr.rel (%p480) target = $region32
        $region31: #{tpu_custom_call.1} parent=11 // pred_region
          _
        $region32: #{tpu_custom_call.1} parent=11 // pred_fallthru
          _
        // Predicated region
        $region33: #{tpu_custom_call.1} parent=11 // pred_check
          %p483 = pneg %p154
        $region34: #{tpu_custom_call.1} parent=11 // pred_check_branch
          %485 = sbr.rel (%p483) target = $region36
        $region35: #{tpu_custom_call.1} parent=11 // pred_region
          _
        $region36: #{tpu_custom_call.1} parent=11 // pred_fallthru
          _
        // Predicated region
        $region37: #{tpu_custom_call.1} parent=11 // pred_check
          %p486 = pneg %p201
        $region38: #{tpu_custom_call.1} parent=11 // pred_check_branch
          %488 = sbr.rel (%p486) target = $region40
        $region39: #{tpu_custom_call.1} parent=11 // pred_region
          _
        $region40: #{tpu_custom_call.1} parent=11 // pred_fallthru
          _
        // Predicated region
        $region41: #{tpu_custom_call.1} parent=11 // pred_check
          %p489 = pneg %p222
        $region42: #{tpu_custom_call.1} parent=11 // pred_check_branch
          %491 = sbr.rel (%p489) target = $region44
        $region43: #{tpu_custom_call.1} parent=11 // pred_region
          _
        $region44: #{tpu_custom_call.1} parent=11 // pred_fallthru
          _
        // Predicated region
        $region45: #{tpu_custom_call.1} parent=11 // pred_check
          %p492 = pneg %p243
        $region46: #{tpu_custom_call.1} parent=11 // pred_check_branch
          %494 = sbr.rel (%p492) target = $region48
        $region47: #{tpu_custom_call.1} parent=11 // pred_region
          _
        $region48: #{tpu_custom_call.1} parent=11 // pred_fallthru
          _
        // Predicated region
        $region49: #{tpu_custom_call.1} parent=11 // pred_check
          %p495 = pneg %p264
        $region50: #{tpu_custom_call.1} parent=11 // pred_check_branch
          %497 = sbr.rel (%p495) target = $region52
        $region51: #{tpu_custom_call.1} parent=11 // pred_region
          _
        $region52: #{tpu_custom_call.1} parent=11 // pred_fallthru
          _
        // Predicated region
        $region53: #{tpu_custom_call.1} parent=11 // pred_check
          %p498 = pneg %p285
        $region54: #{tpu_custom_call.1} parent=11 // pred_check_branch
          %500 = sbr.rel (%p498) target = $region56
        $region55: #{tpu_custom_call.1} parent=11 // pred_region
          _
        $region56: #{tpu_custom_call.1} parent=11 // pred_fallthru
          _
        // Predicated region
        $region57: #{tpu_custom_call.1} parent=11 // pred_check
          %p501 = pneg %p306
        $region58: #{tpu_custom_call.1} parent=11 // pred_check_branch
          %503 = sbr.rel (%p501) target = $region60
        $region59: #{tpu_custom_call.1} parent=11 // pred_region
          _
        $region60: #{tpu_custom_call.1} parent=11 // pred_fallthru
          _
        // Predicated region
        $region61: #{tpu_custom_call.1} parent=11 // pred_check
          %p504 = pneg %p327
        $region62: #{tpu_custom_call.1} parent=11 // pred_check_branch
          %506 = sbr.rel (%p504) target = $region64
        $region63: #{tpu_custom_call.1} parent=11 // pred_region
          _
        $region64: #{tpu_custom_call.1} parent=11 // pred_fallthru
          _
        // Predicated region
        $region65: #{tpu_custom_call.1} parent=11 // pred_check
          %p507 = pneg %p348
        $region66: #{tpu_custom_call.1} parent=11 // pred_check_branch
          %509 = sbr.rel (%p507) target = $region68
        $region67: #{tpu_custom_call.1} parent=11 // pred_region
          _
        $region68: #{tpu_custom_call.1} parent=11 // pred_fallthru
          _
        // Predicated region
        $region69: #{tpu_custom_call.1} parent=11 // pred_check
          %p510 = pneg %p369
        $region70: #{tpu_custom_call.1} parent=11 // pred_check_branch
          %512 = sbr.rel (%p510) target = $region72
        $region71: #{tpu_custom_call.1} parent=11 // pred_region
          _
        $region72: #{tpu_custom_call.1} parent=11 // pred_fallthru
          _
        // Predicated region
        $region73: #{tpu_custom_call.1} parent=11 // pred_check
          %p513 = pneg %p390
        $region74: #{tpu_custom_call.1} parent=11 // pred_check_branch
          %515 = sbr.rel (%p513) target = $region76
        $region75: #{tpu_custom_call.1} parent=11 // pred_region
          _
        $region76: #{tpu_custom_call.1} parent=11 // pred_fallthru
          _
        // Predicated region
        $region77: #{tpu_custom_call.1} parent=11 // pred_check
          %p516 = pneg %p411
        $region78: #{tpu_custom_call.1} parent=11 // pred_check_branch
          %518 = sbr.rel (%p516) target = $region80
        $region79: #{tpu_custom_call.1} parent=11 // pred_region
          _
        $region80: #{tpu_custom_call.1} parent=11 // pred_fallthru
          _
      $region12: #{tpu_custom_call.1} parent=5 // pred_fallthru
        _
      %p519 = scmp.lt.s32.totalorder %s28, 2
      // Predicated region
      $region81: #{tpu_custom_call.1} parent=5 // pred_check
        %p520 = pneg %p519
      $region82: #{tpu_custom_call.1} parent=5 // pred_check_branch
        %522 = sbr.rel (%p520) target = $region84
      $region83: #{tpu_custom_call.1} parent=5 // pred_region
        // Predicated region
        $region85: #{tpu_custom_call.1} parent=83 // pred_check
          %p523 = pneg %p174
        $region86: #{tpu_custom_call.1} parent=83 // pred_check_branch
          %525 = sbr.rel (%p523) target = $region88
        $region87: #{tpu_custom_call.1} parent=83 // pred_region
          %p526 = scmp.lt.s32.totalorder %s28, 1
          %s527 = scalar_select %p526, %s28, 1
          %s528 = smul.addr %s527, 128
          %s529 = smul.addr %s528, 8
          %s530 = scalar_lea.vmem %s6, %s529
        $region88: #{tpu_custom_call.1} parent=83 // pred_fallthru
          _
      $region84: #{tpu_custom_call.1} parent=5 // pred_fallthru
        _
      %p531 = scmp.le.s32.totalorder 1, %s28
      %p532 = scmp.lt.s32.totalorder %s28, 3
      %p533 = pnand %p531, %p532
      %p534 = pneg %p533
      // Predicated region
      $region89: #{tpu_custom_call.1} parent=5 // pred_check
        _
      $region90: #{tpu_custom_call.1} parent=5 // pred_check_branch
        %536 = sbr.rel (%p533) target = $region92
      $region91: #{tpu_custom_call.1} parent=5 // pred_region
        %s537 = ssub.s32 %s28, 1
        %p538 = pneg %p49
        %p539 = pneg %p46
        %p540 = pneg %p70
        %p541 = pneg %p67
        %p542 = pneg %p91
        %p543 = pneg %p88
        %p544 = pneg %p112
        %p545 = pneg %p109
        %p546 = pneg %p133
        %p547 = pneg %p130
        %p548 = pneg %p154
        %p549 = pneg %p151
        %p550 = scmp.lt.s32.totalorder %s33, 1
        %s551 = scalar_select %p550, %s33, 1
        %s552 = smul.addr %s551, 128
        %s553 = smul.addr %s552, 8
        %s554 = scalar_lea.vmem %s6, %s553
        %p555 = pneg %p180
        %p556 = pneg %p177
        %p557 = pneg %p201
        %p558 = pneg %p198
        %p559 = pneg %p222
        %p560 = pneg %p219
        %p561 = pneg %p243
        %p562 = pneg %p240
        %p563 = pneg %p264
        %p564 = pneg %p261
        %p565 = pneg %p285
        %p566 = pneg %p282
        %p567 = pneg %p306
        %p568 = pneg %p303
        %p569 = pneg %p327
        %p570 = pneg %p324
        %p571 = pneg %p348
        %p572 = pneg %p345
        %p573 = pneg %p369
        %p574 = pneg %p366
        %p575 = pneg %p390
        %p576 = pneg %p387
        %p577 = pneg %p411
        %p578 = pneg %p408
        %p579 = pneg %p432
        %p580 = pneg %p429
        %p581 = pneg %p453
        %p582 = pneg %p450
        %p583 = scmp.lt.s32.totalorder %s33, 1
        %s584 = scalar_select %p583, %s33, 1
        %s585 = smul.addr %s584, 128
        %s586 = smul.addr %s585, 8
        %s587 = scalar_lea.vmem %s6, %s586
        %p588 = scmp.eq.s32.totalorder %s33, 0
        // Predicated region
        $region93: #{tpu_custom_call.1} parent=91 // pred_check
          %p589 = pneg %p588
        $region94: #{tpu_custom_call.1} parent=91 // pred_check_branch
          %591 = sbr.rel (%p589) target = $region96
        $region95: #{tpu_custom_call.1} parent=91 // pred_region
          %vm592 = vcmask 261120
          %593 = vst.msk [vmem:[#allocation4] sm:$0xff] %vm592, 0.0
          %594 = vst.msk [vmem:[#allocation4 + $0x8] sm:$0xff] %vm592, 0.0
          %s595 = scalar_lea.smem [#allocation7], 0
          %596 = sst [smem:[%s595]] 0.0
          %v597 = vld [vmem:[%s0] sm:$0xff]
          %v598 = vld [vmem:[%s0 + $0x8] sm:$0xff]
          %v599 = vld [vmem:[%s2] sm:$0xff]
          %v600 = vld [vmem:[%s2 + $0x8] sm:$0xff]
          %v601 = vld [vmem:[%s2 + $0x10] sm:$0xff]
          %v602 = vld [vmem:[%s2 + $0x18] sm:$0xff]
          %v603 = vld [vmem:[%s3] sm:$0x1]
          %v605 = vlaneseq
          %v606 = vshrl.u32 %v605, 7
          %v607 = vsub.s32 0, %v606
          %v608 = vrot.slane %v603, %v607
          %v611 = vsel %vm592, %v597, 0
          %v614 = vsel %vm592, %v598, 0
          %616 = vmatprep.subr.mxu0 0.0
          %617 = vmatpush1.msra.mxu0 %v599
          %618 = vmatprep.subr.mxu0 0.0
          %619 = vmatpush1.msra.mxu0 %v600
          %620 = vmatprep.subr.mxu0 0.0
          %621 = vmatpush1.msra.mxu0 %v601
          %622 = vmatprep.subr.mxu0 0.0
          %623 = vmatpush1.msra.mxu0 %v602
          %624 = vmatprep.subr.mxu0 0.0
          %625 = vmatpush1.msra.mxu0 0.0
          %626 = vmatprep.subr.mxu0 0.0
          %627 = vmatpush1.msra.mxu0 0.0
          %628 = vmatprep.subr.mxu0 0.0
          %629 = vmatpush1.msra.mxu0 0.0
          %630 = vmatprep.subr.mxu0 0.0
          %631 = vmatpush1.msra.mxu0 0.0
          %632 = vmatprep.subr.mxu0 0.0
          %633 = vmatpush1.msra.mxu0 0.0
          %634 = vmatprep.subr.mxu0 0.0
          %635 = vmatpush1.msra.mxu0 0.0
          %636 = vmatprep.subr.mxu0 0.0
          %637 = vmatpush1.msra.mxu0 0.0
          %638 = vmatprep.subr.mxu0 0.0
          %639 = vmatpush1.msra.mxu0 0.0
          %640 = vmatprep.subr.mxu0 0.0
          %641 = vmatpush1.msra.mxu0 0.0
          %642 = vmatprep.subr.mxu0 0.0
          %643 = vmatpush1.msra.mxu0 0.0
          %644 = vmatprep.subr.mxu0 0.0
          %645 = vmatpush1.msra.mxu0 0.0
          %646 = vmatprep.subr.mxu0 0.0
          %647 = vmatpush1.msra.mxu0 0.0
          %648 = vmatprep.subr.mxu0 0.0
          %649 = vmatpush1.msra.mxu0 0.0
          %650 = vmatprep.subr.mxu0 0.0
          %651 = vmatpush1.msra.mxu0 0.0
          %652 = vmatprep.subr.mxu0 0.0
          %653 = vmatpush1.msra.mxu0 0.0
          %654 = vmatprep.subr.mxu0 0.0
          %655 = vmatpush1.msra.mxu0 0.0
          %656 = vmatprep.subr.mxu0 0.0
          %657 = vmatpush1.msra.mxu0 0.0
          %658 = vmatprep.subr.mxu0 0.0
          %659 = vmatpush1.msra.mxu0 0.0
          %660 = vmatprep.subr.mxu0 0.0
          %661 = vmatpush1.msra.mxu0 0.0
          %662 = vmatprep.subr.mxu0 0.0
          %663 = vmatpush1.msra.mxu0 0.0
          %664 = vmatprep.subr.mxu0 0.0
          %665 = vmatpush1.msra.mxu0 0.0
          %666 = vmatprep.subr.mxu0 0.0
          %667 = vmatpush1.msra.mxu0 0.0
          %668 = vmatprep.subr.mxu0 0.0
          %669 = vmatpush1.msra.mxu0 0.0
          %670 = vmatprep.subr.mxu0 0.0
          %671 = vmatpush1.msra.mxu0 0.0
          %672 = vmatprep.subr.mxu0 0.0
          %673 = vmatpush1.msra.mxu0 0.0
          %674 = vmatprep.subr.mxu0 0.0
          %675 = vmatpush1.msra.mxu0 0.0
          %676 = vmatprep.subr.mxu0 0.0
          %677 = vmatpush1.msra.mxu0 0.0
          %678 = vmatprep.subr.mxu0 0.0
          %679 = vmatpush1.msra.mxu0 0.0
          %680 = vmatprep.mubr.f32.mxu0 0.0
          %681 = vmatmul.mubr.f32.gmra.mrb[0].mxu0 %v611
          %v682 = vpop.f32.mrb[0].mxu0
          %v683 = vadd.f32 %v608, %v682
          %v684 = vpop.f32.mrb[0].mxu0
          %685 = vmatprep.mubr.f32.mxu0 0.0
          %686 = vmatmul.mubr.f32.gmra.mrb[0].mxu0 %v614
          %v687 = vpop.f32.mrb[0].mxu0
          %v688 = vadd.f32 %v608, %v687
          %v689 = vpop.f32.mrb[0].mxu0
          %690 = vdwg.mxu0
          %v691 = vld [vmem:[%s1] sm:$0x3]
          %v692 = vld [vmem:[%s4] sm:$0xff]
          %v693 = vld [vmem:[%s4 + $0x8] sm:$0xff]
          %v694 = vld [vmem:[%s4 + $0x10] sm:$0xff]
          %v695 = vld [vmem:[%s4 + $0x18] sm:$0xff]
          %v696 = vld [vmem:[%s4 + $0x20] sm:$0xff]
          %v697 = vld [vmem:[%s4 + $0x28] sm:$0xff]
          %v698 = vld [vmem:[%s4 + $0x30] sm:$0xff]
          %v699 = vld [vmem:[%s4 + $0x38] sm:$0xff]
          %v700 = vld [vmem:[%s4 + $0x40] sm:$0xff]
          %v701 = vld [vmem:[%s4 + $0x48] sm:$0xff]
          %v702 = vld [vmem:[%s4 + $0x50] sm:$0xff]
          %v703 = vld [vmem:[%s4 + $0x58] sm:$0xff]
          %v704 = vld [vmem:[%s4 + $0x60] sm:$0xff]
          %v705 = vld [vmem:[%s4 + $0x68] sm:$0xff]
          %v706 = vld [vmem:[%s4 + $0x70] sm:$0xff]
          %v707 = vld [vmem:[%s4 + $0x78] sm:$0xff]
          %v708 = vld [vmem:[%s5] sm:$0xff]
          %v709 = vld [vmem:[%s5 + $0x8] sm:$0xff]
          %v712 = vlaneseq
          %v713 = vshrl.u32 %v712, 7
          %v714 = vsub.s32 0, %v713
          %v715 = vrot.slane %v708, %v714
          %v716 = vlaneseq
          %v717 = vshrl.u32 %v716, 7
          %v718 = vsub.s32 1, %v717
          %v719 = vrot.slane %v708, %v718
          %v720 = vlaneseq
          %v721 = vshrl.u32 %v720, 7
          %v722 = vsub.s32 2, %v721
          %v723 = vrot.slane %v708, %v722
          %v724 = vlaneseq
          %v725 = vshrl.u32 %v724, 7
          %v726 = vsub.s32 3, %v725
          %v727 = vrot.slane %v708, %v726
          %v728 = vlaneseq
          %v729 = vshrl.u32 %v728, 7
          %v730 = vsub.s32 4, %v729
          %v731 = vrot.slane %v708, %v730
          %v732 = vlaneseq
          %v733 = vshrl.u32 %v732, 7
          %v734 = vsub.s32 5, %v733
          %v735 = vrot.slane %v708, %v734
          %v736 = vlaneseq
          %v737 = vshrl.u32 %v736, 7
          %v738 = vsub.s32 6, %v737
          %v739 = vrot.slane %v708, %v738
          %v740 = vlaneseq
          %v741 = vshrl.u32 %v740, 7
          %v742 = vsub.s32 7, %v741
          %v743 = vrot.slane %v708, %v742
          %v744 = vlaneseq
          %v745 = vshrl.u32 %v744, 7
          %v746 = vsub.s32 0, %v745
          %v747 = vrot.slane %v709, %v746
          %v748 = vlaneseq
          %v749 = vshrl.u32 %v748, 7
          %v750 = vsub.s32 1, %v749
          %v751 = vrot.slane %v709, %v750
          %v752 = vlaneseq
          %v753 = vshrl.u32 %v752, 7
          %v754 = vsub.s32 2, %v753
          %v755 = vrot.slane %v709, %v754
          %v756 = vlaneseq
          %v757 = vshrl.u32 %v756, 7
          %v758 = vsub.s32 3, %v757
          %v759 = vrot.slane %v709, %v758
          %v760 = vlaneseq
          %v761 = vshrl.u32 %v760, 7
          %v762 = vsub.s32 4, %v761
          %v763 = vrot.slane %v709, %v762
          %v764 = vlaneseq
          %v765 = vshrl.u32 %v764, 7
          %v766 = vsub.s32 5, %v765
          %v767 = vrot.slane %v709, %v766
          %v768 = vlaneseq
          %v769 = vshrl.u32 %v768, 7
          %v770 = vsub.s32 6, %v769
          %v771 = vrot.slane %v709, %v770
          %v772 = vlaneseq
          %v773 = vshrl.u32 %v772, 7
          %v774 = vsub.s32 7, %v773
          %v775 = vrot.slane %v709, %v774
          %vm792 = vcmask 64512
          %v794 = vsel %vm792, %v691, 0
          %796 = vmatprep.subr.mxu0 %v693
          %797 = vmatpush1.msra.mxu0 %v692
          %798 = vmatprep.subr.mxu0 0.0
          %799 = vmatpush1.msra.mxu0 0.0
          %800 = vmatprep.subr.mxu0 0.0
          %801 = vmatpush1.msra.mxu0 0.0
          %802 = vmatprep.subr.mxu0 0.0
          %803 = vmatpush1.msra.mxu0 0.0
          %804 = vmatprep.subr.mxu0 0.0
          %805 = vmatpush1.msra.mxu0 0.0
          %806 = vmatprep.subr.mxu0 0.0
          %807 = vmatpush1.msra.mxu0 0.0
          %808 = vmatprep.subr.mxu0 0.0
          %809 = vmatpush1.msra.mxu0 0.0
          %810 = vmatprep.subr.mxu0 0.0
          %811 = vmatpush1.msra.mxu0 0.0
          %812 = vmatprep.subr.mxu0 0.0
          %813 = vmatpush1.msra.mxu0 0.0
          %814 = vmatprep.subr.mxu0 0.0
          %815 = vmatpush1.msra.mxu0 0.0
          %816 = vmatprep.subr.mxu0 0.0
          %817 = vmatpush1.msra.mxu0 0.0
          %818 = vmatprep.subr.mxu0 0.0
          %819 = vmatpush1.msra.mxu0 0.0
          %820 = vmatprep.subr.mxu0 0.0
          %821 = vmatpush1.msra.mxu0 0.0
          %822 = vmatprep.subr.mxu0 0.0
          %823 = vmatpush1.msra.mxu0 0.0
          %824 = vmatprep.subr.mxu0 0.0
          %825 = vmatpush1.msra.mxu0 0.0
          %826 = vmatprep.subr.mxu0 0.0
          %827 = vmatpush1.msra.mxu0 0.0
          %828 = vmatprep.subr.mxu0 0.0
          %829 = vmatpush1.msra.mxu0 0.0
          %830 = vmatprep.subr.mxu0 0.0
          %831 = vmatpush1.msra.mxu0 0.0
          %832 = vmatprep.subr.mxu0 0.0
          %833 = vmatpush1.msra.mxu0 0.0
          %834 = vmatprep.subr.mxu0 0.0
          %835 = vmatpush1.msra.mxu0 0.0
          %836 = vmatprep.subr.mxu0 0.0
          %837 = vmatpush1.msra.mxu0 0.0
          %838 = vmatprep.subr.mxu0 0.0
          %839 = vmatpush1.msra.mxu0 0.0
          %840 = vmatprep.subr.mxu0 0.0
          %841 = vmatpush1.msra.mxu0 0.0
          %842 = vmatprep.subr.mxu0 0.0
          %843 = vmatpush1.msra.mxu0 0.0
          %844 = vmatprep.subr.mxu0 0.0
          %845 = vmatpush1.msra.mxu0 0.0
          %846 = vmatprep.subr.mxu0 0.0
          %847 = vmatpush1.msra.mxu0 0.0
          %848 = vmatprep.subr.mxu0 0.0
          %849 = vmatpush1.msra.mxu0 0.0
          %850 = vmatprep.subr.mxu0 0.0
          %851 = vmatpush1.msra.mxu0 0.0
          %852 = vmatprep.subr.mxu0 0.0
          %853 = vmatpush1.msra.mxu0 0.0
          %854 = vmatprep.subr.mxu0 0.0
          %855 = vmatpush1.msra.mxu0 0.0
          %856 = vmatprep.subr.mxu0 0.0
          %857 = vmatpush1.msra.mxu0 0.0
          %858 = vmatprep.subr.mxu0 0.0
          %859 = vmatpush1.msra.mxu0 0.0
          %860 = vmatprep.mubr.f32.mxu0 0.0
          %861 = vmatmul.mubr.f32.gmra.mrb[0].mxu0 %v794
          %v862 = vpop.f32.mrb[0].mxu0
          %v863 = vadd.f32 %v715, %v862
          %v864 = vpop.f32.mrb[0].mxu0
          %v865 = vadd.f32 %v719, %v864
          %866 = vdwg.mxu0
          %867 = vmatprep.subr.mxu0 %v695
          %868 = vmatpush1.msra.mxu0 %v694
          %869 = vmatprep.subr.mxu0 0.0
          %870 = vmatpush1.msra.mxu0 0.0
          %871 = vmatprep.subr.mxu0 0.0
          %872 = vmatpush1.msra.mxu0 0.0
          %873 = vmatprep.subr.mxu0 0.0
          %874 = vmatpush1.msra.mxu0 0.0
          %875 = vmatprep.subr.mxu0 0.0
          %876 = vmatpush1.msra.mxu0 0.0
          %877 = vmatprep.subr.mxu0 0.0
          %878 = vmatpush1.msra.mxu0 0.0
          %879 = vmatprep.subr.mxu0 0.0
          %880 = vmatpush1.msra.mxu0 0.0
          %881 = vmatprep.subr.mxu0 0.0
          %882 = vmatpush1.msra.mxu0 0.0
          %883 = vmatprep.subr.mxu0 0.0
          %884 = vmatpush1.msra.mxu0 0.0
          %885 = vmatprep.subr.mxu0 0.0
          %886 = vmatpush1.msra.mxu0 0.0
          %887 = vmatprep.subr.mxu0 0.0
          %888 = vmatpush1.msra.mxu0 0.0
          %889 = vmatprep.subr.mxu0 0.0
          %890 = vmatpush1.msra.mxu0 0.0
          %891 = vmatprep.subr.mxu0 0.0
          %892 = vmatpush1.msra.mxu0 0.0
          %893 = vmatprep.subr.mxu0 0.0
          %894 = vmatpush1.msra.mxu0 0.0
          %895 = vmatprep.subr.mxu0 0.0
          %896 = vmatpush1.msra.mxu0 0.0
          %897 = vmatprep.subr.mxu0 0.0
          %898 = vmatpush1.msra.mxu0 0.0
          %899 = vmatprep.subr.mxu0 0.0
          %900 = vmatpush1.msra.mxu0 0.0
          %901 = vmatprep.subr.mxu0 0.0
          %902 = vmatpush1.msra.mxu0 0.0
          %903 = vmatprep.subr.mxu0 0.0
          %904 = vmatpush1.msra.mxu0 0.0
          %905 = vmatprep.subr.mxu0 0.0
          %906 = vmatpush1.msra.mxu0 0.0
          %907 = vmatprep.subr.mxu0 0.0
          %908 = vmatpush1.msra.mxu0 0.0
          %909 = vmatprep.subr.mxu0 0.0
          %910 = vmatpush1.msra.mxu0 0.0
          %911 = vmatprep.subr.mxu0 0.0
          %912 = vmatpush1.msra.mxu0 0.0
          %913 = vmatprep.subr.mxu0 0.0
          %914 = vmatpush1.msra.mxu0 0.0
          %915 = vmatprep.subr.mxu0 0.0
          %916 = vmatpush1.msra.mxu0 0.0
          %917 = vmatprep.subr.mxu0 0.0
          %918 = vmatpush1.msra.mxu0 0.0
          %919 = vmatprep.subr.mxu0 0.0
          %920 = vmatpush1.msra.mxu0 0.0
          %921 = vmatprep.subr.mxu0 0.0
          %922 = vmatpush1.msra.mxu0 0.0
          %923 = vmatprep.subr.mxu0 0.0
          %924 = vmatpush1.msra.mxu0 0.0
          %925 = vmatprep.subr.mxu0 0.0
          %926 = vmatpush1.msra.mxu0 0.0
          %927 = vmatprep.subr.mxu0 0.0
          %928 = vmatpush1.msra.mxu0 0.0
          %929 = vmatprep.subr.mxu0 0.0
          %930 = vmatpush1.msra.mxu0 0.0
          %931 = vmatprep.mubr.f32.mxu0 0.0
          %932 = vmatmul.mubr.f32.gmra.mrb[0].mxu0 %v794
          %v933 = vpop.f32.mrb[0].mxu0
          %v934 = vadd.f32 %v723, %v933
          %v935 = vpop.f32.mrb[0].mxu0
          %v936 = vadd.f32 %v727, %v935
          %937 = vdwg.mxu0
          %938 = vmatprep.subr.mxu0 %v697
          %939 = vmatpush1.msra.mxu0 %v696
          %940 = vmatprep.subr.mxu0 0.0
          %941 = vmatpush1.msra.mxu0 0.0
          %942 = vmatprep.subr.mxu0 0.0
          %943 = vmatpush1.msra.mxu0 0.0
          %944 = vmatprep.subr.mxu0 0.0
          %945 = vmatpush1.msra.mxu0 0.0
          %946 = vmatprep.subr.mxu0 0.0
          %947 = vmatpush1.msra.mxu0 0.0
          %948 = vmatprep.subr.mxu0 0.0
          %949 = vmatpush1.msra.mxu0 0.0
          %950 = vmatprep.subr.mxu0 0.0
          %951 = vmatpush1.msra.mxu0 0.0
          %952 = vmatprep.subr.mxu0 0.0
          %953 = vmatpush1.msra.mxu0 0.0
          %954 = vmatprep.subr.mxu0 0.0
          %955 = vmatpush1.msra.mxu0 0.0
          %956 = vmatprep.subr.mxu0 0.0
          %957 = vmatpush1.msra.mxu0 0.0
          %958 = vmatprep.subr.mxu0 0.0
          %959 = vmatpush1.msra.mxu0 0.0
          %960 = vmatprep.subr.mxu0 0.0
          %961 = vmatpush1.msra.mxu0 0.0
          %962 = vmatprep.subr.mxu0 0.0
          %963 = vmatpush1.msra.mxu0 0.0
          %964 = vmatprep.subr.mxu0 0.0
          %965 = vmatpush1.msra.mxu0 0.0
          %966 = vmatprep.subr.mxu0 0.0
          %967 = vmatpush1.msra.mxu0 0.0
          %968 = vmatprep.subr.mxu0 0.0
          %969 = vmatpush1.msra.mxu0 0.0
          %970 = vmatprep.subr.mxu0 0.0
          %971 = vmatpush1.msra.mxu0 0.0
          %972 = vmatprep.subr.mxu0 0.0
          %973 = vmatpush1.msra.mxu0 0.0
          %974 = vmatprep.subr.mxu0 0.0
          %975 = vmatpush1.msra.mxu0 0.0
          %976 = vmatprep.subr.mxu0 0.0
          %977 = vmatpush1.msra.mxu0 0.0
          %978 = vmatprep.subr.mxu0 0.0
          %979 = vmatpush1.msra.mxu0 0.0
          %980 = vmatprep.subr.mxu0 0.0
          %981 = vmatpush1.msra.mxu0 0.0
          %982 = vmatprep.subr.mxu0 0.0
          %983 = vmatpush1.msra.mxu0 0.0
          %984 = vmatprep.subr.mxu0 0.0
          %985 = vmatpush1.msra.mxu0 0.0
          %986 = vmatprep.subr.mxu0 0.0
          %987 = vmatpush1.msra.mxu0 0.0
          %988 = vmatprep.subr.mxu0 0.0
          %989 = vmatpush1.msra.mxu0 0.0
          %990 = vmatprep.subr.mxu0 0.0
          %991 = vmatpush1.msra.mxu0 0.0
          %992 = vmatprep.subr.mxu0 0.0
          %993 = vmatpush1.msra.mxu0 0.0
          %994 = vmatprep.subr.mxu0 0.0
          %995 = vmatpush1.msra.mxu0 0.0
          %996 = vmatprep.subr.mxu0 0.0
          %997 = vmatpush1.msra.mxu0 0.0
          %998 = vmatprep.subr.mxu0 0.0
          %999 = vmatpush1.msra.mxu0 0.0
          %1000 = vmatprep.subr.mxu0 0.0
          %1001 = vmatpush1.msra.mxu0 0.0
          %1002 = vmatprep.mubr.f32.mxu0 0.0
          %1003 = vmatmul.mubr.f32.gmra.mrb[0].mxu0 %v794
          %v1004 = vpop.f32.mrb[0].mxu0
          %v1005 = vadd.f32 %v731, %v1004
          %v1006 = vpop.f32.mrb[0].mxu0
          %v1007 = vadd.f32 %v735, %v1006
          %1008 = vdwg.mxu0
          %1009 = vmatprep.subr.mxu0 %v699
          %1010 = vmatpush1.msra.mxu0 %v698
          %1011 = vmatprep.subr.mxu0 0.0
          %1012 = vmatpush1.msra.mxu0 0.0
          %1013 = vmatprep.subr.mxu0 0.0
          %1014 = vmatpush1.msra.mxu0 0.0
          %1015 = vmatprep.subr.mxu0 0.0
          %1016 = vmatpush1.msra.mxu0 0.0
          %1017 = vmatprep.subr.mxu0 0.0
          %1018 = vmatpush1.msra.mxu0 0.0
          %1019 = vmatprep.subr.mxu0 0.0
          %1020 = vmatpush1.msra.mxu0 0.0
          %1021 = vmatprep.subr.mxu0 0.0
          %1022 = vmatpush1.msra.mxu0 0.0
          %1023 = vmatprep.subr.mxu0 0.0
          %1024 = vmatpush1.msra.mxu0 0.0
          %1025 = vmatprep.subr.mxu0 0.0
          %1026 = vmatpush1.msra.mxu0 0.0
          %1027 = vmatprep.subr.mxu0 0.0
          %1028 = vmatpush1.msra.mxu0 0.0
          %1029 = vmatprep.subr.mxu0 0.0
          %1030 = vmatpush1.msra.mxu0 0.0
          %1031 = vmatprep.subr.mxu0 0.0
          %1032 = vmatpush1.msra.mxu0 0.0
          %1033 = vmatprep.subr.mxu0 0.0
          %1034 = vmatpush1.msra.mxu0 0.0
          %1035 = vmatprep.subr.mxu0 0.0
          %1036 = vmatpush1.msra.mxu0 0.0
          %1037 = vmatprep.subr.mxu0 0.0
          %1038 = vmatpush1.msra.mxu0 0.0
          %1039 = vmatprep.subr.mxu0 0.0
          %1040 = vmatpush1.msra.mxu0 0.0
          %1041 = vmatprep.subr.mxu0 0.0
          %1042 = vmatpush1.msra.mxu0 0.0
          %1043 = vmatprep.subr.mxu0 0.0
          %1044 = vmatpush1.msra.mxu0 0.0
          %1045 = vmatprep.subr.mxu0 0.0
          %1046 = vmatpush1.msra.mxu0 0.0
          %1047 = vmatprep.subr.mxu0 0.0
          %1048 = vmatpush1.msra.mxu0 0.0
          %1049 = vmatprep.subr.mxu0 0.0
          %1050 = vmatpush1.msra.mxu0 0.0
          %1051 = vmatprep.subr.mxu0 0.0
          %1052 = vmatpush1.msra.mxu0 0.0
          %1053 = vmatprep.subr.mxu0 0.0
          %1054 = vmatpush1.msra.mxu0 0.0
          %1055 = vmatprep.subr.mxu0 0.0
          %1056 = vmatpush1.msra.mxu0 0.0
          %1057 = vmatprep.subr.mxu0 0.0
          %1058 = vmatpush1.msra.mxu0 0.0
          %1059 = vmatprep.subr.mxu0 0.0
          %1060 = vmatpush1.msra.mxu0 0.0
          %1061 = vmatprep.subr.mxu0 0.0
          %1062 = vmatpush1.msra.mxu0 0.0
          %1063 = vmatprep.subr.mxu0 0.0
          %1064 = vmatpush1.msra.mxu0 0.0
          %1065 = vmatprep.subr.mxu0 0.0
          %1066 = vmatpush1.msra.mxu0 0.0
          %1067 = vmatprep.subr.mxu0 0.0
          %1068 = vmatpush1.msra.mxu0 0.0
          %1069 = vmatprep.subr.mxu0 0.0
          %1070 = vmatpush1.msra.mxu0 0.0
          %1071 = vmatprep.subr.mxu0 0.0
          %1072 = vmatpush1.msra.mxu0 0.0
          %1073 = vmatprep.mubr.f32.mxu0 0.0
          %1074 = vmatmul.mubr.f32.gmra.mrb[0].mxu0 %v794
          %v1075 = vpop.f32.mrb[0].mxu0
          %v1076 = vadd.f32 %v739, %v1075
          %v1077 = vpop.f32.mrb[0].mxu0
          %v1078 = vadd.f32 %v743, %v1077
          %1079 = vdwg.mxu0
          %1080 = vmatprep.subr.mxu0 %v701
          %1081 = vmatpush1.msra.mxu0 %v700
          %1082 = vmatprep.subr.mxu0 0.0
          %1083 = vmatpush1.msra.mxu0 0.0
          %1084 = vmatprep.subr.mxu0 0.0
          %1085 = vmatpush1.msra.mxu0 0.0
          %1086 = vmatprep.subr.mxu0 0.0
          %1087 = vmatpush1.msra.mxu0 0.0
          %1088 = vmatprep.subr.mxu0 0.0
          %1089 = vmatpush1.msra.mxu0 0.0
          %1090 = vmatprep.subr.mxu0 0.0
          %1091 = vmatpush1.msra.mxu0 0.0
          %1092 = vmatprep.subr.mxu0 0.0
          %1093 = vmatpush1.msra.mxu0 0.0
          %1094 = vmatprep.subr.mxu0 0.0
          %1095 = vmatpush1.msra.mxu0 0.0
          %1096 = vmatprep.subr.mxu0 0.0
          %1097 = vmatpush1.msra.mxu0 0.0
          %1098 = vmatprep.subr.mxu0 0.0
          %1099 = vmatpush1.msra.mxu0 0.0
          %1100 = vmatprep.subr.mxu0 0.0
          %1101 = vmatpush1.msra.mxu0 0.0
          %1102 = vmatprep.subr.mxu0 0.0
          %1103 = vmatpush1.msra.mxu0 0.0
          %1104 = vmatprep.subr.mxu0 0.0
          %1105 = vmatpush1.msra.mxu0 0.0
          %1106 = vmatprep.subr.mxu0 0.0
          %1107 = vmatpush1.msra.mxu0 0.0
          %1108 = vmatprep.subr.mxu0 0.0
          %1109 = vmatpush1.msra.mxu0 0.0
          %1110 = vmatprep.subr.mxu0 0.0
          %1111 = vmatpush1.msra.mxu0 0.0
          %1112 = vmatprep.subr.mxu0 0.0
          %1113 = vmatpush1.msra.mxu0 0.0
          %1114 = vmatprep.subr.mxu0 0.0
          %1115 = vmatpush1.msra.mxu0 0.0
          %1116 = vmatprep.subr.mxu0 0.0
          %1117 = vmatpush1.msra.mxu0 0.0
          %1118 = vmatprep.subr.mxu0 0.0
          %1119 = vmatpush1.msra.mxu0 0.0
          %1120 = vmatprep.subr.mxu0 0.0
          %1121 = vmatpush1.msra.mxu0 0.0
          %1122 = vmatprep.subr.mxu0 0.0
          %1123 = vmatpush1.msra.mxu0 0.0
          %1124 = vmatprep.subr.mxu0 0.0
          %1125 = vmatpush1.msra.mxu0 0.0
          %1126 = vmatprep.subr.mxu0 0.0
          %1127 = vmatpush1.msra.mxu0 0.0
          %1128 = vmatprep.subr.mxu0 0.0
          %1129 = vmatpush1.msra.mxu0 0.0
          %1130 = vmatprep.subr.mxu0 0.0
          %1131 = vmatpush1.msra.mxu0 0.0
          %1132 = vmatprep.subr.mxu0 0.0
          %1133 = vmatpush1.msra.mxu0 0.0
          %1134 = vmatprep.subr.mxu0 0.0
          %1135 = vmatpush1.msra.mxu0 0.0
          %1136 = vmatprep.subr.mxu0 0.0
          %1137 = vmatpush1.msra.mxu0 0.0
          %1138 = vmatprep.subr.mxu0 0.0
          %1139 = vmatpush1.msra.mxu0 0.0
          %1140 = vmatprep.subr.mxu0 0.0
          %1141 = vmatpush1.msra.mxu0 0.0
          %1142 = vmatprep.subr.mxu0 0.0
          %1143 = vmatpush1.msra.mxu0 0.0
          %1144 = vmatprep.mubr.f32.mxu0 0.0
          %1145 = vmatmul.mubr.f32.gmra.mrb[0].mxu0 %v794
          %v1146 = vpop.f32.mrb[0].mxu0
          %v1147 = vadd.f32 %v747, %v1146
          %v1148 = vpop.f32.mrb[0].mxu0
          %v1149 = vadd.f32 %v751, %v1148
          %1150 = vdwg.mxu0
          %1151 = vmatprep.subr.mxu0 %v703
          %1152 = vmatpush1.msra.mxu0 %v702
          %1153 = vmatprep.subr.mxu0 0.0
          %1154 = vmatpush1.msra.mxu0 0.0
          %1155 = vmatprep.subr.mxu0 0.0
          %1156 = vmatpush1.msra.mxu0 0.0
          %1157 = vmatprep.subr.mxu0 0.0
          %1158 = vmatpush1.msra.mxu0 0.0
          %1159 = vmatprep.subr.mxu0 0.0
          %1160 = vmatpush1.msra.mxu0 0.0
          %1161 = vmatprep.subr.mxu0 0.0
          %1162 = vmatpush1.msra.mxu0 0.0
          %1163 = vmatprep.subr.mxu0 0.0
          %1164 = vmatpush1.msra.mxu0 0.0
          %1165 = vmatprep.subr.mxu0 0.0
          %1166 = vmatpush1.msra.mxu0 0.0
          %1167 = vmatprep.subr.mxu0 0.0
          %1168 = vmatpush1.msra.mxu0 0.0
          %1169 = vmatprep.subr.mxu0 0.0
          %1170 = vmatpush1.msra.mxu0 0.0
          %1171 = vmatprep.subr.mxu0 0.0
          %1172 = vmatpush1.msra.mxu0 0.0
          %1173 = vmatprep.subr.mxu0 0.0
          %1174 = vmatpush1.msra.mxu0 0.0
          %1175 = vmatprep.subr.mxu0 0.0
          %1176 = vmatpush1.msra.mxu0 0.0
          %1177 = vmatprep.subr.mxu0 0.0
          %1178 = vmatpush1.msra.mxu0 0.0
          %1179 = vmatprep.subr.mxu0 0.0
          %1180 = vmatpush1.msra.mxu0 0.0
          %1181 = vmatprep.subr.mxu0 0.0
          %1182 = vmatpush1.msra.mxu0 0.0
          %1183 = vmatprep.subr.mxu0 0.0
          %1184 = vmatpush1.msra.mxu0 0.0
          %1185 = vmatprep.subr.mxu0 0.0
          %1186 = vmatpush1.msra.mxu0 0.0
          %1187 = vmatprep.subr.mxu0 0.0
          %1188 = vmatpush1.msra.mxu0 0.0
          %1189 = vmatprep.subr.mxu0 0.0
          %1190 = vmatpush1.msra.mxu0 0.0
          %1191 = vmatprep.subr.mxu0 0.0
          %1192 = vmatpush1.msra.mxu0 0.0
          %1193 = vmatprep.subr.mxu0 0.0
          %1194 = vmatpush1.msra.mxu0 0.0
          %1195 = vmatprep.subr.mxu0 0.0
          %1196 = vmatpush1.msra.mxu0 0.0
          %1197 = vmatprep.subr.mxu0 0.0
          %1198 = vmatpush1.msra.mxu0 0.0
          %1199 = vmatprep.subr.mxu0 0.0
          %1200 = vmatpush1.msra.mxu0 0.0
          %1201 = vmatprep.subr.mxu0 0.0
          %1202 = vmatpush1.msra.mxu0 0.0
          %1203 = vmatprep.subr.mxu0 0.0
          %1204 = vmatpush1.msra.mxu0 0.0
          %1205 = vmatprep.subr.mxu0 0.0
          %1206 = vmatpush1.msra.mxu0 0.0
          %1207 = vmatprep.subr.mxu0 0.0
          %1208 = vmatpush1.msra.mxu0 0.0
          %1209 = vmatprep.subr.mxu0 0.0
          %1210 = vmatpush1.msra.mxu0 0.0
          %1211 = vmatprep.subr.mxu0 0.0
          %1212 = vmatpush1.msra.mxu0 0.0
          %1213 = vmatprep.subr.mxu0 0.0
          %1214 = vmatpush1.msra.mxu0 0.0
          %1215 = vmatprep.mubr.f32.mxu0 0.0
          %1216 = vmatmul.mubr.f32.gmra.mrb[0].mxu0 %v794
          %v1217 = vpop.f32.mrb[0].mxu0
          %v1218 = vadd.f32 %v755, %v1217
          %v1219 = vpop.f32.mrb[0].mxu0
          %v1220 = vadd.f32 %v759, %v1219
          %1221 = vdwg.mxu0
          %1222 = vmatprep.subr.mxu0 %v705
          %1223 = vmatpush1.msra.mxu0 %v704
          %1224 = vmatprep.subr.mxu0 0.0
          %1225 = vmatpush1.msra.mxu0 0.0
          %1226 = vmatprep.subr.mxu0 0.0
          %1227 = vmatpush1.msra.mxu0 0.0
          %1228 = vmatprep.subr.mxu0 0.0
          %1229 = vmatpush1.msra.mxu0 0.0
          %1230 = vmatprep.subr.mxu0 0.0
          %1231 = vmatpush1.msra.mxu0 0.0
          %1232 = vmatprep.subr.mxu0 0.0
          %1233 = vmatpush1.msra.mxu0 0.0
          %1234 = vmatprep.subr.mxu0 0.0
          %1235 = vmatpush1.msra.mxu0 0.0
          %1236 = vmatprep.subr.mxu0 0.0
          %1237 = vmatpush1.msra.mxu0 0.0
          %1238 = vmatprep.subr.mxu0 0.0
          %1239 = vmatpush1.msra.mxu0 0.0
          %1240 = vmatprep.subr.mxu0 0.0
          %1241 = vmatpush1.msra.mxu0 0.0
          %1242 = vmatprep.subr.mxu0 0.0
          %1243 = vmatpush1.msra.mxu0 0.0
          %1244 = vmatprep.subr.mxu0 0.0
          %1245 = vmatpush1.msra.mxu0 0.0
          %1246 = vmatprep.subr.mxu0 0.0
          %1247 = vmatpush1.msra.mxu0 0.0
          %1248 = vmatprep.subr.mxu0 0.0
          %1249 = vmatpush1.msra.mxu0 0.0
          %1250 = vmatprep.subr.mxu0 0.0
          %1251 = vmatpush1.msra.mxu0 0.0
          %1252 = vmatprep.subr.mxu0 0.0
          %1253 = vmatpush1.msra.mxu0 0.0
          %1254 = vmatprep.subr.mxu0 0.0
          %1255 = vmatpush1.msra.mxu0 0.0
          %1256 = vmatprep.subr.mxu0 0.0
          %1257 = vmatpush1.msra.mxu0 0.0
          %1258 = vmatprep.subr.mxu0 0.0
          %1259 = vmatpush1.msra.mxu0 0.0
          %1260 = vmatprep.subr.mxu0 0.0
          %1261 = vmatpush1.msra.mxu0 0.0
          %1262 = vmatprep.subr.mxu0 0.0
          %1263 = vmatpush1.msra.mxu0 0.0
          %1264 = vmatprep.subr.mxu0 0.0
          %1265 = vmatpush1.msra.mxu0 0.0
          %1266 = vmatprep.subr.mxu0 0.0
          %1267 = vmatpush1.msra.mxu0 0.0
          %1268 = vmatprep.subr.mxu0 0.0
          %1269 = vmatpush1.msra.mxu0 0.0
          %1270 = vmatprep.subr.mxu0 0.0
          %1271 = vmatpush1.msra.mxu0 0.0
          %1272 = vmatprep.subr.mxu0 0.0
          %1273 = vmatpush1.msra.mxu0 0.0
          %1274 = vmatprep.subr.mxu0 0.0
          %1275 = vmatpush1.msra.mxu0 0.0
          %1276 = vmatprep.subr.mxu0 0.0
          %1277 = vmatpush1.msra.mxu0 0.0
          %1278 = vmatprep.subr.mxu0 0.0
          %1279 = vmatpush1.msra.mxu0 0.0
          %1280 = vmatprep.subr.mxu0 0.0
          %1281 = vmatpush1.msra.mxu0 0.0
          %1282 = vmatprep.subr.mxu0 0.0
          %1283 = vmatpush1.msra.mxu0 0.0
          %1284 = vmatprep.subr.mxu0 0.0
          %1285 = vmatpush1.msra.mxu0 0.0
          %1286 = vmatprep.mubr.f32.mxu0 0.0
          %1287 = vmatmul.mubr.f32.gmra.mrb[0].mxu0 %v794
          %v1288 = vpop.f32.mrb[0].mxu0
          %v1289 = vadd.f32 %v763, %v1288
          %v1290 = vpop.f32.mrb[0].mxu0
          %v1291 = vadd.f32 %v767, %v1290
          %1292 = vdwg.mxu0
          %1293 = vmatprep.subr.mxu0 %v707
          %1294 = vmatpush1.msra.mxu0 %v706
          %1295 = vmatprep.subr.mxu0 0.0
          %1296 = vmatpush1.msra.mxu0 0.0
          %1297 = vmatprep.subr.mxu0 0.0
          %1298 = vmatpush1.msra.mxu0 0.0
          %1299 = vmatprep.subr.mxu0 0.0
          %1300 = vmatpush1.msra.mxu0 0.0
          %1301 = vmatprep.subr.mxu0 0.0
          %1302 = vmatpush1.msra.mxu0 0.0
          %1303 = vmatprep.subr.mxu0 0.0
          %1304 = vmatpush1.msra.mxu0 0.0
          %1305 = vmatprep.subr.mxu0 0.0
          %1306 = vmatpush1.msra.mxu0 0.0
          %1307 = vmatprep.subr.mxu0 0.0
          %1308 = vmatpush1.msra.mxu0 0.0
          %1309 = vmatprep.subr.mxu0 0.0
          %1310 = vmatpush1.msra.mxu0 0.0
          %1311 = vmatprep.subr.mxu0 0.0
          %1312 = vmatpush1.msra.mxu0 0.0
          %1313 = vmatprep.subr.mxu0 0.0
          %1314 = vmatpush1.msra.mxu0 0.0
          %1315 = vmatprep.subr.mxu0 0.0
          %1316 = vmatpush1.msra.mxu0 0.0
          %1317 = vmatprep.subr.mxu0 0.0
          %1318 = vmatpush1.msra.mxu0 0.0
          %1319 = vmatprep.subr.mxu0 0.0
          %1320 = vmatpush1.msra.mxu0 0.0
          %1321 = vmatprep.subr.mxu0 0.0
          %1322 = vmatpush1.msra.mxu0 0.0
          %1323 = vmatprep.subr.mxu0 0.0
          %1324 = vmatpush1.msra.mxu0 0.0
          %1325 = vmatprep.subr.mxu0 0.0
          %1326 = vmatpush1.msra.mxu0 0.0
          %1327 = vmatprep.subr.mxu0 0.0
          %1328 = vmatpush1.msra.mxu0 0.0
          %1329 = vmatprep.subr.mxu0 0.0
          %1330 = vmatpush1.msra.mxu0 0.0
          %1331 = vmatprep.subr.mxu0 0.0
          %1332 = vmatpush1.msra.mxu0 0.0
          %1333 = vmatprep.subr.mxu0 0.0
          %1334 = vmatpush1.msra.mxu0 0.0
          %1335 = vmatprep.subr.mxu0 0.0
          %1336 = vmatpush1.msra.mxu0 0.0
          %1337 = vmatprep.subr.mxu0 0.0
          %1338 = vmatpush1.msra.mxu0 0.0
          %1339 = vmatprep.subr.mxu0 0.0
          %1340 = vmatpush1.msra.mxu0 0.0
          %1341 = vmatprep.subr.mxu0 0.0
          %1342 = vmatpush1.msra.mxu0 0.0
          %1343 = vmatprep.subr.mxu0 0.0
          %1344 = vmatpush1.msra.mxu0 0.0
          %1345 = vmatprep.subr.mxu0 0.0
          %1346 = vmatpush1.msra.mxu0 0.0
          %1347 = vmatprep.subr.mxu0 0.0
          %1348 = vmatpush1.msra.mxu0 0.0
          %1349 = vmatprep.subr.mxu0 0.0
          %1350 = vmatpush1.msra.mxu0 0.0
          %1351 = vmatprep.subr.mxu0 0.0
          %1352 = vmatpush1.msra.mxu0 0.0
          %1353 = vmatprep.subr.mxu0 0.0
          %1354 = vmatpush1.msra.mxu0 0.0
          %1355 = vmatprep.subr.mxu0 0.0
          %1356 = vmatpush1.msra.mxu0 0.0
          %1357 = vmatprep.mubr.f32.mxu0 0.0
          %1358 = vmatmul.mubr.f32.gmra.mrb[0].mxu0 %v794
          %v1359 = vpop.f32.mrb[0].mxu0
          %v1360 = vadd.f32 %v771, %v1359
          %v1361 = vpop.f32.mrb[0].mxu0
          %v1362 = vadd.f32 %v775, %v1361
          %1363 = vdwg.mxu0
          %v1364 = vmax.f32 %v863, 0.0
          %v1365 = vmax.f32 %v865, 0.0
          %v1366 = vmax.f32 %v934, 0.0
          %v1367 = vmax.f32 %v936, 0.0
          %v1368 = vmax.f32 %v1005, 0.0
          %v1369 = vmax.f32 %v1007, 0.0
          %v1370 = vmax.f32 %v1076, 0.0
          %v1371 = vmax.f32 %v1078, 0.0
          %v1372 = vmax.f32 %v1147, 0.0
          %v1373 = vmax.f32 %v1149, 0.0
          %v1374 = vmax.f32 %v1218, 0.0
          %v1375 = vmax.f32 %v1220, 0.0
          %v1376 = vmax.f32 %v1289, 0.0
          %v1377 = vmax.f32 %v1291, 0.0
          %v1378 = vmax.f32 %v1360, 0.0
          %v1379 = vmax.f32 %v1362, 0.0
          %vm1380 = vcmask 392192
          %1381 = vst.msk [vmem:[#allocation2] sm:$0xff] %vm1380, %v683
          %1382 = vst.msk [vmem:[#allocation2 + $0x8] sm:$0xff] %vm1380, %v688
          %v1391 = vcombine.low %v1364, %v1365
          %v1392 = vcombine.low %v1366, %v1367
          %v1394 = vunpack.c.l.s4 1983009808
          %v1395 = vunpack.c.0.s8 %v1394
          %v1396 = vlaneseq
          %v1397 = vshrl.u32 %v1396, 7
          %v1398 = vsub.s32 %v1395, %v1397
          %v1399 = vrot.slane %v1391, %v1398
          %v1401 = vunpack.c.l.s4 1983009808
          %v1402 = vunpack.c.0.s8 %v1401
          %v1403 = vlaneseq
          %v1404 = vshrl.u32 %v1403, 7
          %v1405 = vsub.s32 %v1402, %v1404
          %v1406 = vrot.slane %v1392, %v1405
          %v1407 = vcombine.low %v1399, %v1406
          %v1408 = vcombine.low %v1368, %v1369
          %v1409 = vcombine.low %v1370, %v1371
          %v1411 = vunpack.c.l.s4 1983009808
          %v1412 = vunpack.c.0.s8 %v1411
          %v1413 = vlaneseq
          %v1414 = vshrl.u32 %v1413, 7
          %v1415 = vsub.s32 %v1412, %v1414
          %v1416 = vrot.slane %v1408, %v1415
          %v1418 = vunpack.c.l.s4 1983009808
          %v1419 = vunpack.c.0.s8 %v1418
          %v1420 = vlaneseq
          %v1421 = vshrl.u32 %v1420, 7
          %v1422 = vsub.s32 %v1419, %v1421
          %v1423 = vrot.slane %v1409, %v1422
          %v1424 = vcombine.low %v1416, %v1423
          %1427 = vst [vmem:[#allocation3] sm:$0xff] %v1407
          %1428 = vst [vmem:[#allocation3 + $0x8] sm:$0xff] %v1424
          %1431 = vrot.lane.b32.xlu0 %v683, 80
          %v1432 = vpop.permute.xlu0 %1431
          %1433 = vrot.lane.b32.xlu0 %v688, 80
          %v1434 = vpop.permute.xlu0 %1433
          %s1437 = scalar_lea.vmem [#allocation2], 16
          %1438 = vst.msk [vmem:[%s1437] sm:$0xff] %vm1380, %v1432
          %1439 = vst.msk [vmem:[%s1437 + $0x8] sm:$0xff] %vm1380, %v1434
          %v1448 = vcombine.low %v1372, %v1373
          %v1449 = vcombine.low %v1374, %v1375
          %v1451 = vunpack.c.l.s4 1983009808
          %v1452 = vunpack.c.0.s8 %v1451
          %v1453 = vlaneseq
          %v1454 = vshrl.u32 %v1453, 7
          %v1455 = vsub.s32 %v1452, %v1454
          %v1456 = vrot.slane %v1448, %v1455
          %v1458 = vunpack.c.l.s4 1983009808
          %v1459 = vunpack.c.0.s8 %v1458
          %v1460 = vlaneseq
          %v1461 = vshrl.u32 %v1460, 7
          %v1462 = vsub.s32 %v1459, %v1461
          %v1463 = vrot.slane %v1449, %v1462
          %v1464 = vcombine.low %v1456, %v1463
          %v1465 = vcombine.low %v1376, %v1377
          %v1466 = vcombine.low %v1378, %v1379
          %v1468 = vunpack.c.l.s4 1983009808
          %v1469 = vunpack.c.0.s8 %v1468
          %v1470 = vlaneseq
          %v1471 = vshrl.u32 %v1470, 7
          %v1472 = vsub.s32 %v1469, %v1471
          %v1473 = vrot.slane %v1465, %v1472
          %v1475 = vunpack.c.l.s4 1983009808
          %v1476 = vunpack.c.0.s8 %v1475
          %v1477 = vlaneseq
          %v1478 = vshrl.u32 %v1477, 7
          %v1479 = vsub.s32 %v1476, %v1478
          %v1480 = vrot.slane %v1466, %v1479
          %v1481 = vcombine.low %v1473, %v1480
          %s1484 = scalar_lea.vmem [#allocation3], 16
          %1485 = vst [vmem:[%s1484] sm:$0xff] %v1464
          %1486 = vst [vmem:[%s1484 + $0x8] sm:$0xff] %v1481
        $region96: #{tpu_custom_call.1} parent=91 // pred_fallthru
          _
        %s1487 = smul.u32 %s33, 8
        %s1488 = smul.addr %s1487, 2
        %s1489 = scalar_lea.vmem [#allocation3], %s1488
        %v1490 = vld [vmem:[%s1489] sm:$0xff]
        %v1491 = vld [vmem:[%s1489 + $0x8] sm:$0xff]
        %v1492 = vld [vmem:[%s587] sm:$0xff]
        %v1493 = vld [vmem:[%s587 + $0x8] sm:$0xff]
        %v1494 = vld [vmem:[%s587 + $0x10] sm:$0xff]
        %v1495 = vld [vmem:[%s587 + $0x18] sm:$0xff]
        %v1496 = vld [vmem:[%s587 + $0x20] sm:$0xff]
        %v1497 = vld [vmem:[%s587 + $0x28] sm:$0xff]
        %v1498 = vld [vmem:[%s587 + $0x30] sm:$0xff]
        %v1499 = vld [vmem:[%s587 + $0x38] sm:$0xff]
        %v1500 = vld [vmem:[%s587 + $0x40] sm:$0xff]
        %v1501 = vld [vmem:[%s587 + $0x48] sm:$0xff]
        %v1502 = vld [vmem:[%s587 + $0x50] sm:$0xff]
        %v1503 = vld [vmem:[%s587 + $0x58] sm:$0xff]
        %v1504 = vld [vmem:[%s587 + $0x60] sm:$0xff]
        %v1505 = vld [vmem:[%s587 + $0x68] sm:$0xff]
        %v1506 = vld [vmem:[%s587 + $0x70] sm:$0xff]
        %v1507 = vld [vmem:[%s587 + $0x78] sm:$0xff]
        %v1508 = vld [vmem:[%s587 + $0x80] sm:$0xff]
        %v1509 = vld [vmem:[%s587 + $0x88] sm:$0xff]
        %v1510 = vld [vmem:[%s587 + $0x90] sm:$0xff]
        %v1511 = vld [vmem:[%s587 + $0x98] sm:$0xff]
        %v1512 = vld [vmem:[%s587 + $0xa0] sm:$0xff]
        %v1513 = vld [vmem:[%s587 + $0xa8] sm:$0xff]
        %v1514 = vld [vmem:[%s587 + $0xb0] sm:$0xff]
        %v1515 = vld [vmem:[%s587 + $0xb8] sm:$0xff]
        %v1516 = vld [vmem:[%s587 + $0xc0] sm:$0xff]
        %v1517 = vld [vmem:[%s587 + $0xc8] sm:$0xff]
        %v1518 = vld [vmem:[%s587 + $0xd0] sm:$0xff]
        %v1519 = vld [vmem:[%s587 + $0xd8] sm:$0xff]
        %v1520 = vld [vmem:[%s587 + $0xe0] sm:$0xff]
        %v1521 = vld [vmem:[%s587 + $0xe8] sm:$0xff]
        %v1522 = vld [vmem:[%s587 + $0xf0] sm:$0xff]
        %v1523 = vld [vmem:[%s587 + $0xf8] sm:$0xff]
        %v1524 = vld [vmem:[%s587 + $0x100] sm:$0xff]
        %v1525 = vld [vmem:[%s587 + $0x108] sm:$0xff]
        %v1526 = vld [vmem:[%s587 + $0x110] sm:$0xff]
        %v1527 = vld [vmem:[%s587 + $0x118] sm:$0xff]
        %v1528 = vld [vmem:[%s587 + $0x120] sm:$0xff]
        %v1529 = vld [vmem:[%s587 + $0x128] sm:$0xff]
        %v1530 = vld [vmem:[%s587 + $0x130] sm:$0xff]
        %v1531 = vld [vmem:[%s587 + $0x138] sm:$0xff]
        %v1532 = vld [vmem:[%s587 + $0x140] sm:$0xff]
        %v1533 = vld [vmem:[%s587 + $0x148] sm:$0xff]
        %v1534 = vld [vmem:[%s587 + $0x150] sm:$0xff]
        %v1535 = vld [vmem:[%s587 + $0x158] sm:$0xff]
        %v1536 = vld [vmem:[%s587 + $0x160] sm:$0xff]
        %v1537 = vld [vmem:[%s587 + $0x168] sm:$0xff]
        %v1538 = vld [vmem:[%s587 + $0x170] sm:$0xff]
        %v1539 = vld [vmem:[%s587 + $0x178] sm:$0xff]
        %v1540 = vld [vmem:[%s587 + $0x180] sm:$0xff]
        %v1541 = vld [vmem:[%s587 + $0x188] sm:$0xff]
        %v1542 = vld [vmem:[%s587 + $0x190] sm:$0xff]
        %v1543 = vld [vmem:[%s587 + $0x198] sm:$0xff]
        %v1544 = vld [vmem:[%s587 + $0x1a0] sm:$0xff]
        %v1545 = vld [vmem:[%s587 + $0x1a8] sm:$0xff]
        %v1546 = vld [vmem:[%s587 + $0x1b0] sm:$0xff]
        %v1547 = vld [vmem:[%s587 + $0x1b8] sm:$0xff]
        %v1548 = vld [vmem:[%s587 + $0x1c0] sm:$0xff]
        %v1549 = vld [vmem:[%s587 + $0x1c8] sm:$0xff]
        %v1550 = vld [vmem:[%s587 + $0x1d0] sm:$0xff]
        %v1551 = vld [vmem:[%s587 + $0x1d8] sm:$0xff]
        %v1552 = vld [vmem:[%s587 + $0x1e0] sm:$0xff]
        %v1553 = vld [vmem:[%s587 + $0x1e8] sm:$0xff]
        %v1554 = vld [vmem:[%s587 + $0x1f0] sm:$0xff]
        %v1555 = vld [vmem:[%s587 + $0x1f8] sm:$0xff]
        %v1556 = vld [vmem:[%s587 + $0x200] sm:$0xff]
        %v1557 = vld [vmem:[%s587 + $0x208] sm:$0xff]
        %v1558 = vld [vmem:[%s587 + $0x210] sm:$0xff]
        %v1559 = vld [vmem:[%s587 + $0x218] sm:$0xff]
        %v1560 = vld [vmem:[%s587 + $0x220] sm:$0xff]
        %v1561 = vld [vmem:[%s587 + $0x228] sm:$0xff]
        %v1562 = vld [vmem:[%s587 + $0x230] sm:$0xff]
        %v1563 = vld [vmem:[%s587 + $0x238] sm:$0xff]
        %v1564 = vld [vmem:[%s587 + $0x240] sm:$0xff]
        %v1565 = vld [vmem:[%s587 + $0x248] sm:$0xff]
        %v1566 = vld [vmem:[%s587 + $0x250] sm:$0xff]
        %v1567 = vld [vmem:[%s587 + $0x258] sm:$0xff]
        %v1568 = vld [vmem:[%s587 + $0x260] sm:$0xff]
        %v1569 = vld [vmem:[%s587 + $0x268] sm:$0xff]
        %v1570 = vld [vmem:[%s587 + $0x270] sm:$0xff]
        %v1571 = vld [vmem:[%s587 + $0x278] sm:$0xff]
        %v1572 = vld [vmem:[%s587 + $0x280] sm:$0xff]
        %v1573 = vld [vmem:[%s587 + $0x288] sm:$0xff]
        %v1574 = vld [vmem:[%s587 + $0x290] sm:$0xff]
        %v1575 = vld [vmem:[%s587 + $0x298] sm:$0xff]
        %v1576 = vld [vmem:[%s587 + $0x2a0] sm:$0xff]
        %v1577 = vld [vmem:[%s587 + $0x2a8] sm:$0xff]
        %v1578 = vld [vmem:[%s587 + $0x2b0] sm:$0xff]
        %v1579 = vld [vmem:[%s587 + $0x2b8] sm:$0xff]
        %v1580 = vld [vmem:[%s587 + $0x2c0] sm:$0xff]
        %v1581 = vld [vmem:[%s587 + $0x2c8] sm:$0xff]
        %v1582 = vld [vmem:[%s587 + $0x2d0] sm:$0xff]
        %v1583 = vld [vmem:[%s587 + $0x2d8] sm:$0xff]
        %v1584 = vld [vmem:[%s587 + $0x2e0] sm:$0xff]
        %v1585 = vld [vmem:[%s587 + $0x2e8] sm:$0xff]
        %v1586 = vld [vmem:[%s587 + $0x2f0] sm:$0xff]
        %v1587 = vld [vmem:[%s587 + $0x2f8] sm:$0xff]
        %v1588 = vld [vmem:[%s587 + $0x300] sm:$0xff]
        %v1589 = vld [vmem:[%s587 + $0x308] sm:$0xff]
        %v1590 = vld [vmem:[%s587 + $0x310] sm:$0xff]
        %v1591 = vld [vmem:[%s587 + $0x318] sm:$0xff]
        %v1592 = vld [vmem:[%s587 + $0x320] sm:$0xff]
        %v1593 = vld [vmem:[%s587 + $0x328] sm:$0xff]
        %v1594 = vld [vmem:[%s587 + $0x330] sm:$0xff]
        %v1595 = vld [vmem:[%s587 + $0x338] sm:$0xff]
        %v1596 = vld [vmem:[%s587 + $0x340] sm:$0xff]
        %v1597 = vld [vmem:[%s587 + $0x348] sm:$0xff]
        %v1598 = vld [vmem:[%s587 + $0x350] sm:$0xff]
        %v1599 = vld [vmem:[%s587 + $0x358] sm:$0xff]
        %v1600 = vld [vmem:[%s587 + $0x360] sm:$0xff]
        %v1601 = vld [vmem:[%s587 + $0x368] sm:$0xff]
        %v1602 = vld [vmem:[%s587 + $0x370] sm:$0xff]
        %v1603 = vld [vmem:[%s587 + $0x378] sm:$0xff]
        %v1604 = vld [vmem:[%s587 + $0x380] sm:$0xff]
        %v1605 = vld [vmem:[%s587 + $0x388] sm:$0xff]
        %v1606 = vld [vmem:[%s587 + $0x390] sm:$0xff]
        %v1607 = vld [vmem:[%s587 + $0x398] sm:$0xff]
        %v1608 = vld [vmem:[%s587 + $0x3a0] sm:$0xff]
        %v1609 = vld [vmem:[%s587 + $0x3a8] sm:$0xff]
        %v1610 = vld [vmem:[%s587 + $0x3b0] sm:$0xff]
        %v1611 = vld [vmem:[%s587 + $0x3b8] sm:$0xff]
        %v1612 = vld [vmem:[%s587 + $0x3c0] sm:$0xff]
        %v1613 = vld [vmem:[%s587 + $0x3c8] sm:$0xff]
        %v1614 = vld [vmem:[%s587 + $0x3d0] sm:$0xff]
        %v1615 = vld [vmem:[%s587 + $0x3d8] sm:$0xff]
        %v1616 = vld [vmem:[%s587 + $0x3e0] sm:$0xff]
        %v1617 = vld [vmem:[%s587 + $0x3e8] sm:$0xff]
        %v1618 = vld [vmem:[%s587 + $0x3f0] sm:$0xff]
        %v1619 = vld [vmem:[%s587 + $0x3f8] sm:$0xff]
        %s1620 = scalar_lea.vmem %s7, %s33
        %v1621 = vld [vmem:[%s1620] sm:$0x1]
        %v1623 = vlaneseq
        %v1624 = vshrl.u32 %v1623, 7
        %v1625 = vsub.s32 0, %v1624
        %v1626 = vrot.slane %v1621, %v1625
        %v1630 = vcombine.high %v1490, %v1490
        %v1632 = vunpack.c.l.s4 1983009808
        %v1633 = vunpack.c.0.s8 %v1632
        %v1634 = vlaneseq
        %v1635 = vshrl.u32 %v1634, 7
        %v1636 = vsub.s32 %v1633, %v1635
        %v1637 = vrot.slane %v1490, %v1636
        %v1639 = vunpack.c.l.s4 1983009808
        %v1640 = vunpack.c.0.s8 %v1639
        %v1641 = vlaneseq
        %v1642 = vshrl.u32 %v1641, 7
        %v1643 = vsub.s32 %v1640, %v1642
        %v1644 = vrot.slane %v1630, %v1643
        %v1645 = vcombine.high %v1637, %v1637
        %v1646 = vcombine.high %v1644, %v1644
        %v1647 = vcombine.high %v1491, %v1491
        %v1649 = vunpack.c.l.s4 1983009808
        %v1650 = vunpack.c.0.s8 %v1649
        %v1651 = vlaneseq
        %v1652 = vshrl.u32 %v1651, 7
        %v1653 = vsub.s32 %v1650, %v1652
        %v1654 = vrot.slane %v1491, %v1653
        %v1656 = vunpack.c.l.s4 1983009808
        %v1657 = vunpack.c.0.s8 %v1656
        %v1658 = vlaneseq
        %v1659 = vshrl.u32 %v1658, 7
        %v1660 = vsub.s32 %v1657, %v1659
        %v1661 = vrot.slane %v1647, %v1660
        %v1662 = vcombine.high %v1654, %v1654
        %v1663 = vcombine.high %v1661, %v1661
        %1672 = vmatprep.subr.mxu0 0.0
        %1673 = vmatpush1.msra.mxu0 %v1492
        %1674 = vmatprep.subr.mxu0 0.0
        %1675 = vmatpush1.msra.mxu0 %v1493
        %1676 = vmatprep.subr.mxu0 0.0
        %1677 = vmatpush1.msra.mxu0 %v1494
        %1678 = vmatprep.subr.mxu0 0.0
        %1679 = vmatpush1.msra.mxu0 %v1495
        %1680 = vmatprep.subr.mxu0 0.0
        %1681 = vmatpush1.msra.mxu0 %v1496
        %1682 = vmatprep.subr.mxu0 0.0
        %1683 = vmatpush1.msra.mxu0 %v1497
        %1684 = vmatprep.subr.mxu0 0.0
        %1685 = vmatpush1.msra.mxu0 %v1498
        %1686 = vmatprep.subr.mxu0 0.0
        %1687 = vmatpush1.msra.mxu0 %v1499
        %1688 = vmatprep.subr.mxu0 0.0
        %1689 = vmatpush1.msra.mxu0 %v1500
        %1690 = vmatprep.subr.mxu0 0.0
        %1691 = vmatpush1.msra.mxu0 %v1501
        %1692 = vmatprep.subr.mxu0 0.0
        %1693 = vmatpush1.msra.mxu0 %v1502
        %1694 = vmatprep.subr.mxu0 0.0
        %1695 = vmatpush1.msra.mxu0 %v1503
        %1696 = vmatprep.subr.mxu0 0.0
        %1697 = vmatpush1.msra.mxu0 %v1504
        %1698 = vmatprep.subr.mxu0 0.0
        %1699 = vmatpush1.msra.mxu0 %v1505
        %1700 = vmatprep.subr.mxu0 0.0
        %1701 = vmatpush1.msra.mxu0 %v1506
        %1702 = vmatprep.subr.mxu0 0.0
        %1703 = vmatpush1.msra.mxu0 %v1507
        %1704 = vmatprep.subr.mxu0 0.0
        %1705 = vmatpush1.msra.mxu0 %v1508
        %1706 = vmatprep.subr.mxu0 0.0
        %1707 = vmatpush1.msra.mxu0 %v1509
        %1708 = vmatprep.subr.mxu0 0.0
        %1709 = vmatpush1.msra.mxu0 %v1510
        %1710 = vmatprep.subr.mxu0 0.0
        %1711 = vmatpush1.msra.mxu0 %v1511
        %1712 = vmatprep.subr.mxu0 0.0
        %1713 = vmatpush1.msra.mxu0 %v1512
        %1714 = vmatprep.subr.mxu0 0.0
        %1715 = vmatpush1.msra.mxu0 %v1513
        %1716 = vmatprep.subr.mxu0 0.0
        %1717 = vmatpush1.msra.mxu0 %v1514
        %1718 = vmatprep.subr.mxu0 0.0
        %1719 = vmatpush1.msra.mxu0 %v1515
        %1720 = vmatprep.subr.mxu0 0.0
        %1721 = vmatpush1.msra.mxu0 %v1516
        %1722 = vmatprep.subr.mxu0 0.0
        %1723 = vmatpush1.msra.mxu0 %v1517
        %1724 = vmatprep.subr.mxu0 0.0
        %1725 = vmatpush1.msra.mxu0 %v1518
        %1726 = vmatprep.subr.mxu0 0.0
        %1727 = vmatpush1.msra.mxu0 %v1519
        %1728 = vmatprep.subr.mxu0 0.0
        %1729 = vmatpush1.msra.mxu0 %v1520
        %1730 = vmatprep.subr.mxu0 0.0
        %1731 = vmatpush1.msra.mxu0 %v1521
        %1732 = vmatprep.subr.mxu0 0.0
        %1733 = vmatpush1.msra.mxu0 %v1522
        %1734 = vmatprep.subr.mxu0 0.0
        %1735 = vmatpush1.msra.mxu0 %v1523
        %1736 = vmatprep.mubr.f32.mxu0 %v1645
        %1737 = vmatmul.mubr.f32.gmra.mrb[0].mxu0 %v1637
        %v1738 = vpop.f32.mrb[0].mxu0
        %v1739 = vadd.f32 %v1626, %v1738
        %v1740 = vpop.f32.mrb[0].mxu0
        %1741 = vdwg.mxu0
        %1742 = vmatprep.subr.mxu0 0.0
        %1743 = vmatpush1.msra.mxu0 %v1524
        %1744 = vmatprep.subr.mxu0 0.0
        %1745 = vmatpush1.msra.mxu0 %v1525
        %1746 = vmatprep.subr.mxu0 0.0
        %1747 = vmatpush1.msra.mxu0 %v1526
        %1748 = vmatprep.subr.mxu0 0.0
        %1749 = vmatpush1.msra.mxu0 %v1527
        %1750 = vmatprep.subr.mxu0 0.0
        %1751 = vmatpush1.msra.mxu0 %v1528
        %1752 = vmatprep.subr.mxu0 0.0
        %1753 = vmatpush1.msra.mxu0 %v1529
        %1754 = vmatprep.subr.mxu0 0.0
        %1755 = vmatpush1.msra.mxu0 %v1530
        %1756 = vmatprep.subr.mxu0 0.0
        %1757 = vmatpush1.msra.mxu0 %v1531
        %1758 = vmatprep.subr.mxu0 0.0
        %1759 = vmatpush1.msra.mxu0 %v1532
        %1760 = vmatprep.subr.mxu0 0.0
        %1761 = vmatpush1.msra.mxu0 %v1533
        %1762 = vmatprep.subr.mxu0 0.0
        %1763 = vmatpush1.msra.mxu0 %v1534
        %1764 = vmatprep.subr.mxu0 0.0
        %1765 = vmatpush1.msra.mxu0 %v1535
        %1766 = vmatprep.subr.mxu0 0.0
        %1767 = vmatpush1.msra.mxu0 %v1536
        %1768 = vmatprep.subr.mxu0 0.0
        %1769 = vmatpush1.msra.mxu0 %v1537
        %1770 = vmatprep.subr.mxu0 0.0
        %1771 = vmatpush1.msra.mxu0 %v1538
        %1772 = vmatprep.subr.mxu0 0.0
        %1773 = vmatpush1.msra.mxu0 %v1539
        %1774 = vmatprep.subr.mxu0 0.0
        %1775 = vmatpush1.msra.mxu0 %v1540
        %1776 = vmatprep.subr.mxu0 0.0
        %1777 = vmatpush1.msra.mxu0 %v1541
        %1778 = vmatprep.subr.mxu0 0.0
        %1779 = vmatpush1.msra.mxu0 %v1542
        %1780 = vmatprep.subr.mxu0 0.0
        %1781 = vmatpush1.msra.mxu0 %v1543
        %1782 = vmatprep.subr.mxu0 0.0
        %1783 = vmatpush1.msra.mxu0 %v1544
        %1784 = vmatprep.subr.mxu0 0.0
        %1785 = vmatpush1.msra.mxu0 %v1545
        %1786 = vmatprep.subr.mxu0 0.0
        %1787 = vmatpush1.msra.mxu0 %v1546
        %1788 = vmatprep.subr.mxu0 0.0
        %1789 = vmatpush1.msra.mxu0 %v1547
        %1790 = vmatprep.subr.mxu0 0.0
        %1791 = vmatpush1.msra.mxu0 %v1548
        %1792 = vmatprep.subr.mxu0 0.0
        %1793 = vmatpush1.msra.mxu0 %v1549
        %1794 = vmatprep.subr.mxu0 0.0
        %1795 = vmatpush1.msra.mxu0 %v1550
        %1796 = vmatprep.subr.mxu0 0.0
        %1797 = vmatpush1.msra.mxu0 %v1551
        %1798 = vmatprep.subr.mxu0 0.0
        %1799 = vmatpush1.msra.mxu0 %v1552
        %1800 = vmatprep.subr.mxu0 0.0
        %1801 = vmatpush1.msra.mxu0 %v1553
        %1802 = vmatprep.subr.mxu0 0.0
        %1803 = vmatpush1.msra.mxu0 %v1554
        %1804 = vmatprep.subr.mxu0 0.0
        %1805 = vmatpush1.msra.mxu0 %v1555
        %1806 = vmatprep.mubr.f32.mxu0 %v1646
        %1807 = vmatmul.mubr.f32.gmra.mrb[0].mxu0 %v1644
        %v1808 = vpop.f32.mrb[0].mxu0
        %v1809 = vadd.f32 %v1739, %v1808
        %v1810 = vpop.f32.mrb[0].mxu0
        %1811 = vdwg.mxu0
        %1812 = vmatprep.subr.mxu0 0.0
        %1813 = vmatpush1.msra.mxu0 %v1556
        %1814 = vmatprep.subr.mxu0 0.0
        %1815 = vmatpush1.msra.mxu0 %v1557
        %1816 = vmatprep.subr.mxu0 0.0
        %1817 = vmatpush1.msra.mxu0 %v1558
        %1818 = vmatprep.subr.mxu0 0.0
        %1819 = vmatpush1.msra.mxu0 %v1559
        %1820 = vmatprep.subr.mxu0 0.0
        %1821 = vmatpush1.msra.mxu0 %v1560
        %1822 = vmatprep.subr.mxu0 0.0
        %1823 = vmatpush1.msra.mxu0 %v1561
        %1824 = vmatprep.subr.mxu0 0.0
        %1825 = vmatpush1.msra.mxu0 %v1562
        %1826 = vmatprep.subr.mxu0 0.0
        %1827 = vmatpush1.msra.mxu0 %v1563
        %1828 = vmatprep.subr.mxu0 0.0
        %1829 = vmatpush1.msra.mxu0 %v1564
        %1830 = vmatprep.subr.mxu0 0.0
        %1831 = vmatpush1.msra.mxu0 %v1565
        %1832 = vmatprep.subr.mxu0 0.0
        %1833 = vmatpush1.msra.mxu0 %v1566
        %1834 = vmatprep.subr.mxu0 0.0
        %1835 = vmatpush1.msra.mxu0 %v1567
        %1836 = vmatprep.subr.mxu0 0.0
        %1837 = vmatpush1.msra.mxu0 %v1568
        %1838 = vmatprep.subr.mxu0 0.0
        %1839 = vmatpush1.msra.mxu0 %v1569
        %1840 = vmatprep.subr.mxu0 0.0
        %1841 = vmatpush1.msra.mxu0 %v1570
        %1842 = vmatprep.subr.mxu0 0.0
        %1843 = vmatpush1.msra.mxu0 %v1571
        %1844 = vmatprep.subr.mxu0 0.0
        %1845 = vmatpush1.msra.mxu0 %v1572
        %1846 = vmatprep.subr.mxu0 0.0
        %1847 = vmatpush1.msra.mxu0 %v1573
        %1848 = vmatprep.subr.mxu0 0.0
        %1849 = vmatpush1.msra.mxu0 %v1574
        %1850 = vmatprep.subr.mxu0 0.0
        %1851 = vmatpush1.msra.mxu0 %v1575
        %1852 = vmatprep.subr.mxu0 0.0
        %1853 = vmatpush1.msra.mxu0 %v1576
        %1854 = vmatprep.subr.mxu0 0.0
        %1855 = vmatpush1.msra.mxu0 %v1577
        %1856 = vmatprep.subr.mxu0 0.0
        %1857 = vmatpush1.msra.mxu0 %v1578
        %1858 = vmatprep.subr.mxu0 0.0
        %1859 = vmatpush1.msra.mxu0 %v1579
        %1860 = vmatprep.subr.mxu0 0.0
        %1861 = vmatpush1.msra.mxu0 %v1580
        %1862 = vmatprep.subr.mxu0 0.0
        %1863 = vmatpush1.msra.mxu0 %v1581
        %1864 = vmatprep.subr.mxu0 0.0
        %1865 = vmatpush1.msra.mxu0 %v1582
        %1866 = vmatprep.subr.mxu0 0.0
        %1867 = vmatpush1.msra.mxu0 %v1583
        %1868 = vmatprep.subr.mxu0 0.0
        %1869 = vmatpush1.msra.mxu0 %v1584
        %1870 = vmatprep.subr.mxu0 0.0
        %1871 = vmatpush1.msra.mxu0 %v1585
        %1872 = vmatprep.subr.mxu0 0.0
        %1873 = vmatpush1.msra.mxu0 %v1586
        %1874 = vmatprep.subr.mxu0 0.0
        %1875 = vmatpush1.msra.mxu0 %v1587
        %1876 = vmatprep.mubr.f32.mxu0 %v1662
        %1877 = vmatmul.mubr.f32.gmra.mrb[0].mxu0 %v1654
        %v1878 = vpop.f32.mrb[0].mxu0
        %v1879 = vadd.f32 %v1809, %v1878
        %v1880 = vpop.f32.mrb[0].mxu0
        %1881 = vdwg.mxu0
        %1882 = vmatprep.subr.mxu0 0.0
        %1883 = vmatpush1.msra.mxu0 %v1588
        %1884 = vmatprep.subr.mxu0 0.0
        %1885 = vmatpush1.msra.mxu0 %v1589
        %1886 = vmatprep.subr.mxu0 0.0
        %1887 = vmatpush1.msra.mxu0 %v1590
        %1888 = vmatprep.subr.mxu0 0.0
        %1889 = vmatpush1.msra.mxu0 %v1591
        %1890 = vmatprep.subr.mxu0 0.0
        %1891 = vmatpush1.msra.mxu0 %v1592
        %1892 = vmatprep.subr.mxu0 0.0
        %1893 = vmatpush1.msra.mxu0 %v1593
        %1894 = vmatprep.subr.mxu0 0.0
        %1895 = vmatpush1.msra.mxu0 %v1594
        %1896 = vmatprep.subr.mxu0 0.0
        %1897 = vmatpush1.msra.mxu0 %v1595
        %1898 = vmatprep.subr.mxu0 0.0
        %1899 = vmatpush1.msra.mxu0 %v1596
        %1900 = vmatprep.subr.mxu0 0.0
        %1901 = vmatpush1.msra.mxu0 %v1597
        %1902 = vmatprep.subr.mxu0 0.0
        %1903 = vmatpush1.msra.mxu0 %v1598
        %1904 = vmatprep.subr.mxu0 0.0
        %1905 = vmatpush1.msra.mxu0 %v1599
        %1906 = vmatprep.subr.mxu0 0.0
        %1907 = vmatpush1.msra.mxu0 %v1600
        %1908 = vmatprep.subr.mxu0 0.0
        %1909 = vmatpush1.msra.mxu0 %v1601
        %1910 = vmatprep.subr.mxu0 0.0
        %1911 = vmatpush1.msra.mxu0 %v1602
        %1912 = vmatprep.subr.mxu0 0.0
        %1913 = vmatpush1.msra.mxu0 %v1603
        %1914 = vmatprep.subr.mxu0 0.0
        %1915 = vmatpush1.msra.mxu0 %v1604
        %1916 = vmatprep.subr.mxu0 0.0
        %1917 = vmatpush1.msra.mxu0 %v1605
        %1918 = vmatprep.subr.mxu0 0.0
        %1919 = vmatpush1.msra.mxu0 %v1606
        %1920 = vmatprep.subr.mxu0 0.0
        %1921 = vmatpush1.msra.mxu0 %v1607
        %1922 = vmatprep.subr.mxu0 0.0
        %1923 = vmatpush1.msra.mxu0 %v1608
        %1924 = vmatprep.subr.mxu0 0.0
        %1925 = vmatpush1.msra.mxu0 %v1609
        %1926 = vmatprep.subr.mxu0 0.0
        %1927 = vmatpush1.msra.mxu0 %v1610
        %1928 = vmatprep.subr.mxu0 0.0
        %1929 = vmatpush1.msra.mxu0 %v1611
        %1930 = vmatprep.subr.mxu0 0.0
        %1931 = vmatpush1.msra.mxu0 %v1612
        %1932 = vmatprep.subr.mxu0 0.0
        %1933 = vmatpush1.msra.mxu0 %v1613
        %1934 = vmatprep.subr.mxu0 0.0
        %1935 = vmatpush1.msra.mxu0 %v1614
        %1936 = vmatprep.subr.mxu0 0.0
        %1937 = vmatpush1.msra.mxu0 %v1615
        %1938 = vmatprep.subr.mxu0 0.0
        %1939 = vmatpush1.msra.mxu0 %v1616
        %1940 = vmatprep.subr.mxu0 0.0
        %1941 = vmatpush1.msra.mxu0 %v1617
        %1942 = vmatprep.subr.mxu0 0.0
        %1943 = vmatpush1.msra.mxu0 %v1618
        %1944 = vmatprep.subr.mxu0 0.0
        %1945 = vmatpush1.msra.mxu0 %v1619
        %1946 = vmatprep.mubr.f32.mxu0 %v1663
        %1947 = vmatmul.mubr.f32.gmra.mrb[0].mxu0 %v1661
        %v1948 = vpop.f32.mrb[0].mxu0
        %v1949 = vadd.f32 %v1879, %v1948
        %v1950 = vpop.f32.mrb[0].mxu0
        %1951 = vdwg.mxu0
        %v1954 = vunpack.c.l.s4 1966171168
        %v1955 = vunpack.c.0.s8 %v1954
        %v1956 = vlaneseq
        %v1957 = vshrl.u32 %v1956, 7
        %v1958 = vsub.s32 %v1955, %v1957
        %v1959 = vrot.slane %v1949, %v1958
        %v1960 = vcombine.high %v1959, %v1959
        %v1962 = vunpack.c.l.s4 1966171168
        %v1963 = vunpack.c.0.s8 %v1962
        %v1964 = vlaneseq
        %v1965 = vshrl.u32 %v1964, 7
        %v1966 = vsub.s32 %v1963, %v1965
        %v1967 = vrot.slane %v1959, %v1966
        %v1969 = vunpack.c.l.s4 1966171168
        %v1970 = vunpack.c.0.s8 %v1969
        %v1971 = vlaneseq
        %v1972 = vshrl.u32 %v1971, 7
        %v1973 = vsub.s32 %v1970, %v1972
        %v1974 = vrot.slane %v1960, %v1973
        %v1977 = vlaneseq
        %v1978 = vshrl.u32 %v1977, 7
        %v1979 = vsub.s32 0, %v1978
        %v1980 = vrot.slane %v1967, %v1979
        %v1981 = vlaneseq
        %v1982 = vshrl.u32 %v1981, 7
        %v1983 = vsub.s32 0, %v1982
        %v1984 = vrot.slane %v1974, %v1983
        %1985 = vrot.lane.b32.xlu0 %v1980, 120
        %v1986 = vpop.permute.xlu0 %1985
        %1987 = vrot.lane.b32.xlu0 %v1984, 120
        %v1988 = vpop.permute.xlu0 %1987
        %1991 = vrot.lane.b32.xlu0 %v1980, 112
        %v1992 = vpop.permute.xlu0 %1991
        %1993 = vrot.lane.b32.xlu0 %v1984, 112
        %v1994 = vpop.permute.xlu0 %1993
        %1997 = vrot.lane.b32.xlu0 %v1980, 104
        %v1998 = vpop.permute.xlu0 %1997
        %1999 = vrot.lane.b32.xlu0 %v1984, 104
        %v2000 = vpop.permute.xlu0 %1999
        %2003 = vrot.lane.b32.xlu0 %v1980, 96
        %v2004 = vpop.permute.xlu0 %2003
        %2005 = vrot.lane.b32.xlu0 %v1984, 96
        %v2006 = vpop.permute.xlu0 %2005
        %2009 = vrot.lane.b32.xlu0 %v1980, 88
        %v2010 = vpop.permute.xlu0 %2009
        %2011 = vrot.lane.b32.xlu0 %v1984, 88
        %v2012 = vpop.permute.xlu0 %2011
        %2015 = vrot.lane.b32.xlu0 %v1980, 80
        %v2016 = vpop.permute.xlu0 %2015
        %2017 = vrot.lane.b32.xlu0 %v1984, 80
        %v2018 = vpop.permute.xlu0 %2017
        %2021 = vrot.lane.b32.xlu0 %v1980, 72
        %v2022 = vpop.permute.xlu0 %2021
        %2023 = vrot.lane.b32.xlu0 %v1984, 72
        %v2024 = vpop.permute.xlu0 %2023
        %vm2027 = vcmask 1040384
        %v2028 = vsel %vm2027, %v1967, %v1986
        %v2029 = vsel %vm2027, %v1974, %v1988
        %vm2030 = vcmask 1041408
        %v2031 = vsel %vm2030, %v2028, %v1992
        %v2032 = vsel %vm2030, %v2029, %v1994
        %vm2033 = vcmask 1042432
        %v2034 = vsel %vm2033, %v2031, %v1998
        %v2035 = vsel %vm2033, %v2032, %v2000
        %vm2036 = vcmask 1043456
        %v2037 = vsel %vm2036, %v2034, %v2004
        %v2038 = vsel %vm2036, %v2035, %v2006
        %vm2039 = vcmask 1044480
        %v2040 = vsel %vm2039, %v2037, %v2010
        %v2041 = vsel %vm2039, %v2038, %v2012
        %vm2042 = vcmask 1045504
        %v2043 = vsel %vm2042, %v2040, %v2016
        %v2044 = vsel %vm2042, %v2041, %v2018
        %vm2045 = vcmask 1046528
        %v2046 = vsel %vm2045, %v2043, %v2022
        %v2047 = vsel %vm2045, %v2044, %v2024
        %s2048 = smul.u32 %s33, 16
        %s2049 = scalar_lea.vmem [#allocation2], %s2048
        %v2050 = vld [vmem:[%s2049] sm:$0xff]
        %v2051 = vld [vmem:[%s2049 + $0x8] sm:$0xff]
        %2053 = vrot.lane.b32.xlu0 %v2050, 112
        %v2054 = vpop.permute.xlu0 %2053
        %vm2055 = vcmask 130048
        %v2056 = vsel %vm2055, %v2050, 0
        %v2058 = vsel %vm2055, %v2054, 0
        %2060 = vmatprep.subr.mxu0 0.0
        %2061 = vmatpush1.xpose.msra.mxu0 %v2058
        %2062 = vmatprep.subr.mxu0 0.0
        %2063 = vmatpush1.xpose.msra.mxu0 0.0
        %2064 = vmatprep.subr.mxu0 0.0
        %2065 = vmatpush1.xpose.msra.mxu0 0.0
        %2066 = vmatprep.subr.mxu0 0.0
        %2067 = vmatpush1.xpose.msra.mxu0 0.0
        %2068 = vmatprep.subr.mxu0 0.0
        %2069 = vmatpush1.xpose.msra.mxu0 0.0
        %2070 = vmatprep.subr.mxu0 0.0
        %2071 = vmatpush1.xpose.msra.mxu0 0.0
        %2072 = vmatprep.subr.mxu0 0.0
        %2073 = vmatpush1.xpose.msra.mxu0 0.0
        %2074 = vmatprep.subr.mxu0 0.0
        %2075 = vmatpush1.xpose.msra.mxu0 0.0
        %2076 = vmatprep.subr.mxu0 0.0
        %2077 = vmatpush1.xpose.msra.mxu0 0.0
        %2078 = vmatprep.subr.mxu0 0.0
        %2079 = vmatpush1.xpose.msra.mxu0 0.0
        %2080 = vmatprep.subr.mxu0 0.0
        %2081 = vmatpush1.xpose.msra.mxu0 0.0
        %2082 = vmatprep.subr.mxu0 0.0
        %2083 = vmatpush1.xpose.msra.mxu0 0.0
        %2084 = vmatprep.subr.mxu0 0.0
        %2085 = vmatpush1.xpose.msra.mxu0 0.0
        %2086 = vmatprep.subr.mxu0 0.0
        %2087 = vmatpush1.xpose.msra.mxu0 0.0
        %2088 = vmatprep.subr.mxu0 0.0
        %2089 = vmatpush1.xpose.msra.mxu0 0.0
        %2090 = vmatprep.subr.mxu0 0.0
        %2091 = vmatpush1.xpose.msra.mxu0 0.0
        %2092 = vmatprep.subr.mxu0 0.0
        %2093 = vmatpush1.xpose.msra.mxu0 0.0
        %2094 = vmatprep.subr.mxu0 0.0
        %2095 = vmatpush1.xpose.msra.mxu0 0.0
        %2096 = vmatprep.subr.mxu0 0.0
        %2097 = vmatpush1.xpose.msra.mxu0 0.0
        %2098 = vmatprep.subr.mxu0 0.0
        %2099 = vmatpush1.xpose.msra.mxu0 0.0
        %2100 = vmatprep.subr.mxu0 0.0
        %2101 = vmatpush1.xpose.msra.mxu0 0.0
        %2102 = vmatprep.subr.mxu0 0.0
        %2103 = vmatpush1.xpose.msra.mxu0 0.0
        %2104 = vmatprep.subr.mxu0 0.0
        %2105 = vmatpush1.xpose.msra.mxu0 0.0
        %2106 = vmatprep.subr.mxu0 0.0
        %2107 = vmatpush1.xpose.msra.mxu0 0.0
        %2108 = vmatprep.subr.mxu0 0.0
        %2109 = vmatpush1.xpose.msra.mxu0 0.0
        %2110 = vmatprep.subr.mxu0 0.0
        %2111 = vmatpush1.xpose.msra.mxu0 0.0
        %2112 = vmatprep.subr.mxu0 0.0
        %2113 = vmatpush1.xpose.msra.mxu0 0.0
        %2114 = vmatprep.subr.mxu0 0.0
        %2115 = vmatpush1.xpose.msra.mxu0 0.0
        %2116 = vmatprep.subr.mxu0 0.0
        %2117 = vmatpush1.xpose.msra.mxu0 0.0
        %2118 = vmatprep.subr.mxu0 0.0
        %2119 = vmatpush1.xpose.msra.mxu0 0.0
        %2120 = vmatprep.subr.mxu0 0.0
        %2121 = vmatpush1.xpose.msra.mxu0 0.0
        %2122 = vmatprep.subr.mxu0 0.0
        %2123 = vmatpush1.xpose.msra.mxu0 0.0
        %2124 = vmatprep.mubr.f32.mxu0 0.0
        %2125 = vmatmul.mubr.f32.gmra.mrb[0].mxu0 %v2056
        %v2126 = vpop.f32.mrb[0].mxu0
        %v2127 = vadd.f32 0.0, %v2126
        %v2128 = vpop.f32.mrb[0].mxu0
        %2129 = vdwg.mxu0
        %2131 = vrot.lane.b32.xlu0 %v2051, 112
        %v2132 = vpop.permute.xlu0 %2131
        %v2133 = vsel %vm2055, %v2051, 0
        %v2135 = vsel %vm2055, %v2132, 0
        %2137 = vmatprep.subr.mxu0 0.0
        %2138 = vmatpush1.xpose.msra.mxu0 %v2135
        %2139 = vmatprep.subr.mxu0 0.0
        %2140 = vmatpush1.xpose.msra.mxu0 0.0
        %2141 = vmatprep.subr.mxu0 0.0
        %2142 = vmatpush1.xpose.msra.mxu0 0.0
        %2143 = vmatprep.subr.mxu0 0.0
        %2144 = vmatpush1.xpose.msra.mxu0 0.0
        %2145 = vmatprep.subr.mxu0 0.0
        %2146 = vmatpush1.xpose.msra.mxu0 0.0
        %2147 = vmatprep.subr.mxu0 0.0
        %2148 = vmatpush1.xpose.msra.mxu0 0.0
        %2149 = vmatprep.subr.mxu0 0.0
        %2150 = vmatpush1.xpose.msra.mxu0 0.0
        %2151 = vmatprep.subr.mxu0 0.0
        %2152 = vmatpush1.xpose.msra.mxu0 0.0
        %2153 = vmatprep.subr.mxu0 0.0
        %2154 = vmatpush1.xpose.msra.mxu0 0.0
        %2155 = vmatprep.subr.mxu0 0.0
        %2156 = vmatpush1.xpose.msra.mxu0 0.0
        %2157 = vmatprep.subr.mxu0 0.0
        %2158 = vmatpush1.xpose.msra.mxu0 0.0
        %2159 = vmatprep.subr.mxu0 0.0
        %2160 = vmatpush1.xpose.msra.mxu0 0.0
        %2161 = vmatprep.subr.mxu0 0.0
        %2162 = vmatpush1.xpose.msra.mxu0 0.0
        %2163 = vmatprep.subr.mxu0 0.0
        %2164 = vmatpush1.xpose.msra.mxu0 0.0
        %2165 = vmatprep.subr.mxu0 0.0
        %2166 = vmatpush1.xpose.msra.mxu0 0.0
        %2167 = vmatprep.subr.mxu0 0.0
        %2168 = vmatpush1.xpose.msra.mxu0 0.0
        %2169 = vmatprep.subr.mxu0 0.0
        %2170 = vmatpush1.xpose.msra.mxu0 0.0
        %2171 = vmatprep.subr.mxu0 0.0
        %2172 = vmatpush1.xpose.msra.mxu0 0.0
        %2173 = vmatprep.subr.mxu0 0.0
        %2174 = vmatpush1.xpose.msra.mxu0 0.0
        %2175 = vmatprep.subr.mxu0 0.0
        %2176 = vmatpush1.xpose.msra.mxu0 0.0
        %2177 = vmatprep.subr.mxu0 0.0
        %2178 = vmatpush1.xpose.msra.mxu0 0.0
        %2179 = vmatprep.subr.mxu0 0.0
        %2180 = vmatpush1.xpose.msra.mxu0 0.0
        %2181 = vmatprep.subr.mxu0 0.0
        %2182 = vmatpush1.xpose.msra.mxu0 0.0
        %2183 = vmatprep.subr.mxu0 0.0
        %2184 = vmatpush1.xpose.msra.mxu0 0.0
        %2185 = vmatprep.subr.mxu0 0.0
        %2186 = vmatpush1.xpose.msra.mxu0 0.0
        %2187 = vmatprep.subr.mxu0 0.0
        %2188 = vmatpush1.xpose.msra.mxu0 0.0
        %2189 = vmatprep.subr.mxu0 0.0
        %2190 = vmatpush1.xpose.msra.mxu0 0.0
        %2191 = vmatprep.subr.mxu0 0.0
        %2192 = vmatpush1.xpose.msra.mxu0 0.0
        %2193 = vmatprep.subr.mxu0 0.0
        %2194 = vmatpush1.xpose.msra.mxu0 0.0
        %2195 = vmatprep.subr.mxu0 0.0
        %2196 = vmatpush1.xpose.msra.mxu0 0.0
        %2197 = vmatprep.subr.mxu0 0.0
        %2198 = vmatpush1.xpose.msra.mxu0 0.0
        %2199 = vmatprep.subr.mxu0 0.0
        %2200 = vmatpush1.xpose.msra.mxu0 0.0
        %2201 = vmatprep.mubr.f32.mxu0 0.0
        %2202 = vmatmul.mubr.f32.gmra.mrb[0].mxu0 %v2133
        %v2203 = vpop.f32.mrb[0].mxu0
        %v2204 = vadd.f32 0.0, %v2203
        %v2205 = vpop.f32.mrb[0].mxu0
        %2206 = vdwg.mxu0
        %v2207 = vrcp.pop 4.0
        %v2208 = vmul.f32 %v2127, %v2207
        %v2209 = vmul.f32 %v2204, %v2207
        %vm2210 = vcmask 64512
        %v2211 = vsel %vm2210, %v2208, -inf
        %2212 = vmax.xlane.f32.xlu0 %v2211
        %v2213 = vpop.xlane.xlu0 %2212
        %v2214 = vsel %vm2210, %v2209, -inf
        %2215 = vmax.xlane.f32.xlu0 %v2214
        %v2216 = vpop.xlane.xlu0 %2215
        %v2217 = vsub.f32 %v2208, %v2213
        %v2218 = vsub.f32 %v2209, %v2216
        %v2219 = vmul.f32 %v2217, 1.442695
        %v2220 = vpow.pop %v2219
        %v2221 = vmul.f32 %v2218, 1.442695
        %v2222 = vpow.pop %v2221
        %v2223 = vsel %vm2210, %v2220, 0.0
        %2224 = vadd.xlane.f32.xlu0 %v2223
        %v2225 = vpop.xlane.xlu0 %2224
        %v2226 = vsel %vm2210, %v2222, 0.0
        %2227 = vadd.xlane.f32.xlu0 %v2226
        %v2228 = vpop.xlane.xlu0 %2227
        %v2229 = vrcp.pop %v2225
        %v2230 = vmul.f32 %v2220, %v2229
        %v2231 = vrcp.pop %v2228
        %v2232 = vmul.f32 %v2222, %v2231
        %v2233 = vadd.f32 %v2230, %v2046
        %v2234 = vadd.f32 %v2232, %v2047
        %2235 = vrot.lane.b32.xlu0 %v2050, 96
        %v2236 = vpop.permute.xlu0 %2235
        %v2239 = vsel %vm2210, %v2233, 0
        %2241 = vmatprep.subr.mxu0 0.0
        %2242 = vmatpush1.msra.mxu0 %v2236
        %2243 = vmatprep.subr.mxu0 0.0
        %2244 = vmatpush1.msra.mxu0 0.0
        %2245 = vmatprep.subr.mxu0 0.0
        %2246 = vmatpush1.msra.mxu0 0.0
        %2247 = vmatprep.subr.mxu0 0.0
        %2248 = vmatpush1.msra.mxu0 0.0
        %2249 = vmatprep.subr.mxu0 0.0
        %2250 = vmatpush1.msra.mxu0 0.0
        %2251 = vmatprep.subr.mxu0 0.0
        %2252 = vmatpush1.msra.mxu0 0.0
        %2253 = vmatprep.subr.mxu0 0.0
        %2254 = vmatpush1.msra.mxu0 0.0
        %2255 = vmatprep.subr.mxu0 0.0
        %2256 = vmatpush1.msra.mxu0 0.0
        %2257 = vmatprep.subr.mxu0 0.0
        %2258 = vmatpush1.msra.mxu0 0.0
        %2259 = vmatprep.subr.mxu0 0.0
        %2260 = vmatpush1.msra.mxu0 0.0
        %2261 = vmatprep.subr.mxu0 0.0
        %2262 = vmatpush1.msra.mxu0 0.0
        %2263 = vmatprep.subr.mxu0 0.0
        %2264 = vmatpush1.msra.mxu0 0.0
        %2265 = vmatprep.subr.mxu0 0.0
        %2266 = vmatpush1.msra.mxu0 0.0
        %2267 = vmatprep.subr.mxu0 0.0
        %2268 = vmatpush1.msra.mxu0 0.0
        %2269 = vmatprep.subr.mxu0 0.0
        %2270 = vmatpush1.msra.mxu0 0.0
        %2271 = vmatprep.subr.mxu0 0.0
        %2272 = vmatpush1.msra.mxu0 0.0
        %2273 = vmatprep.subr.mxu0 0.0
        %2274 = vmatpush1.msra.mxu0 0.0
        %2275 = vmatprep.subr.mxu0 0.0
        %2276 = vmatpush1.msra.mxu0 0.0
        %2277 = vmatprep.subr.mxu0 0.0
        %2278 = vmatpush1.msra.mxu0 0.0
        %2279 = vmatprep.subr.mxu0 0.0
        %2280 = vmatpush1.msra.mxu0 0.0
        %2281 = vmatprep.subr.mxu0 0.0
        %2282 = vmatpush1.msra.mxu0 0.0
        %2283 = vmatprep.subr.mxu0 0.0
        %2284 = vmatpush1.msra.mxu0 0.0
        %2285 = vmatprep.subr.mxu0 0.0
        %2286 = vmatpush1.msra.mxu0 0.0
        %2287 = vmatprep.subr.mxu0 0.0
        %2288 = vmatpush1.msra.mxu0 0.0
        %2289 = vmatprep.subr.mxu0 0.0
        %2290 = vmatpush1.msra.mxu0 0.0
        %2291 = vmatprep.subr.mxu0 0.0
        %2292 = vmatpush1.msra.mxu0 0.0
        %2293 = vmatprep.subr.mxu0 0.0
        %2294 = vmatpush1.msra.mxu0 0.0
        %2295 = vmatprep.subr.mxu0 0.0
        %2296 = vmatpush1.msra.mxu0 0.0
        %2297 = vmatprep.subr.mxu0 0.0
        %2298 = vmatpush1.msra.mxu0 0.0
        %2299 = vmatprep.subr.mxu0 0.0
        %2300 = vmatpush1.msra.mxu0 0.0
        %2301 = vmatprep.subr.mxu0 0.0
        %2302 = vmatpush1.msra.mxu0 0.0
        %2303 = vmatprep.subr.mxu0 0.0
        %2304 = vmatpush1.msra.mxu0 0.0
        %2305 = vmatprep.mubr.f32.mxu0 0.0
        %2306 = vmatmul.mubr.f32.gmra.mrb[0].mxu0 %v2239
        %v2307 = vpop.f32.mrb[0].mxu0
        %v2308 = vadd.f32 0.0, %v2307
        %v2309 = vpop.f32.mrb[0].mxu0
        %2310 = vdwg.mxu0
        %2311 = vrot.lane.b32.xlu0 %v2051, 96
        %v2312 = vpop.permute.xlu0 %2311
        %v2315 = vsel %vm2210, %v2234, 0
        %2317 = vmatprep.subr.mxu0 0.0
        %2318 = vmatpush1.msra.mxu0 %v2312
        %2319 = vmatprep.subr.mxu0 0.0
        %2320 = vmatpush1.msra.mxu0 0.0
        %2321 = vmatprep.subr.mxu0 0.0
        %2322 = vmatpush1.msra.mxu0 0.0
        %2323 = vmatprep.subr.mxu0 0.0
        %2324 = vmatpush1.msra.mxu0 0.0
        %2325 = vmatprep.subr.mxu0 0.0
        %2326 = vmatpush1.msra.mxu0 0.0
        %2327 = vmatprep.subr.mxu0 0.0
        %2328 = vmatpush1.msra.mxu0 0.0
        %2329 = vmatprep.subr.mxu0 0.0
        %2330 = vmatpush1.msra.mxu0 0.0
        %2331 = vmatprep.subr.mxu0 0.0
        %2332 = vmatpush1.msra.mxu0 0.0
        %2333 = vmatprep.subr.mxu0 0.0
        %2334 = vmatpush1.msra.mxu0 0.0
        %2335 = vmatprep.subr.mxu0 0.0
        %2336 = vmatpush1.msra.mxu0 0.0
        %2337 = vmatprep.subr.mxu0 0.0
        %2338 = vmatpush1.msra.mxu0 0.0
        %2339 = vmatprep.subr.mxu0 0.0
        %2340 = vmatpush1.msra.mxu0 0.0
        %2341 = vmatprep.subr.mxu0 0.0
        %2342 = vmatpush1.msra.mxu0 0.0
        %2343 = vmatprep.subr.mxu0 0.0
        %2344 = vmatpush1.msra.mxu0 0.0
        %2345 = vmatprep.subr.mxu0 0.0
        %2346 = vmatpush1.msra.mxu0 0.0
        %2347 = vmatprep.subr.mxu0 0.0
        %2348 = vmatpush1.msra.mxu0 0.0
        %2349 = vmatprep.subr.mxu0 0.0
        %2350 = vmatpush1.msra.mxu0 0.0
        %2351 = vmatprep.subr.mxu0 0.0
        %2352 = vmatpush1.msra.mxu0 0.0
        %2353 = vmatprep.subr.mxu0 0.0
        %2354 = vmatpush1.msra.mxu0 0.0
        %2355 = vmatprep.subr.mxu0 0.0
        %2356 = vmatpush1.msra.mxu0 0.0
        %2357 = vmatprep.subr.mxu0 0.0
        %2358 = vmatpush1.msra.mxu0 0.0
        %2359 = vmatprep.subr.mxu0 0.0
        %2360 = vmatpush1.msra.mxu0 0.0
        %2361 = vmatprep.subr.mxu0 0.0
        %2362 = vmatpush1.msra.mxu0 0.0
        %2363 = vmatprep.subr.mxu0 0.0
        %2364 = vmatpush1.msra.mxu0 0.0
        %2365 = vmatprep.subr.mxu0 0.0
        %2366 = vmatpush1.msra.mxu0 0.0
        %2367 = vmatprep.subr.mxu0 0.0
        %2368 = vmatpush1.msra.mxu0 0.0
        %2369 = vmatprep.subr.mxu0 0.0
        %2370 = vmatpush1.msra.mxu0 0.0
        %2371 = vmatprep.subr.mxu0 0.0
        %2372 = vmatpush1.msra.mxu0 0.0
        %2373 = vmatprep.subr.mxu0 0.0
        %2374 = vmatpush1.msra.mxu0 0.0
        %2375 = vmatprep.subr.mxu0 0.0
        %2376 = vmatpush1.msra.mxu0 0.0
        %2377 = vmatprep.subr.mxu0 0.0
        %2378 = vmatpush1.msra.mxu0 0.0
        %2379 = vmatprep.subr.mxu0 0.0
        %2380 = vmatpush1.msra.mxu0 0.0
        %2381 = vmatprep.mubr.f32.mxu0 0.0
        %2382 = vmatmul.mubr.f32.gmra.mrb[0].mxu0 %v2315
        %v2383 = vpop.f32.mrb[0].mxu0
        %v2384 = vadd.f32 0.0, %v2383
        %v2385 = vpop.f32.mrb[0].mxu0
        %2386 = vdwg.mxu0
        %v2387 = vld [vmem:[#allocation4] sm:$0xff]
        %v2388 = vld [vmem:[#allocation4 + $0x8] sm:$0xff]
        %s2389 = scalar_lea.vmem %s8, %s2048
        %v2390 = vld [vmem:[%s2389] sm:$0xff]
        %v2391 = vld [vmem:[%s2389 + $0x8] sm:$0xff]
        %v2393 = vsel %vm2055, %v2308, 0
        %v2396 = vsel %vm2055, %v2384, 0
        %2398 = vmatprep.subr.mxu0 0.0
        %2399 = vmatpush1.msra.mxu0 %v2390
        %2400 = vmatprep.subr.mxu0 0.0
        %2401 = vmatpush1.msra.mxu0 %v2391
        %2402 = vmatprep.subr.mxu0 0.0
        %2403 = vmatpush1.msra.mxu0 0.0
        %2404 = vmatprep.subr.mxu0 0.0
        %2405 = vmatpush1.msra.mxu0 0.0
        %2406 = vmatprep.subr.mxu0 0.0
        %2407 = vmatpush1.msra.mxu0 0.0
        %2408 = vmatprep.subr.mxu0 0.0
        %2409 = vmatpush1.msra.mxu0 0.0
        %2410 = vmatprep.subr.mxu0 0.0
        %2411 = vmatpush1.msra.mxu0 0.0
        %2412 = vmatprep.subr.mxu0 0.0
        %2413 = vmatpush1.msra.mxu0 0.0
        %2414 = vmatprep.subr.mxu0 0.0
        %2415 = vmatpush1.msra.mxu0 0.0
        %2416 = vmatprep.subr.mxu0 0.0
        %2417 = vmatpush1.msra.mxu0 0.0
        %2418 = vmatprep.subr.mxu0 0.0
        %2419 = vmatpush1.msra.mxu0 0.0
        %2420 = vmatprep.subr.mxu0 0.0
        %2421 = vmatpush1.msra.mxu0 0.0
        %2422 = vmatprep.subr.mxu0 0.0
        %2423 = vmatpush1.msra.mxu0 0.0
        %2424 = vmatprep.subr.mxu0 0.0
        %2425 = vmatpush1.msra.mxu0 0.0
        %2426 = vmatprep.subr.mxu0 0.0
        %2427 = vmatpush1.msra.mxu0 0.0
        %2428 = vmatprep.subr.mxu0 0.0
        %2429 = vmatpush1.msra.mxu0 0.0
        %2430 = vmatprep.subr.mxu0 0.0
        %2431 = vmatpush1.msra.mxu0 0.0
        %2432 = vmatprep.subr.mxu0 0.0
        %2433 = vmatpush1.msra.mxu0 0.0
        %2434 = vmatprep.subr.mxu0 0.0
        %2435 = vmatpush1.msra.mxu0 0.0
        %2436 = vmatprep.subr.mxu0 0.0
        %2437 = vmatpush1.msra.mxu0 0.0
        %2438 = vmatprep.subr.mxu0 0.0
        %2439 = vmatpush1.msra.mxu0 0.0
        %2440 = vmatprep.subr.mxu0 0.0
        %2441 = vmatpush1.msra.mxu0 0.0
        %2442 = vmatprep.subr.mxu0 0.0
        %2443 = vmatpush1.msra.mxu0 0.0
        %2444 = vmatprep.subr.mxu0 0.0
        %2445 = vmatpush1.msra.mxu0 0.0
        %2446 = vmatprep.subr.mxu0 0.0
        %2447 = vmatpush1.msra.mxu0 0.0
        %2448 = vmatprep.subr.mxu0 0.0
        %2449 = vmatpush1.msra.mxu0 0.0
        %2450 = vmatprep.subr.mxu0 0.0
        %2451 = vmatpush1.msra.mxu0 0.0
        %2452 = vmatprep.subr.mxu0 0.0
        %2453 = vmatpush1.msra.mxu0 0.0
        %2454 = vmatprep.subr.mxu0 0.0
        %2455 = vmatpush1.msra.mxu0 0.0
        %2456 = vmatprep.subr.mxu0 0.0
        %2457 = vmatpush1.msra.mxu0 0.0
        %2458 = vmatprep.subr.mxu0 0.0
        %2459 = vmatpush1.msra.mxu0 0.0
        %2460 = vmatprep.subr.mxu0 0.0
        %2461 = vmatpush1.msra.mxu0 0.0
        %2462 = vmatprep.mubr.f32.mxu0 0.0
        %2463 = vmatmul.mubr.f32.gmra.mrb[0].mxu0 %v2393
        %v2464 = vpop.f32.mrb[0].mxu0
        %v2465 = vadd.f32 0.0, %v2464
        %v2466 = vpop.f32.mrb[0].mxu0
        %2467 = vmatprep.mubr.f32.mxu0 0.0
        %2468 = vmatmul.mubr.f32.gmra.mrb[0].mxu0 %v2396
        %v2469 = vpop.f32.mrb[0].mxu0
        %v2470 = vadd.f32 0.0, %v2469
        %v2471 = vpop.f32.mrb[0].mxu0
        %2472 = vdwg.mxu0
        %v2473 = vadd.f32 %v2387, %v2465
        %v2474 = vadd.f32 %v2388, %v2470
        %vm2475 = vcmask 261120
        %2476 = vst.msk [vmem:[#allocation4] sm:$0xff] %vm2475, %v2473
        %2477 = vst.msk [vmem:[#allocation4 + $0x8] sm:$0xff] %vm2475, %v2474
        %v2480 = vrot.slane %v2046, 7
        %v2481 = vrot.slane %v2047, 7
        %v2484 = vsub.f32 %v2046, %v2480
        %v2485 = vsub.f32 %v2047, %v2481
        %v2486 = vand.u32 2147483647, %v2484
        %v2487 = vand.u32 2147483647, %v2485
        %v2490 = vrot.slane %v2486, 1
        %v2491 = vrot.slane %v2487, 1
        %vm2494 = vcmask 63488
        %v2495 = vsel %vm2494, %v2490, 0.0
        %v2496 = vsel %vm2494, %v2491, 0.0
        %v2497 = vadd.f32 %v2495, %v2496
        %2498 = vadd.xlane.f32.xlu0 %v2497
        %v2499 = vpop.xlane.xlu0 %2498
        %v2500 = vrot.slane %v2499, 4
        %v2501 = vadd.f32 %v2499, %v2500
        %v2502 = vrot.slane %v2501, 2
        %v2503 = vadd.f32 %v2501, %v2502
        %v2504 = vrot.slane %v2503, 1
        %v2505 = vadd.f32 %v2503, %v2504
        %s2506 = vtos %v2505
        %2507 = vrot.lane.b32.xlu0 %v2046, 1
        %v2508 = vpop.permute.xlu0 %2507
        %2509 = vrot.lane.b32.xlu0 %v2047, 1
        %v2510 = vpop.permute.xlu0 %2509
        %v2513 = vsub.f32 %v2046, %v2508
        %v2514 = vsub.f32 %v2047, %v2510
        %v2515 = vand.u32 2147483647, %v2513
        %v2516 = vand.u32 2147483647, %v2514
        %2519 = vrot.lane.b32.xlu0 %v2515, 127
        %v2520 = vpop.permute.xlu0 %2519
        %2521 = vrot.lane.b32.xlu0 %v2516, 127
        %v2522 = vpop.permute.xlu0 %2521
        %vm2525 = vcmask 56320
        %v2526 = vsel %vm2525, %v2520, 0.0
        %v2527 = vsel %vm2525, %v2522, 0.0
        %v2528 = vadd.f32 %v2526, %v2527
        %2529 = vadd.xlane.f32.xlu0 %v2528
        %v2530 = vpop.xlane.xlu0 %2529
        %v2531 = vrot.slane %v2530, 4
        %v2532 = vadd.f32 %v2530, %v2531
        %v2533 = vrot.slane %v2532, 2
        %v2534 = vadd.f32 %v2532, %v2533
        %v2535 = vrot.slane %v2534, 1
        %v2536 = vadd.f32 %v2534, %v2535
        %s2537 = vtos %v2536
        %s2538 = sld [smem:[#allocation7]]
        %s2539 = sadd.f32 %s2506, %s2537
        %s2540 = sadd.f32 %s2538, %s2539
        %s2541 = scalar_lea.smem [#allocation7], 0
        %2542 = sst [smem:[%s2541]] %s2540
        %p2543 = scmp.eq.s32.totalorder %s33, 1
        // Predicated region
        $region97: #{tpu_custom_call.1} parent=91 // pred_check
          %p2544 = pneg %p2543
        $region98: #{tpu_custom_call.1} parent=91 // pred_check_branch
          %2546 = sbr.rel (%p2544) target = $region100
        $region99: #{tpu_custom_call.1} parent=91 // pred_region
          %v2547 = vld [vmem:[%s0] sm:$0xff]
          %v2548 = vld [vmem:[%s0 + $0x8] sm:$0xff]
          %v2549 = vld [vmem:[#allocation4] sm:$0xff]
          %v2550 = vld [vmem:[#allocation4 + $0x8] sm:$0xff]
          %v2551 = vld [vmem:[%s9] sm:$0x1]
          %v2553 = vlaneseq
          %v2554 = vshrl.u32 %v2553, 7
          %v2555 = vsub.s32 0, %v2554
          %v2556 = vrot.slane %v2551, %v2555
          %v2558 = vadd.f32 %v2549, %v2556
          %v2559 = vadd.f32 %v2550, %v2556
          %v2560 = vadd.f32 %v2547, %v2558
          %v2561 = vadd.f32 %v2548, %v2559
          %v2562 = vsel %vm2475, %v2560, 0.0
          %2563 = vadd.xlane.f32.xlu0 %v2562
          %v2564 = vpop.xlane.xlu0 %2563
          %v2565 = vsel %vm2475, %v2561, 0.0
          %2566 = vadd.xlane.f32.xlu0 %v2565
          %v2567 = vpop.xlane.xlu0 %2566
          %v2568 = vrcp.pop 32.0
          %v2569 = vmul.f32 %v2564, %v2568
          %v2570 = vmul.f32 %v2567, %v2568
          %v2571 = vsub.f32 %v2560, %v2569
          %v2572 = vsub.f32 %v2561, %v2570
          %v2573 = vmul.f32 %v2571, %v2571
          %v2574 = vmul.f32 %v2572, %v2572
          %v2575 = vsel %vm2475, %v2573, 0.0
          %2576 = vadd.xlane.f32.xlu0 %v2575
          %v2577 = vpop.xlane.xlu0 %2576
          %v2578 = vsel %vm2475, %v2574, 0.0
          %2579 = vadd.xlane.f32.xlu0 %v2578
          %v2580 = vpop.xlane.xlu0 %2579
          %v2581 = vmul.f32 %v2577, %v2568
          %v2582 = vmul.f32 %v2580, %v2568
          %v2583 = vadd.f32 %v2581, 1e-05
          %v2584 = vadd.f32 %v2582, 1e-05
          %v2585 = vrsqrt.pop %v2583
          %v2586 = vrsqrt.pop %v2584
          %v2587 = vmul.f32 %v2571, %v2585
          %v2588 = vmul.f32 %v2572, %v2586
          %v2589 = vld [vmem:[%s10] sm:$0x1]
          %v2591 = vlaneseq
          %v2592 = vshrl.u32 %v2591, 7
          %v2593 = vsub.s32 0, %v2592
          %v2594 = vrot.slane %v2589, %v2593
          %v2596 = vmul.f32 %v2587, %v2594
          %v2597 = vmul.f32 %v2588, %v2594
          %v2598 = vld [vmem:[%s11] sm:$0x1]
          %v2600 = vlaneseq
          %v2601 = vshrl.u32 %v2600, 7
          %v2602 = vsub.s32 0, %v2601
          %v2603 = vrot.slane %v2598, %v2602
          %v2605 = vadd.f32 %v2596, %v2603
          %v2606 = vadd.f32 %v2597, %v2603
          %v2607 = vld [vmem:[%s12] sm:$0xff]
          %v2608 = vld [vmem:[%s12 + $0x8] sm:$0xff]
          %v2609 = vld [vmem:[%s12 + $0x10] sm:$0xff]
          %v2610 = vld [vmem:[%s12 + $0x18] sm:$0xff]
          %v2611 = vld [vmem:[%s13] sm:$0x1]
          %v2613 = vlaneseq
          %v2614 = vshrl.u32 %v2613, 7
          %v2615 = vsub.s32 0, %v2614
          %v2616 = vrot.slane %v2611, %v2615
          %v2619 = vsel %vm2475, %v2605, 0
          %v2622 = vsel %vm2475, %v2606, 0
          %2624 = vmatprep.subr.mxu0 0.0
          %2625 = vmatpush1.msra.mxu0 %v2607
          %2626 = vmatprep.subr.mxu0 0.0
          %2627 = vmatpush1.msra.mxu0 %v2608
          %2628 = vmatprep.subr.mxu0 0.0
          %2629 = vmatpush1.msra.mxu0 %v2609
          %2630 = vmatprep.subr.mxu0 0.0
          %2631 = vmatpush1.msra.mxu0 %v2610
          %2632 = vmatprep.subr.mxu0 0.0
          %2633 = vmatpush1.msra.mxu0 0.0
          %2634 = vmatprep.subr.mxu0 0.0
          %2635 = vmatpush1.msra.mxu0 0.0
          %2636 = vmatprep.subr.mxu0 0.0
          %2637 = vmatpush1.msra.mxu0 0.0
          %2638 = vmatprep.subr.mxu0 0.0
          %2639 = vmatpush1.msra.mxu0 0.0
          %2640 = vmatprep.subr.mxu0 0.0
          %2641 = vmatpush1.msra.mxu0 0.0
          %2642 = vmatprep.subr.mxu0 0.0
          %2643 = vmatpush1.msra.mxu0 0.0
          %2644 = vmatprep.subr.mxu0 0.0
          %2645 = vmatpush1.msra.mxu0 0.0
          %2646 = vmatprep.subr.mxu0 0.0
          %2647 = vmatpush1.msra.mxu0 0.0
          %2648 = vmatprep.subr.mxu0 0.0
          %2649 = vmatpush1.msra.mxu0 0.0
          %2650 = vmatprep.subr.mxu0 0.0
          %2651 = vmatpush1.msra.mxu0 0.0
          %2652 = vmatprep.subr.mxu0 0.0
          %2653 = vmatpush1.msra.mxu0 0.0
          %2654 = vmatprep.subr.mxu0 0.0
          %2655 = vmatpush1.msra.mxu0 0.0
          %2656 = vmatprep.subr.mxu0 0.0
          %2657 = vmatpush1.msra.mxu0 0.0
          %2658 = vmatprep.subr.mxu0 0.0
          %2659 = vmatpush1.msra.mxu0 0.0
          %2660 = vmatprep.subr.mxu0 0.0
          %2661 = vmatpush1.msra.mxu0 0.0
          %2662 = vmatprep.subr.mxu0 0.0
          %2663 = vmatpush1.msra.mxu0 0.0
          %2664 = vmatprep.subr.mxu0 0.0
          %2665 = vmatpush1.msra.mxu0 0.0
          %2666 = vmatprep.subr.mxu0 0.0
          %2667 = vmatpush1.msra.mxu0 0.0
          %2668 = vmatprep.subr.mxu0 0.0
          %2669 = vmatpush1.msra.mxu0 0.0
          %2670 = vmatprep.subr.mxu0 0.0
          %2671 = vmatpush1.msra.mxu0 0.0
          %2672 = vmatprep.subr.mxu0 0.0
          %2673 = vmatpush1.msra.mxu0 0.0
          %2674 = vmatprep.subr.mxu0 0.0
          %2675 = vmatpush1.msra.mxu0 0.0
          %2676 = vmatprep.subr.mxu0 0.0
          %2677 = vmatpush1.msra.mxu0 0.0
          %2678 = vmatprep.subr.mxu0 0.0
          %2679 = vmatpush1.msra.mxu0 0.0
          %2680 = vmatprep.subr.mxu0 0.0
          %2681 = vmatpush1.msra.mxu0 0.0
          %2682 = vmatprep.subr.mxu0 0.0
          %2683 = vmatpush1.msra.mxu0 0.0
          %2684 = vmatprep.subr.mxu0 0.0
          %2685 = vmatpush1.msra.mxu0 0.0
          %2686 = vmatprep.subr.mxu0 0.0
          %2687 = vmatpush1.msra.mxu0 0.0
          %2688 = vmatprep.mubr.f32.mxu0 0.0
          %2689 = vmatmul.mubr.f32.gmra.mrb[0].mxu0 %v2619
          %v2690 = vpop.f32.mrb[0].mxu0
          %v2691 = vadd.f32 %v2616, %v2690
          %v2692 = vpop.f32.mrb[0].mxu0
          %2693 = vmatprep.mubr.f32.mxu0 0.0
          %2694 = vmatmul.mubr.f32.gmra.mrb[0].mxu0 %v2622
          %v2695 = vpop.f32.mrb[0].mxu0
          %v2696 = vadd.f32 %v2616, %v2695
          %v2697 = vpop.f32.mrb[0].mxu0
          %2698 = vdwg.mxu0
          %v2699 = vmax.f32 %v2691, 0.0
          %v2700 = vmax.f32 %v2696, 0.0
          %v2701 = vld [vmem:[%s14] sm:$0xff]
          %v2702 = vld [vmem:[%s14 + $0x8] sm:$0xff]
          %v2703 = vld [vmem:[%s14 + $0x10] sm:$0xff]
          %v2704 = vld [vmem:[%s14 + $0x18] sm:$0xff]
          %v2705 = vld [vmem:[%s14 + $0x20] sm:$0xff]
          %v2706 = vld [vmem:[%s14 + $0x28] sm:$0xff]
          %v2707 = vld [vmem:[%s14 + $0x30] sm:$0xff]
          %v2708 = vld [vmem:[%s14 + $0x38] sm:$0xff]
          %v2709 = vld [vmem:[%s15] sm:$0x1]
          %v2711 = vlaneseq
          %v2712 = vshrl.u32 %v2711, 7
          %v2713 = vsub.s32 0, %v2712
          %v2714 = vrot.slane %v2709, %v2713
          %vm2716 = vcmask 523264
          %v2718 = vsel %vm2716, %v2699, 0
          %v2721 = vsel %vm2716, %v2700, 0
          %2723 = vmatprep.subr.mxu0 0.0
          %2724 = vmatpush1.msra.mxu0 %v2701
          %2725 = vmatprep.subr.mxu0 0.0
          %2726 = vmatpush1.msra.mxu0 %v2702
          %2727 = vmatprep.subr.mxu0 0.0
          %2728 = vmatpush1.msra.mxu0 %v2703
          %2729 = vmatprep.subr.mxu0 0.0
          %2730 = vmatpush1.msra.mxu0 %v2704
          %2731 = vmatprep.subr.mxu0 0.0
          %2732 = vmatpush1.msra.mxu0 %v2705
          %2733 = vmatprep.subr.mxu0 0.0
          %2734 = vmatpush1.msra.mxu0 %v2706
          %2735 = vmatprep.subr.mxu0 0.0
          %2736 = vmatpush1.msra.mxu0 %v2707
          %2737 = vmatprep.subr.mxu0 0.0
          %2738 = vmatpush1.msra.mxu0 %v2708
          %2739 = vmatprep.subr.mxu0 0.0
          %2740 = vmatpush1.msra.mxu0 0.0
          %2741 = vmatprep.subr.mxu0 0.0
          %2742 = vmatpush1.msra.mxu0 0.0
          %2743 = vmatprep.subr.mxu0 0.0
          %2744 = vmatpush1.msra.mxu0 0.0
          %2745 = vmatprep.subr.mxu0 0.0
          %2746 = vmatpush1.msra.mxu0 0.0
          %2747 = vmatprep.subr.mxu0 0.0
          %2748 = vmatpush1.msra.mxu0 0.0
          %2749 = vmatprep.subr.mxu0 0.0
          %2750 = vmatpush1.msra.mxu0 0.0
          %2751 = vmatprep.subr.mxu0 0.0
          %2752 = vmatpush1.msra.mxu0 0.0
          %2753 = vmatprep.subr.mxu0 0.0
          %2754 = vmatpush1.msra.mxu0 0.0
          %2755 = vmatprep.subr.mxu0 0.0
          %2756 = vmatpush1.msra.mxu0 0.0
          %2757 = vmatprep.subr.mxu0 0.0
          %2758 = vmatpush1.msra.mxu0 0.0
          %2759 = vmatprep.subr.mxu0 0.0
          %2760 = vmatpush1.msra.mxu0 0.0
          %2761 = vmatprep.subr.mxu0 0.0
          %2762 = vmatpush1.msra.mxu0 0.0
          %2763 = vmatprep.subr.mxu0 0.0
          %2764 = vmatpush1.msra.mxu0 0.0
          %2765 = vmatprep.subr.mxu0 0.0
          %2766 = vmatpush1.msra.mxu0 0.0
          %2767 = vmatprep.subr.mxu0 0.0
          %2768 = vmatpush1.msra.mxu0 0.0
          %2769 = vmatprep.subr.mxu0 0.0
          %2770 = vmatpush1.msra.mxu0 0.0
          %2771 = vmatprep.subr.mxu0 0.0
          %2772 = vmatpush1.msra.mxu0 0.0
          %2773 = vmatprep.subr.mxu0 0.0
          %2774 = vmatpush1.msra.mxu0 0.0
          %2775 = vmatprep.subr.mxu0 0.0
          %2776 = vmatpush1.msra.mxu0 0.0
          %2777 = vmatprep.subr.mxu0 0.0
          %2778 = vmatpush1.msra.mxu0 0.0
          %2779 = vmatprep.subr.mxu0 0.0
          %2780 = vmatpush1.msra.mxu0 0.0
          %2781 = vmatprep.subr.mxu0 0.0
          %2782 = vmatpush1.msra.mxu0 0.0
          %2783 = vmatprep.subr.mxu0 0.0
          %2784 = vmatpush1.msra.mxu0 0.0
          %2785 = vmatprep.subr.mxu0 0.0
          %2786 = vmatpush1.msra.mxu0 0.0
          %2787 = vmatprep.mubr.f32.mxu0 0.0
          %2788 = vmatmul.mubr.f32.gmra.mrb[0].mxu0 %v2718
          %v2789 = vpop.f32.mrb[0].mxu0
          %v2790 = vadd.f32 %v2714, %v2789
          %v2791 = vpop.f32.mrb[0].mxu0
          %2792 = vmatprep.mubr.f32.mxu0 0.0
          %2793 = vmatmul.mubr.f32.gmra.mrb[0].mxu0 %v2721
          %v2794 = vpop.f32.mrb[0].mxu0
          %v2795 = vadd.f32 %v2714, %v2794
          %v2796 = vpop.f32.mrb[0].mxu0
          %2797 = vdwg.mxu0
          %v2798 = vadd.f32 %v2605, %v2790
          %v2799 = vadd.f32 %v2606, %v2795
          %v2800 = vsel %vm2475, %v2798, 0.0
          %2801 = vadd.xlane.f32.xlu0 %v2800
          %v2802 = vpop.xlane.xlu0 %2801
          %v2803 = vsel %vm2475, %v2799, 0.0
          %2804 = vadd.xlane.f32.xlu0 %v2803
          %v2805 = vpop.xlane.xlu0 %2804
          %v2806 = vmul.f32 %v2802, %v2568
          %v2807 = vmul.f32 %v2805, %v2568
          %v2808 = vsub.f32 %v2798, %v2806
          %v2809 = vsub.f32 %v2799, %v2807
          %v2810 = vmul.f32 %v2808, %v2808
          %v2811 = vmul.f32 %v2809, %v2809
          %v2812 = vsel %vm2475, %v2810, 0.0
          %2813 = vadd.xlane.f32.xlu0 %v2812
          %v2814 = vpop.xlane.xlu0 %2813
          %v2815 = vsel %vm2475, %v2811, 0.0
          %2816 = vadd.xlane.f32.xlu0 %v2815
          %v2817 = vpop.xlane.xlu0 %2816
          %v2818 = vmul.f32 %v2814, %v2568
          %v2819 = vmul.f32 %v2817, %v2568
          %v2820 = vadd.f32 %v2818, 1e-05
          %v2821 = vadd.f32 %v2819, 1e-05
          %v2822 = vrsqrt.pop %v2820
          %v2823 = vrsqrt.pop %v2821
          %v2824 = vmul.f32 %v2808, %v2822
          %v2825 = vmul.f32 %v2809, %v2823
          %v2826 = vld [vmem:[%s16] sm:$0x1]
          %v2828 = vlaneseq
          %v2829 = vshrl.u32 %v2828, 7
          %v2830 = vsub.s32 0, %v2829
          %v2831 = vrot.slane %v2826, %v2830
          %v2833 = vmul.f32 %v2824, %v2831
          %v2834 = vmul.f32 %v2825, %v2831
          %v2835 = vld [vmem:[%s17] sm:$0x1]
          %v2837 = vlaneseq
          %v2838 = vshrl.u32 %v2837, 7
          %v2839 = vsub.s32 0, %v2838
          %v2840 = vrot.slane %v2835, %v2839
          %v2842 = vadd.f32 %v2833, %v2840
          %v2843 = vadd.f32 %v2834, %v2840
          %2844 = vst.msk [vmem:[#allocation4] sm:$0xff] %vm2475, %v2842
          %2845 = vst.msk [vmem:[#allocation4 + $0x8] sm:$0xff] %vm2475, %v2843
        $region100: #{tpu_custom_call.1} parent=91 // pred_fallthru
          _
        // Predicated region
        $region101: #{tpu_custom_call.1} parent=91 // pred_check
          %p2846 = pneg %p429
        $region102: #{tpu_custom_call.1} parent=91 // pred_check_branch
          %2848 = sbr.rel (%p2846) target = $region104
        $region103: #{tpu_custom_call.1} parent=91 // pred_region
          %s2850 = ssub.s32 256, 256
          %2851 = vsyncadd [#allocation5], %s2850
          %s2852 = sshll.u32 [#allocation4], 4
          %s2853 = int_to_ptr.vmem [resolvable:$true] %s2852
          %2858 = dma.vmem_to_hbm [thread:$0]  %s2853, 256, %s18, [#allocation5], 128, 128, 8
        $region104: #{tpu_custom_call.1} parent=91 // pred_fallthru
          _
        // Predicated region
        $region105: #{tpu_custom_call.1} parent=91 // pred_check
          %p2859 = pneg %p450
        $region106: #{tpu_custom_call.1} parent=91 // pred_check_branch
          %2861 = sbr.rel (%p2859) target = $region108
        $region107: #{tpu_custom_call.1} parent=91 // pred_region
          %s2863 = ssub.s32 16, 16
          %2864 = vsyncadd [#allocation6], %s2863
          %2867 = dma.smem_to_hbm [#allocation7], 16, %s19, [#allocation6]
        $region108: #{tpu_custom_call.1} parent=91 // pred_fallthru
          _
        // Predicated region
        $region109: #{tpu_custom_call.1} parent=91 // pred_check
          %p2868 = pneg %p429
        $region110: #{tpu_custom_call.1} parent=91 // pred_check_branch
          %2870 = sbr.rel (%p2868) target = $region112
        $region111: #{tpu_custom_call.1} parent=91 // pred_region
          %2871 = dma.done [#allocation5], 256
        $region112: #{tpu_custom_call.1} parent=91 // pred_fallthru
          _
        // Predicated region
        $region113: #{tpu_custom_call.1} parent=91 // pred_check
          %p2872 = pneg %p450
        $region114: #{tpu_custom_call.1} parent=91 // pred_check_branch
          %2874 = sbr.rel (%p2872) target = $region116
        $region115: #{tpu_custom_call.1} parent=91 // pred_region
          %2875 = dma.done [#allocation6], 16
        $region116: #{tpu_custom_call.1} parent=91 // pred_fallthru
          _
        %2876 = sfence
      $region92: #{tpu_custom_call.1} parent=5 // pred_fallthru
        _
      %p2877 = scmp.le.s32.totalorder 2, %s28
      // Predicated region
      $region117: #{tpu_custom_call.1} parent=5 // pred_check
        %p2878 = pneg %p2877
      $region118: #{tpu_custom_call.1} parent=5 // pred_check_branch
        %2880 = sbr.rel (%p2878) target = $region120
      $region119: #{tpu_custom_call.1} parent=5 // pred_region
        %s2881 = ssub.s32 %s28, 2
      $region120: #{tpu_custom_call.1} parent=5 // pred_fallthru
        _
    $region6: #{tpu_custom_call.1} parent=1 // loop_footer
      %s32 = sadd.s32 1, %s28
    $region7: #{tpu_custom_call.1} parent=1 // loop_footer_branch
      %27 = sbr.rel target = $region3
    $region8: #{tpu_custom_call.1} parent=1 // loop_exit
      _
    %2882 = vsyncpa [#allocation5], 1
    %s2883 = scalar_lea.sflag [#allocation5], 1
    %2884 = vsyncpa %s2883, 1
    %2885 = vsyncpa [#allocation6], 1
    %s2886 = scalar_lea.sflag [#allocation6], 1
    %2887 = vsyncpa %s2886, 1

</llo_original>
